<compile_context>
chip_gen: v6e
topology: v6e:2x2x1
jax: 0.10.0
libtpu: 0.0.40
codegen_flags: <defaults>
</compile_context>

<pallas_src>
import functools

import jax
import jax.numpy as jnp
from jax.experimental import pallas as pl
from jax.experimental.pallas import tpu as pltpu


# ----------------------------------------------------------------------------
# Fused kernel: one (image, H-tile) grid step.
# ----------------------------------------------------------------------------
def _bottleneck_kernel(x_ref, top_ref, bot_ref,
                       w1_ref, w2_ref, w3_ref,
                       s1_ref, b1_ref, s2_ref, b2_ref, s3_ref, b3_ref,
                       o_ref,
                       p1_ref, col_ref,
                       *, th, wd):
    hi = pl.program_id(1)
    nh = pl.num_programs(1)
    cin = x_ref.shape[-1]           # padded in-channels (== padded out-channels)
    cw = w1_ref.shape[-1]           # padded bottleneck width
    cout = w3_ref.shape[-1]         # padded out-channels
    rows = th * wd

    # ---- stage 1: 1x1 conv + BN + ReLU --------------------------------------
    # Keep the original-precision tile for the residual path; bf16 feeds the
    # MXU.  Top/bottom halo rows are folded into the same matmul.
    x32 = x_ref[...].reshape(rows, cin)                        # f32, residual
    top = top_ref[...].reshape(wd, cin).astype(jnp.bfloat16)
    bot = bot_ref[...].reshape(wd, cin).astype(jnp.bfloat16)
    full = jnp.concatenate([top, x32.astype(jnp.bfloat16), bot], axis=0)
    y1 = jnp.dot(full, w1_ref[...], preferred_element_type=jnp.float32)
    y1 = jnp.maximum(y1 * s1_ref[...] + b1_ref[...], 0.0).astype(jnp.bfloat16)

    # p1 layout: rows 0 / th+1 and cols 0 / wd+1 are the zero halo for conv2's
    # padding=1; interior is this tile's conv1 output (bf16).  Only the border
    # is (re)written -- no full-scratch zeroing.
    zcol = jnp.zeros((th + 2, 1, cw), jnp.bfloat16)
    p1_ref[:, 0:1, :] = zcol
    p1_ref[:, wd + 1:wd + 2, :] = zcol
    p1_ref[1:th + 1, 1:wd + 1, :] = y1[wd:(th + 1) * wd].reshape(th, wd, cw)
    # Halo rows: the wrapper supplies zero input rows at the image border, but
    # relu(0 @ w1 * s1 + b1) != 0, so mask the conv1 output with the border test.
    top_row = jnp.where(hi > 0, y1[:wd], jnp.zeros_like(y1[:wd]))
    bot_row = jnp.where(hi < nh - 1, y1[(th + 1) * wd:],
                        jnp.zeros_like(y1[:wd]))
    p1_ref[0:1, 1:wd + 1, :] = top_row.reshape(1, wd, cw)
    p1_ref[th + 1:th + 2, 1:wd + 1, :] = bot_row.reshape(1, wd, cw)

    # ---- stage 2: 3x3 conv as ONE im2col matmul (K = 9*cw) ------------------
    for kh in range(3):
        for kw in range(3):
            j = kh * 3 + kw
            win = p1_ref[kh:kh + th, kw:kw + wd, :]
            col_ref[:, j * cw:(j + 1) * cw] = win.reshape(rows, cw)
    y2 = jnp.dot(col_ref[...], w2_ref[...], preferred_element_type=jnp.float32)
    y2 = jnp.maximum(y2 * s2_ref[...] + b2_ref[...], 0.0).astype(jnp.bfloat16)

    # ---- stage 3: 1x1 conv + BN + residual add (f32) + ReLU -----------------
    y3 = jnp.dot(y2, w3_ref[...], preferred_element_type=jnp.float32)
    y3 = y3 * s3_ref[...] + b3_ref[...] + x32
    o_ref[...] = jnp.maximum(y3, 0.0).astype(o_ref.dtype).reshape(
        1, 1, rows, cout)


# ----------------------------------------------------------------------------
# Wrapper.
# ----------------------------------------------------------------------------
def _bn_fold(gamma, beta, mean, var, eps=1e-5):
    scale = gamma / jnp.sqrt(var + eps)
    bias = beta - mean * scale
    return (scale.reshape(1, -1).astype(jnp.float32),
            bias.reshape(1, -1).astype(jnp.float32))


def _round_up(x, m):
    return (x + m - 1) // m * m


def _pick_tile_h(h, target):
    t = min(h, target)
    while h % t:
        t -= 1
    return t


def bottleneck_forward(x_nchw, params, *, tile_h=16, out_dtype=jnp.bfloat16,
                       vmem_limit_mb=48):
    """Bottleneck forward (inference BN). x_nchw: (N, Cin, H, W) f32."""
    N, cin, H, W = x_nchw.shape
    w1, w2, w3 = params["w1"], params["w2"], params["w3"]
    width = w1.shape[1]
    cout = w3.shape[1]
    assert w1.shape == (cin, width) and w2.shape == (9, width, width)
    assert cin == cout, "downsample=None requires in_channel == out_channel*expansion"
    # TODO(synk): training-mode BN (batch statistics), stride != 1 / downsample
    # and groups != 1 paths of the module are not implemented.

    s1, b1 = _bn_fold(*params["bn1"])
    s2, b2 = _bn_fold(*params["bn2"])
    s3, b3 = _bn_fold(*params["bn3"])

    # Lane-dense channel padding (multiples of 128).  Padded channels carry
    # zero weights and zero scale/bias so they stay exactly zero end-to-end.
    cp_in = _round_up(cin, 128)
    cp_w = _round_up(width, 128)
    cp_out = cp_in

    th = _pick_tile_h(H, tile_h)          # largest divisor of H that is <= tile_h
    nt = H // th
    # TODO(synk): for H=W=7 late stages with small N the (N, nt=1) grid can
    # leave one v7x TensorCore idle; add a W- or channel-split grid axis there.

    # NCHW -> NHWC, pad channels.  Kept in f32: the kernel casts to bf16 for
    # the MXU but uses the original-precision values for the residual add.
    x = jnp.transpose(x_nchw, (0, 2, 3, 1)).astype(jnp.float32)
    x = jnp.pad(x, ((0, 0), (0, 0), (0, 0), (0, cp_in - cin)))

    # One-row halos above / below each H tile (zero rows at the image border).
    zrow = jnp.zeros((N, 1, W, cp_in), jnp.float32)
    if nt > 1:
        top_rows = jnp.concatenate([zrow, x[:, th - 1:H - 1:th]], axis=1)
        bot_rows = jnp.concatenate([x[:, th:H:th], zrow], axis=1)
    else:
        top_rows = bot_rows = zrow

    x_t = x.reshape(N, nt, th * W, cp_in)          # contiguous reinterpretation

    def pad_mat(w, r, c):
        return jnp.zeros((r, c), jnp.bfloat16).at[:w.shape[0], :w.shape[1]].set(
            w.astype(jnp.bfloat16))

    def pad_vec(v, c):
        return jnp.zeros((1, c), jnp.float32).at[:, :v.shape[1]].set(v)

    w1p = pad_mat(w1, cp_in, cp_w)
    w3p = pad_mat(w3, cp_w, cp_out)
    # conv2 weights packed for the im2col matmul: (9*cp_w, cp_w), tap-major.
    # TODO(synk): for real width-64 stages pack taps at the true width
    # (K = 9*64 = 576 -> pad to 640) to avoid ~2x conv2 MXU-FLOP inflation.
    w2p = (jnp.zeros((9, cp_w, cp_w), jnp.bfloat16)
           .at[:, :width, :width].set(w2.astype(jnp.bfloat16))
           .reshape(9 * cp_w, cp_w))
    s1p, b1p = pad_vec(s1, cp_w), pad_vec(b1, cp_w)
    s2p, b2p = pad_vec(s2, cp_w), pad_vec(b2, cp_w)
    s3p, b3p = pad_vec(s3, cp_out), pad_vec(b3, cp_out)

    kernel = functools.partial(_bottleneck_kernel, th=th, wd=W)

    tile_spec = pl.BlockSpec((1, 1, th * W, cp_in), lambda n, h: (n, h, 0, 0))
    row_spec = pl.BlockSpec((1, 1, W, cp_in), lambda n, h: (n, h, 0, 0))
    out_spec = pl.BlockSpec((1, 1, th * W, cp_out), lambda n, h: (n, h, 0, 0))

    def const_spec(shape):
        # TODO(synk): single-buffer these constants (pipeline_mode=pl.Buffered(1)
        # or a one-time manual DMA) to save ~9-10 MB of VMEM at width=512 on v7x.
        return pl.BlockSpec(shape, lambda n, h: (0,) * len(shape))

    out_bytes = jnp.dtype(out_dtype).itemsize
    flops = 2 * N * H * W * (cp_in * cp_w + 9 * cp_w * cp_w + cp_w * cp_out)
    bytes_accessed = int(
        (x_t.size + top_rows.size + bot_rows.size) * 4
        + (w1p.size + w2p.size + w3p.size) * 2
        + N * H * W * cp_out * out_bytes + (4 * cp_w + 2 * cp_out) * 4)

    out = pl.pallas_call(
        kernel,
        out_shape=jax.ShapeDtypeStruct((N, nt, th * W, cp_out), out_dtype),
        grid=(N, nt),
        in_specs=[tile_spec, row_spec, row_spec,
                  const_spec((cp_in, cp_w)),
                  const_spec((9 * cp_w, cp_w)),
                  const_spec((cp_w, cp_out)),
                  const_spec((1, cp_w)), const_spec((1, cp_w)),
                  const_spec((1, cp_w)), const_spec((1, cp_w)),
                  const_spec((1, cp_out)), const_spec((1, cp_out))],
        out_specs=out_spec,
        scratch_shapes=[
            pltpu.VMEM((th + 2, W + 2, cp_w), jnp.bfloat16),   # haloed conv1 out
            pltpu.VMEM((th * W, 9 * cp_w), jnp.bfloat16),      # im2col buffer
        ],
        compiler_params=pltpu.CompilerParams(
            dimension_semantics=("parallel", "parallel"),
            vmem_limit_bytes=vmem_limit_mb * 1024 * 1024),
        cost_estimate=pl.CostEstimate(flops=flops, transcendentals=0,
                                      bytes_accessed=bytes_accessed),
    )(x_t, top_rows, bot_rows, w1p, w2p, w3p, s1p, b1p, s2p, b2p, s3p, b3p)

    out = out.reshape(N, H, W, cp_out)[..., :cout]
    return jnp.transpose(out, (0, 3, 1, 2))


# ----------------------------------------------------------------------------
# Pure-JAX f32 reference (same semantics) for the correctness check.
# ----------------------------------------------------------------------------
def bottleneck_reference(x_nchw, params):
    x = jnp.transpose(x_nchw, (0, 2, 3, 1)).astype(jnp.float32)
    s1, b1 = _bn_fold(*params["bn1"])
    s2, b2 = _bn_fold(*params["bn2"])
    s3, b3 = _bn_fold(*params["bn3"])

    def pw(h, w):
        return jnp.einsum("nhwc,cd->nhwd", h, w,
                          precision=jax.lax.Precision.HIGHEST)

    y = jax.nn.relu(pw(x, params["w1"]) * s1 + b1)
    w2 = params["w2"].reshape(3, 3, y.shape[-1], -1)          # (kh,kw,Cin,Cout)
    y = jax.lax.conv_general_dilated(
        y, w2, window_strides=(1, 1), padding="SAME",
        dimension_numbers=("NHWC", "HWIO", "NHWC"),
        precision=jax.lax.Precision.HIGHEST)
    y = jax.nn.relu(y * s2 + b2)
    y = jax.nn.relu(pw(y, params["w3"]) * s3 + b3 + x)
    return jnp.transpose(y, (0, 3, 1, 2))


def make_params(key, in_channel, out_channel):
    """Deterministic synthetic parameters matching the module's shapes."""
    expansion = 4
    width = out_channel                    # groups=1, width_per_group=64
    out_exp = out_channel * expansion
    keys = jax.random.split(key, 6)

    def bn(k, c):
        kg, kb, km, kv = jax.random.split(k, 4)
        gamma = 1.0 + 0.1 * jax.random.normal(kg, (c,), jnp.float32)
        beta = 0.1 * jax.random.normal(kb, (c,), jnp.float32)
        mean = 0.1 * jax.random.normal(km, (c,), jnp.float32)
        var = jnp.abs(jax.random.normal(kv, (c,), jnp.float32)) + 0.5
        return (gamma, beta, mean, var)

    return {
        "w1": 0.1 * jax.random.normal(keys[0], (in_channel, width), jnp.float32),
        "w2": 0.1 * jax.random.normal(keys[1], (9, width, width), jnp.float32),
        "w3": 0.1 * jax.random.normal(keys[2], (width, out_exp), jnp.float32),
        "bn1": bn(keys[3], width),
        "bn2": bn(keys[4], width),
        "bn3": bn(keys[5], out_exp),
    }


if __name__ == "__main__":
    key = jax.random.PRNGKey(0)
    out_channel = 4
    in_channel = out_channel * 4           # downsample=None config
    N, H, W = 2, 16, 16

    kx, kp = jax.random.split(key)
    x = jax.random.normal(kx, (N, in_channel, H, W), jnp.float32)
    params = make_params(kp, in_channel, out_channel)

    # tile_h=8 -> 2 H-tiles per image, so the inter-tile halo path is exercised.
    fwd = jax.jit(functools.partial(bottleneck_forward, tile_h=8))
    out = jax.block_until_ready(fwd(x, params))
    ref = jax.block_until_ready(bottleneck_reference(x, params))

    assert out.shape == (N, out_channel * 4, H, W), out.shape
    out32 = out.astype(jnp.float32)
    max_err = float(jnp.max(jnp.abs(out32 - ref)))
    # bf16 matmul inputs + bf16 output store (f32 accumulation and f32 residual)
    # -> slightly relaxed tolerance.
    assert jnp.allclose(out32, ref, rtol=3e-2, atol=3e-2), max_err
    print("KERNEL_OK")
</pallas_src>

<mosaic_0001>
module attributes {stable_mosaic.version = 11 : i64} {
  func.func @_bottleneck_kernel(%arg0: i32, %arg1: i32, %arg2: memref<1x1x128x128xf32, #tpu.memory_space<vmem>>, %arg3: memref<1x1x16x128xf32, #tpu.memory_space<vmem>>, %arg4: memref<1x1x16x128xf32, #tpu.memory_space<vmem>>, %arg5: memref<128x128xbf16, #tpu.memory_space<vmem>>, %arg6: memref<1152x128xbf16, #tpu.memory_space<vmem>>, %arg7: memref<128x128xbf16, #tpu.memory_space<vmem>>, %arg8: memref<1x128xf32, #tpu.memory_space<vmem>>, %arg9: memref<1x128xf32, #tpu.memory_space<vmem>>, %arg10: memref<1x128xf32, #tpu.memory_space<vmem>>, %arg11: memref<1x128xf32, #tpu.memory_space<vmem>>, %arg12: memref<1x128xf32, #tpu.memory_space<vmem>>, %arg13: memref<1x128xf32, #tpu.memory_space<vmem>>, %arg14: memref<1x1x128x128xbf16, #tpu.memory_space<vmem>>, %arg15: memref<10x18x128xbf16, #tpu.memory_space<vmem>>, %arg16: memref<128x1152xbf16, #tpu.memory_space<vmem>>) attributes {dimension_semantics = [#tpu.dimension_semantics<parallel>, #tpu.dimension_semantics<parallel>], iteration_bounds = array<i64: 2, 2>, scalar_prefetch = 0 : i64, scratch_operands = 2 : i64, tpu.core_type = #tpu.core_type<tc>, window_params = [{transform_indices = @transform_0, window_bounds = array<i64: 1, 1, 128, 128>}, {transform_indices = @transform_1, window_bounds = array<i64: 1, 1, 16, 128>}, {transform_indices = @transform_2, window_bounds = array<i64: 1, 1, 16, 128>}, {pipeline_mode = #tpu.pipeline_mode<synchronous>, transform_indices = @transform_3, window_bounds = array<i64: 128, 128>}, {pipeline_mode = #tpu.pipeline_mode<synchronous>, transform_indices = @transform_4, window_bounds = array<i64: 1152, 128>}, {pipeline_mode = #tpu.pipeline_mode<synchronous>, transform_indices = @transform_5, window_bounds = array<i64: 128, 128>}, {pipeline_mode = #tpu.pipeline_mode<synchronous>, transform_indices = @transform_6, window_bounds = array<i64: 1, 128>}, {pipeline_mode = #tpu.pipeline_mode<synchronous>, transform_indices = @transform_7, window_bounds = array<i64: 1, 128>}, {pipeline_mode = #tpu.pipeline_mode<synchronous>, transform_indices = @transform_8, window_bounds = array<i64: 1, 128>}, {pipeline_mode = #tpu.pipeline_mode<synchronous>, transform_indices = @transform_9, window_bounds = array<i64: 1, 128>}, {pipeline_mode = #tpu.pipeline_mode<synchronous>, transform_indices = @transform_10, window_bounds = array<i64: 1, 128>}, {pipeline_mode = #tpu.pipeline_mode<synchronous>, transform_indices = @transform_11, window_bounds = array<i64: 1, 128>}, {transform_indices = @transform_12, window_bounds = array<i64: 1, 1, 128, 128>}]} {
    %c0 = arith.constant 0 : index
    %c0_0 = arith.constant 0 : index
    %c0_1 = arith.constant 0 : index
    %c0_2 = arith.constant 0 : index
    %0 = vector.load %arg2[%c0, %c0_0, %c0_1, %c0_2] : memref<1x1x128x128xf32, #tpu.memory_space<vmem>>, vector<1x1x128x128xf32>
    %1 = vector.shape_cast %0 : vector<1x1x128x128xf32> to vector<128x128xf32>
    %c0_3 = arith.constant 0 : index
    %c0_4 = arith.constant 0 : index
    %c0_5 = arith.constant 0 : index
    %c0_6 = arith.constant 0 : index
    %2 = vector.load %arg3[%c0_3, %c0_4, %c0_5, %c0_6] : memref<1x1x16x128xf32, #tpu.memory_space<vmem>>, vector<1x1x16x128xf32>
    %3 = vector.shape_cast %2 : vector<1x1x16x128xf32> to vector<16x128xf32>
    %4 = arith.truncf %3 : vector<16x128xf32> to vector<16x128xbf16>
    %c0_7 = arith.constant 0 : index
    %c0_8 = arith.constant 0 : index
    %c0_9 = arith.constant 0 : index
    %c0_10 = arith.constant 0 : index
    %5 = vector.load %arg4[%c0_7, %c0_8, %c0_9, %c0_10] : memref<1x1x16x128xf32, #tpu.memory_space<vmem>>, vector<1x1x16x128xf32>
    %6 = vector.shape_cast %5 : vector<1x1x16x128xf32> to vector<16x128xf32>
    %7 = arith.truncf %6 : vector<16x128xf32> to vector<16x128xbf16>
    %8 = arith.truncf %1 : vector<128x128xf32> to vector<128x128xbf16>
    %9 = tpu.concatenate %4, %8, %7 in 0 : vector<16x128xbf16>, vector<128x128xbf16>, vector<16x128xbf16> -> vector<160x128xbf16>
    %c0_11 = arith.constant 0 : index
    %c0_12 = arith.constant 0 : index
    %10 = vector.load %arg5[%c0_11, %c0_12] : memref<128x128xbf16, #tpu.memory_space<vmem>>, vector<128x128xbf16>
    %cst = arith.constant dense<0.000000e+00> : vector<160x128xf32>
    %11 = tpu.matmul %9, %10, %cst {dimension_numbers = #tpu.dot_dimension_numbers<[1], [0], [0], [1], [0, 0, 1, 1], [], []>} : vector<160x128xbf16>, vector<128x128xbf16>, vector<160x128xf32> -> vector<160x128xf32>
    %c0_13 = arith.constant 0 : index
    %c0_14 = arith.constant 0 : index
    %12 = vector.load %arg8[%c0_13, %c0_14] : memref<1x128xf32, #tpu.memory_space<vmem>>, vector<1x128xf32>
    %13 = vector.broadcast %12 : vector<1x128xf32> to vector<160x128xf32>
    %14 = arith.mulf %11, %13 : vector<160x128xf32>
    %c0_15 = arith.constant 0 : index
    %c0_16 = arith.constant 0 : index
    %15 = vector.load %arg9[%c0_15, %c0_16] : memref<1x128xf32, #tpu.memory_space<vmem>>, vector<1x128xf32>
    %16 = vector.broadcast %15 : vector<1x128xf32> to vector<160x128xf32>
    %17 = arith.addf %14, %16 : vector<160x128xf32>
    %cst_17 = arith.constant 0.000000e+00 : f32
    %18 = vector.broadcast %cst_17 : f32 to vector<160x128xf32>
    %19 = arith.maximumf %17, %18 : vector<160x128xf32>
    %20 = arith.truncf %19 : vector<160x128xf32> to vector<160x128xbf16>
    %cst_18 = arith.constant 0.000000e+00 : bf16
    %21 = vector.broadcast %cst_18 : bf16 to vector<10x1x128xbf16>
    %c0_19 = arith.constant 0 : index
    %c0_20 = arith.constant 0 : index
    %c0_21 = arith.constant 0 : index
    %22 = vector.load %arg15[%c0_19, %c0_20, %c0_21] : memref<10x18x128xbf16, #tpu.memory_space<vmem>>, vector<10x1x128xbf16>
    tpu.vector_store %arg15[%c0_19, %c0_20, %c0_21], %21 {strides = array<i32>} : memref<10x18x128xbf16, #tpu.memory_space<vmem>>, vector<10x1x128xbf16>,
    %c0_22 = arith.constant 0 : index
    %c17 = arith.constant 17 : index
    %c0_23 = arith.constant 0 : index
    %23 = vector.load %arg15[%c0_22, %c17, %c0_23] : memref<10x18x128xbf16, #tpu.memory_space<vmem>>, vector<10x1x128xbf16>
    tpu.vector_store %arg15[%c0_22, %c17, %c0_23], %21 {strides = array<i32>} : memref<10x18x128xbf16, #tpu.memory_space<vmem>>, vector<10x1x128xbf16>,
    %24 = vector.extract_strided_slice %20 {offsets = [16, 0], sizes = [128, 128], strides = [1, 1]} : vector<160x128xbf16> to vector<128x128xbf16>
    %25 = vector.shape_cast %24 : vector<128x128xbf16> to vector<8x16x128xbf16>
    %c1 = arith.constant 1 : index
    %c1_24 = arith.constant 1 : index
    %c0_25 = arith.constant 0 : index
    %26 = vector.load %arg15[%c1, %c1_24, %c0_25] : memref<10x18x128xbf16, #tpu.memory_space<vmem>>, vector<8x16x128xbf16>
    tpu.vector_store %arg15[%c1, %c1_24, %c0_25], %25 {strides = array<i32>} : memref<10x18x128xbf16, #tpu.memory_space<vmem>>, vector<8x16x128xbf16>,
    %c0_i32 = arith.constant 0 : i32
    %27 = arith.cmpi sgt, %arg1, %c0_i32 : i32
    %28 = vector.extract_strided_slice %20 {offsets = [0, 0], sizes = [16, 128], strides = [1, 1]} : vector<160x128xbf16> to vector<16x128xbf16>
    %cst_26 = arith.constant 0.000000e+00 : bf16
    %29 = vector.broadcast %cst_26 : bf16 to vector<16x128xbf16>
    %30 = arith.select %27, %28, %29 : vector<16x128xbf16>
    %c1_i32 = arith.constant 1 : i32
    %31 = arith.cmpi slt, %arg1, %c1_i32 : i32
    %32 = vector.extract_strided_slice %20 {offsets = [144, 0], sizes = [16, 128], strides = [1, 1]} : vector<160x128xbf16> to vector<16x128xbf16>
    %cst_27 = arith.constant 0.000000e+00 : bf16
    %33 = vector.broadcast %cst_27 : bf16 to vector<16x128xbf16>
    %34 = arith.select %31, %32, %33 : vector<16x128xbf16>
    %35 = vector.shape_cast %30 : vector<16x128xbf16> to vector<1x16x128xbf16>
    %c0_28 = arith.constant 0 : index
    %c1_29 = arith.constant 1 : index
    %c0_30 = arith.constant 0 : index
    %36 = vector.load %arg15[%c0_28, %c1_29, %c0_30] : memref<10x18x128xbf16, #tpu.memory_space<vmem>>, vector<1x16x128xbf16>
    tpu.vector_store %arg15[%c0_28, %c1_29, %c0_30], %35 {strides = array<i32>} : memref<10x18x128xbf16, #tpu.memory_space<vmem>>, vector<1x16x128xbf16>,
    %37 = vector.shape_cast %34 : vector<16x128xbf16> to vector<1x16x128xbf16>
    %c9 = arith.constant 9 : index
    %c1_31 = arith.constant 1 : index
    %c0_32 = arith.constant 0 : index
    %38 = vector.load %arg15[%c9, %c1_31, %c0_32] : memref<10x18x128xbf16, #tpu.memory_space<vmem>>, vector<1x16x128xbf16>
    tpu.vector_store %arg15[%c9, %c1_31, %c0_32], %37 {strides = array<i32>} : memref<10x18x128xbf16, #tpu.memory_space<vmem>>, vector<1x16x128xbf16>,
    %c0_33 = arith.constant 0 : index
    %c0_34 = arith.constant 0 : index
    %c0_35 = arith.constant 0 : index
    %39 = vector.load %arg15[%c0_33, %c0_34, %c0_35] : memref<10x18x128xbf16, #tpu.memory_space<vmem>>, vector<8x16x128xbf16>
    %40 = vector.shape_cast %39 : vector<8x16x128xbf16> to vector<128x128xbf16>
    %c0_36 = arith.constant 0 : index
    %c0_37 = arith.constant 0 : index
    %41 = vector.load %arg16[%c0_36, %c0_37] : memref<128x1152xbf16, #tpu.memory_space<vmem>>, vector<128x128xbf16>
    tpu.vector_store %arg16[%c0_36, %c0_37], %40 {strides = array<i32>} : memref<128x1152xbf16, #tpu.memory_space<vmem>>, vector<128x128xbf16>,
    %c0_38 = arith.constant 0 : index
    %c1_39 = arith.constant 1 : index
    %c0_40 = arith.constant 0 : index
    %42 = vector.load %arg15[%c0_38, %c1_39, %c0_40] : memref<10x18x128xbf16, #tpu.memory_space<vmem>>, vector<8x16x128xbf16>
    %43 = vector.shape_cast %42 : vector<8x16x128xbf16> to vector<128x128xbf16>
    %c0_41 = arith.constant 0 : index
    %c128 = arith.constant 128 : index
    %44 = vector.load %arg16[%c0_41, %c128] : memref<128x1152xbf16, #tpu.memory_space<vmem>>, vector<128x128xbf16>
    tpu.vector_store %arg16[%c0_41, %c128], %43 {strides = array<i32>} : memref<128x1152xbf16, #tpu.memory_space<vmem>>, vector<128x128xbf16>,
    %c0_42 = arith.constant 0 : index
    %c2 = arith.constant 2 : index
    %c0_43 = arith.constant 0 : index
    %45 = vector.load %arg15[%c0_42, %c2, %c0_43] : memref<10x18x128xbf16, #tpu.memory_space<vmem>>, vector<8x16x128xbf16>
    %46 = vector.shape_cast %45 : vector<8x16x128xbf16> to vector<128x128xbf16>
    %c0_44 = arith.constant 0 : index
    %c256 = arith.constant 256 : index
    %47 = vector.load %arg16[%c0_44, %c256] : memref<128x1152xbf16, #tpu.memory_space<vmem>>, vector<128x128xbf16>
    tpu.vector_store %arg16[%c0_44, %c256], %46 {strides = array<i32>} : memref<128x1152xbf16, #tpu.memory_space<vmem>>, vector<128x128xbf16>,
    %c1_45 = arith.constant 1 : index
    %c0_46 = arith.constant 0 : index
    %c0_47 = arith.constant 0 : index
    %48 = vector.load %arg15[%c1_45, %c0_46, %c0_47] : memref<10x18x128xbf16, #tpu.memory_space<vmem>>, vector<8x16x128xbf16>
    %49 = vector.shape_cast %48 : vector<8x16x128xbf16> to vector<128x128xbf16>
    %c0_48 = arith.constant 0 : index
    %c384 = arith.constant 384 : index
    %50 = vector.load %arg16[%c0_48, %c384] : memref<128x1152xbf16, #tpu.memory_space<vmem>>, vector<128x128xbf16>
    tpu.vector_store %arg16[%c0_48, %c384], %49 {strides = array<i32>} : memref<128x1152xbf16, #tpu.memory_space<vmem>>, vector<128x128xbf16>,
    %c1_49 = arith.constant 1 : index
    %c1_50 = arith.constant 1 : index
    %c0_51 = arith.constant 0 : index
    %51 = vector.load %arg15[%c1_49, %c1_50, %c0_51] : memref<10x18x128xbf16, #tpu.memory_space<vmem>>, vector<8x16x128xbf16>
    %52 = vector.shape_cast %51 : vector<8x16x128xbf16> to vector<128x128xbf16>
    %c0_52 = arith.constant 0 : index
    %c512 = arith.constant 512 : index
    %53 = vector.load %arg16[%c0_52, %c512] : memref<128x1152xbf16, #tpu.memory_space<vmem>>, vector<128x128xbf16>
    tpu.vector_store %arg16[%c0_52, %c512], %52 {strides = array<i32>} : memref<128x1152xbf16, #tpu.memory_space<vmem>>, vector<128x128xbf16>,
    %c1_53 = arith.constant 1 : index
    %c2_54 = arith.constant 2 : index
    %c0_55 = arith.constant 0 : index
    %54 = vector.load %arg15[%c1_53, %c2_54, %c0_55] : memref<10x18x128xbf16, #tpu.memory_space<vmem>>, vector<8x16x128xbf16>
    %55 = vector.shape_cast %54 : vector<8x16x128xbf16> to vector<128x128xbf16>
    %c0_56 = arith.constant 0 : index
    %c640 = arith.constant 640 : index
    %56 = vector.load %arg16[%c0_56, %c640] : memref<128x1152xbf16, #tpu.memory_space<vmem>>, vector<128x128xbf16>
    tpu.vector_store %arg16[%c0_56, %c640], %55 {strides = array<i32>} : memref<128x1152xbf16, #tpu.memory_space<vmem>>, vector<128x128xbf16>,
    %c2_57 = arith.constant 2 : index
    %c0_58 = arith.constant 0 : index
    %c0_59 = arith.constant 0 : index
    %57 = vector.load %arg15[%c2_57, %c0_58, %c0_59] : memref<10x18x128xbf16, #tpu.memory_space<vmem>>, vector<8x16x128xbf16>
    %58 = vector.shape_cast %57 : vector<8x16x128xbf16> to vector<128x128xbf16>
    %c0_60 = arith.constant 0 : index
    %c768 = arith.constant 768 : index
    %59 = vector.load %arg16[%c0_60, %c768] : memref<128x1152xbf16, #tpu.memory_space<vmem>>, vector<128x128xbf16>
    tpu.vector_store %arg16[%c0_60, %c768], %58 {strides = array<i32>} : memref<128x1152xbf16, #tpu.memory_space<vmem>>, vector<128x128xbf16>,
    %c2_61 = arith.constant 2 : index
    %c1_62 = arith.constant 1 : index
    %c0_63 = arith.constant 0 : index
    %60 = vector.load %arg15[%c2_61, %c1_62, %c0_63] : memref<10x18x128xbf16, #tpu.memory_space<vmem>>, vector<8x16x128xbf16>
    %61 = vector.shape_cast %60 : vector<8x16x128xbf16> to vector<128x128xbf16>
    %c0_64 = arith.constant 0 : index
    %c896 = arith.constant 896 : index
    %62 = vector.load %arg16[%c0_64, %c896] : memref<128x1152xbf16, #tpu.memory_space<vmem>>, vector<128x128xbf16>
    tpu.vector_store %arg16[%c0_64, %c896], %61 {strides = array<i32>} : memref<128x1152xbf16, #tpu.memory_space<vmem>>, vector<128x128xbf16>,
    %c2_65 = arith.constant 2 : index
    %c2_66 = arith.constant 2 : index
    %c0_67 = arith.constant 0 : index
    %63 = vector.load %arg15[%c2_65, %c2_66, %c0_67] : memref<10x18x128xbf16, #tpu.memory_space<vmem>>, vector<8x16x128xbf16>
    %64 = vector.shape_cast %63 : vector<8x16x128xbf16> to vector<128x128xbf16>
    %c0_68 = arith.constant 0 : index
    %c1024 = arith.constant 1024 : index
    %65 = vector.load %arg16[%c0_68, %c1024] : memref<128x1152xbf16, #tpu.memory_space<vmem>>, vector<128x128xbf16>
    tpu.vector_store %arg16[%c0_68, %c1024], %64 {strides = array<i32>} : memref<128x1152xbf16, #tpu.memory_space<vmem>>, vector<128x128xbf16>,
    %c0_69 = arith.constant 0 : index
    %c0_70 = arith.constant 0 : index
    %66 = vector.load %arg16[%c0_69, %c0_70] : memref<128x1152xbf16, #tpu.memory_space<vmem>>, vector<128x1152xbf16>
    %c0_71 = arith.constant 0 : index
    %c0_72 = arith.constant 0 : index
    %67 = vector.load %arg6[%c0_71, %c0_72] : memref<1152x128xbf16, #tpu.memory_space<vmem>>, vector<1152x128xbf16>
    %cst_73 = arith.constant dense<0.000000e+00> : vector<128x128xf32>
    %68 = tpu.matmul %66, %67, %cst_73 {dimension_numbers = #tpu.dot_dimension_numbers<[1], [0], [0], [1], [0, 0, 1, 1], [], []>} : vector<128x1152xbf16>, vector<1152x128xbf16>, vector<128x128xf32> -> vector<128x128xf32>
    %c0_74 = arith.constant 0 : index
    %c0_75 = arith.constant 0 : index
    %69 = vector.load %arg10[%c0_74, %c0_75] : memref<1x128xf32, #tpu.memory_space<vmem>>, vector<1x128xf32>
    %70 = vector.broadcast %69 : vector<1x128xf32> to vector<128x128xf32>
    %71 = arith.mulf %68, %70 : vector<128x128xf32>
    %c0_76 = arith.constant 0 : index
    %c0_77 = arith.constant 0 : index
    %72 = vector.load %arg11[%c0_76, %c0_77] : memref<1x128xf32, #tpu.memory_space<vmem>>, vector<1x128xf32>
    %73 = vector.broadcast %72 : vector<1x128xf32> to vector<128x128xf32>
    %74 = arith.addf %71, %73 : vector<128x128xf32>
    %cst_78 = arith.constant 0.000000e+00 : f32
    %75 = vector.broadcast %cst_78 : f32 to vector<128x128xf32>
    %76 = arith.maximumf %74, %75 : vector<128x128xf32>
    %77 = arith.truncf %76 : vector<128x128xf32> to vector<128x128xbf16>
    %c0_79 = arith.constant 0 : index
    %c0_80 = arith.constant 0 : index
    %78 = vector.load %arg7[%c0_79, %c0_80] : memref<128x128xbf16, #tpu.memory_space<vmem>>, vector<128x128xbf16>
    %cst_81 = arith.constant dense<0.000000e+00> : vector<128x128xf32>
    %79 = tpu.matmul %77, %78, %cst_81 {dimension_numbers = #tpu.dot_dimension_numbers<[1], [0], [0], [1], [0, 0, 1, 1], [], []>} : vector<128x128xbf16>, vector<128x128xbf16>, vector<128x128xf32> -> vector<128x128xf32>
    %c0_82 = arith.constant 0 : index
    %c0_83 = arith.constant 0 : index
    %80 = vector.load %arg12[%c0_82, %c0_83] : memref<1x128xf32, #tpu.memory_space<vmem>>, vector<1x128xf32>
    %81 = vector.broadcast %80 : vector<1x128xf32> to vector<128x128xf32>
    %82 = arith.mulf %79, %81 : vector<128x128xf32>
    %c0_84 = arith.constant 0 : index
    %c0_85 = arith.constant 0 : index
    %83 = vector.load %arg13[%c0_84, %c0_85] : memref<1x128xf32, #tpu.memory_space<vmem>>, vector<1x128xf32>
    %84 = vector.broadcast %83 : vector<1x128xf32> to vector<128x128xf32>
    %85 = arith.addf %82, %84 : vector<128x128xf32>
    %86 = arith.addf %85, %1 : vector<128x128xf32>
    %cst_86 = arith.constant 0.000000e+00 : f32
    %87 = vector.broadcast %cst_86 : f32 to vector<128x128xf32>
    %88 = arith.maximumf %86, %87 : vector<128x128xf32>
    %89 = arith.truncf %88 : vector<128x128xf32> to vector<128x128xbf16>
    %90 = vector.shape_cast %89 : vector<128x128xbf16> to vector<1x1x128x128xbf16>
    %c0_87 = arith.constant 0 : index
    %c0_88 = arith.constant 0 : index
    %c0_89 = arith.constant 0 : index
    %c0_90 = arith.constant 0 : index
    %91 = vector.load %arg14[%c0_87, %c0_88, %c0_89, %c0_90] : memref<1x1x128x128xbf16, #tpu.memory_space<vmem>>, vector<1x1x128x128xbf16>
    tpu.vector_store %arg14[%c0_87, %c0_88, %c0_89, %c0_90], %90 {strides = array<i32>} : memref<1x1x128x128xbf16, #tpu.memory_space<vmem>>, vector<1x1x128x128xbf16>,
    return
  }
  func.func @transform_0(%arg0: i32, %arg1: i32) -> (i32, i32, i32, i32) {
    %c0_i32 = arith.constant 0 : i32
    %c0_i32_0 = arith.constant 0 : i32
    %c0_i32_1 = arith.constant 0 : i32
    return %arg0, %arg1, %c0_i32, %c0_i32_0 : i32, i32, i32, i32
  }
  func.func @transform_1(%arg0: i32, %arg1: i32) -> (i32, i32, i32, i32) {
    %c0_i32 = arith.constant 0 : i32
    %c0_i32_0 = arith.constant 0 : i32
    %c0_i32_1 = arith.constant 0 : i32
    return %arg0, %arg1, %c0_i32, %c0_i32_0 : i32, i32, i32, i32
  }
  func.func @transform_2(%arg0: i32, %arg1: i32) -> (i32, i32, i32, i32) {
    %c0_i32 = arith.constant 0 : i32
    %c0_i32_0 = arith.constant 0 : i32
    %c0_i32_1 = arith.constant 0 : i32
    return %arg0, %arg1, %c0_i32, %c0_i32_0 : i32, i32, i32, i32
  }
  func.func @transform_3(%arg0: i32, %arg1: i32) -> (i32, i32) {
    %c0_i32 = arith.constant 0 : i32
    %c0_i32_0 = arith.constant 0 : i32
    %c0_i32_1 = arith.constant 0 : i32
    return %c0_i32, %c0_i32_0 : i32, i32
  }
  func.func @transform_4(%arg0: i32, %arg1: i32) -> (i32, i32) {
    %c0_i32 = arith.constant 0 : i32
    %c0_i32_0 = arith.constant 0 : i32
    %c0_i32_1 = arith.constant 0 : i32
    return %c0_i32, %c0_i32_0 : i32, i32
  }
  func.func @transform_5(%arg0: i32, %arg1: i32) -> (i32, i32) {
    %c0_i32 = arith.constant 0 : i32
    %c0_i32_0 = arith.constant 0 : i32
    %c0_i32_1 = arith.constant 0 : i32
    return %c0_i32, %c0_i32_0 : i32, i32
  }
  func.func @transform_6(%arg0: i32, %arg1: i32) -> (i32, i32) {
    %c0_i32 = arith.constant 0 : i32
    %c0_i32_0 = arith.constant 0 : i32
    %c0_i32_1 = arith.constant 0 : i32
    return %c0_i32, %c0_i32_0 : i32, i32
  }
  func.func @transform_7(%arg0: i32, %arg1: i32) -> (i32, i32) {
    %c0_i32 = arith.constant 0 : i32
    %c0_i32_0 = arith.constant 0 : i32
    %c0_i32_1 = arith.constant 0 : i32
    return %c0_i32, %c0_i32_0 : i32, i32
  }
  func.func @transform_8(%arg0: i32, %arg1: i32) -> (i32, i32) {
    %c0_i32 = arith.constant 0 : i32
    %c0_i32_0 = arith.constant 0 : i32
    %c0_i32_1 = arith.constant 0 : i32
    return %c0_i32, %c0_i32_0 : i32, i32
  }
  func.func @transform_9(%arg0: i32, %arg1: i32) -> (i32, i32) {
    %c0_i32 = arith.constant 0 : i32
    %c0_i32_0 = arith.constant 0 : i32
    %c0_i32_1 = arith.constant 0 : i32
    return %c0_i32, %c0_i32_0 : i32, i32
  }
  func.func @transform_10(%arg0: i32, %arg1: i32) -> (i32, i32) {
    %c0_i32 = arith.constant 0 : i32
    %c0_i32_0 = arith.constant 0 : i32
    %c0_i32_1 = arith.constant 0 : i32
    return %c0_i32, %c0_i32_0 : i32, i32
  }
  func.func @transform_11(%arg0: i32, %arg1: i32) -> (i32, i32) {
    %c0_i32 = arith.constant 0 : i32
    %c0_i32_0 = arith.constant 0 : i32
    %c0_i32_1 = arith.constant 0 : i32
    return %c0_i32, %c0_i32_0 : i32, i32
  }
  func.func @transform_12(%arg0: i32, %arg1: i32) -> (i32, i32, i32, i32) {
    %c0_i32 = arith.constant 0 : i32
    %c0_i32_0 = arith.constant 0 : i32
    %c0_i32_1 = arith.constant 0 : i32
    return %arg0, %arg1, %c0_i32, %c0_i32_0 : i32, i32, i32, i32
  }
}

</mosaic_0001>

<llo_original>
// kernel: bottleneck_forward.1
$region0: #{bottleneck_forward.1}
  #allocation0 [shape = 'u32[]', space=smem, size = 0x4, offset = 0x4, fixed_abs, tag = 'smem constant byte address 0x4 - core index']
  #allocation1 [shape = 'u32[144,128]{1,0:T(1,128)}', space=vmem, size = 0x12000, scoped, tag = 'internal scratch']
  #allocation2 [shape = 'bf16[10,18,128]{2,1,0:T(8,128)(2,1)}', space=vmem, size = 0xf000, scoped, tag = 'scratch operand']
  #allocation3 [shape = 'bf16[128,1152]{1,0:T(8,128)(2,1)}', space=vmem, size = 0x48000, scoped, tag = 'scratch operand']
  %s0 = inlined_call_operand.vmem [shape: f32[2,2,128,128], index: 0, kind: input, shape index: {}]
  %s1 = inlined_call_operand.vmem [shape: f32[2,2,16,128], index: 1, kind: input, shape index: {}]
  %s2 = inlined_call_operand.vmem [shape: f32[2,2,16,128], index: 2, kind: input, shape index: {}]
  %s3 = inlined_call_operand.vmem [shape: bf16[128,128], index: 3, kind: input, shape index: {}]
  %s4 = inlined_call_operand.vmem [shape: bf16[1152,128], index: 4, kind: input, shape index: {}]
  %s5 = inlined_call_operand.vmem [shape: bf16[128,128], index: 5, kind: input, shape index: {}]
  %s6 = inlined_call_operand.vmem [shape: f32[1,128], index: 6, kind: input, shape index: {}]
  %s7 = inlined_call_operand.vmem [shape: f32[1,128], index: 7, kind: input, shape index: {}]
  %s8 = inlined_call_operand.vmem [shape: f32[1,128], index: 8, kind: input, shape index: {}]
  %s9 = inlined_call_operand.vmem [shape: f32[1,128], index: 9, kind: input, shape index: {}]
  %s10 = inlined_call_operand.vmem [shape: f32[1,128], index: 10, kind: input, shape index: {}]
  %s11 = inlined_call_operand.vmem [shape: f32[1,128], index: 11, kind: input, shape index: {}]
  %s12 = inlined_call_operand.vmem [shape: bf16[2,2,128,128], index: 12, kind: output, shape index: {}]
  %s13 = sld [smem:[#allocation0]]
  $region81: #{bottleneck_forward.1} parent=0
    _
  %s15 = ssub.s32 1, %s13
  %s16 = scalar_select 0, %s15, %s13
  loop: start=0, step=1, limit=6
  $region2: #{bottleneck_forward.1} parent=0 // loop_pre_header
    _
  $region3: #{bottleneck_forward.1} parent=0 // loop_header
    %s18 = sphi 0, %s22
    %p19 = scmp.ge.s32.totalorder %s18, 6
    %s25 = sphi 0, %s37
    %s26 = sphi 0, %s33
    %s27 = sphi 0, %s25
    %s28 = sphi 0, %s26
    %s29 = sphi 0, %s27
    %s30 = sphi 0, %s28
    %s42 = sphi 0, %s44
    %s45 = sphi 0, %s42
    %s46 = sphi 0, %s45
    %s62 = sphi 0, %s46
    %s70 = sphi 0, %s72
    %s73 = sphi 0, %s70
    %s74 = sphi 0, %s73
    %s90 = sphi 0, %s74
    %s98 = sphi 0, %s100
    %s101 = sphi 0, %s98
    %s102 = sphi 0, %s101
    %s118 = sphi 0, %s102
    %s122 = sphi 0, %s122
    %s124 = sphi 0, %s122
    %s125 = sphi 0, %s124
    %s139 = sphi 0, %s125
    %s143 = sphi 0, %s143
    %s145 = sphi 0, %s143
    %s146 = sphi 0, %s145
    %s160 = sphi 0, %s146
    %s164 = sphi 0, %s164
    %s166 = sphi 0, %s164
    %s167 = sphi 0, %s166
    %s181 = sphi 0, %s167
    %s185 = sphi 0, %s185
    %s187 = sphi 0, %s185
    %s188 = sphi 0, %s187
    %s202 = sphi 0, %s188
    %s206 = sphi 0, %s206
    %s208 = sphi 0, %s206
    %s209 = sphi 0, %s208
    %s223 = sphi 0, %s209
    %s227 = sphi 0, %s227
    %s229 = sphi 0, %s227
    %s230 = sphi 0, %s229
    %s244 = sphi 0, %s230
    %s248 = sphi 0, %s248
    %s250 = sphi 0, %s248
    %s251 = sphi 0, %s250
    %s265 = sphi 0, %s251
    %s269 = sphi 0, %s269
    %s271 = sphi 0, %s269
    %s272 = sphi 0, %s271
    %s286 = sphi 0, %s272
    %s290 = sphi 0, %s290
    %s292 = sphi 0, %s290
    %s293 = sphi 0, %s292
    %s307 = sphi 0, %s293
    %s315 = sphi 0, %s317
    %s318 = sphi 0, %s315
    %s319 = sphi 0, %s318
    %s335 = sphi 0, %s319
  $region4: #{bottleneck_forward.1} parent=0 // loop_header_branch
    %21 = sbr.rel (%p19) target = $region8
  $region5: #{bottleneck_forward.1} parent=0 // loop_body
    %s23 = ssub.s32 %s18, 1
    %s24 = ssub.s32 %s18, 2
    %s31 = sadd.s32 1, %s26
    %p32 = scmp.ge.s32.totalorder %s31, 2
    %s33 = scalar_select %p32, 0, %s31
    %s34 = sadd.s32 1, %s25
    %s35 = scalar_select %p32, %s34, %s25
    %p36 = scmp.ge.s32.totalorder %s35, 2
    %s37 = scalar_select %p36, 0, %s35
    %s38 = ssub.s32 %s25, %s37
    %s39 = ssub.s32 %s26, %s33
    %s40 = sor.u32 %s38, %s39
    %p41 = scmp.eq.s32.totalorder %s40, 0
    %s43 = sadd.s32 %s42, 1
    %s44 = scalar_select %p41, %s42, %s43
    %p47 = pneg %p41
    %p48 = scmp.eq.s32.totalorder %s18, 3
    %p49 = por %p47, %p48
    %p50 = scmp.ne.s32.totalorder %s42, %s45
    %p51 = scmp.eq.s32.totalorder %s18, 0
    %p52 = por %p50, %p51
    %p53 = scmp.ne.s32.totalorder %s42, %s45
    %p54 = scmp.eq.s32.totalorder %s23, 3
    %p55 = por %p53, %p54
    %p56 = scmp.ne.s32.totalorder %s45, %s46
    %p57 = scmp.eq.s32.totalorder %s23, 0
    %p58 = por %p56, %p57
    %p59 = scmp.ne.s32.totalorder %s45, %s46
    %p60 = scmp.eq.s32.totalorder %s24, 3
    %p61 = por %p59, %p60
    %p63 = scmp.ne.s32.totalorder %s46, %s62
    %p64 = scmp.eq.s32.totalorder %s24, 0
    %p65 = por %p63, %p64
    %s66 = ssub.s32 %s25, %s37
    %s67 = ssub.s32 %s26, %s33
    %s68 = sor.u32 %s66, %s67
    %p69 = scmp.eq.s32.totalorder %s68, 0
    %s71 = sadd.s32 %s70, 1
    %s72 = scalar_select %p69, %s70, %s71
    %p75 = pneg %p69
    %p76 = scmp.eq.s32.totalorder %s18, 3
    %p77 = por %p75, %p76
    %p78 = scmp.ne.s32.totalorder %s70, %s73
    %p79 = scmp.eq.s32.totalorder %s18, 0
    %p80 = por %p78, %p79
    %p81 = scmp.ne.s32.totalorder %s70, %s73
    %p82 = scmp.eq.s32.totalorder %s23, 3
    %p83 = por %p81, %p82
    %p84 = scmp.ne.s32.totalorder %s73, %s74
    %p85 = scmp.eq.s32.totalorder %s23, 0
    %p86 = por %p84, %p85
    %p87 = scmp.ne.s32.totalorder %s73, %s74
    %p88 = scmp.eq.s32.totalorder %s24, 3
    %p89 = por %p87, %p88
    %p91 = scmp.ne.s32.totalorder %s74, %s90
    %p92 = scmp.eq.s32.totalorder %s24, 0
    %p93 = por %p91, %p92
    %s94 = ssub.s32 %s25, %s37
    %s95 = ssub.s32 %s26, %s33
    %s96 = sor.u32 %s94, %s95
    %p97 = scmp.eq.s32.totalorder %s96, 0
    %s99 = sadd.s32 %s98, 1
    %s100 = scalar_select %p97, %s98, %s99
    %p103 = pneg %p97
    %p104 = scmp.eq.s32.totalorder %s18, 3
    %p105 = por %p103, %p104
    %p106 = scmp.ne.s32.totalorder %s98, %s101
    %p107 = scmp.eq.s32.totalorder %s18, 0
    %p108 = por %p106, %p107
    %p109 = scmp.ne.s32.totalorder %s98, %s101
    %p110 = scmp.eq.s32.totalorder %s23, 3
    %p111 = por %p109, %p110
    %p112 = scmp.ne.s32.totalorder %s101, %s102
    %p113 = scmp.eq.s32.totalorder %s23, 0
    %p114 = por %p112, %p113
    %p115 = scmp.ne.s32.totalorder %s101, %s102
    %p116 = scmp.eq.s32.totalorder %s24, 3
    %p117 = por %p115, %p116
    %p119 = scmp.ne.s32.totalorder %s102, %s118
    %p120 = scmp.eq.s32.totalorder %s24, 0
    %p121 = por %p119, %p120
    %s123 = sadd.s32 %s122, 1
    %p126 = scmp.eq.s32.totalorder %s18, 3
    %p127 = scmp.ne.s32.totalorder %s122, %s124
    %p128 = scmp.eq.s32.totalorder %s18, 0
    %p129 = por %p127, %p128
    %p130 = scmp.ne.s32.totalorder %s122, %s124
    %p131 = scmp.eq.s32.totalorder %s23, 3
    %p132 = por %p130, %p131
    %p133 = scmp.ne.s32.totalorder %s124, %s125
    %p134 = scmp.eq.s32.totalorder %s23, 0
    %p135 = por %p133, %p134
    %p136 = scmp.ne.s32.totalorder %s124, %s125
    %p137 = scmp.eq.s32.totalorder %s24, 3
    %p138 = por %p136, %p137
    %p140 = scmp.ne.s32.totalorder %s125, %s139
    %p141 = scmp.eq.s32.totalorder %s24, 0
    %p142 = por %p140, %p141
    %s144 = sadd.s32 %s143, 1
    %p147 = scmp.eq.s32.totalorder %s18, 3
    %p148 = scmp.ne.s32.totalorder %s143, %s145
    %p149 = scmp.eq.s32.totalorder %s18, 0
    %p150 = por %p148, %p149
    %p151 = scmp.ne.s32.totalorder %s143, %s145
    %p152 = scmp.eq.s32.totalorder %s23, 3
    %p153 = por %p151, %p152
    %p154 = scmp.ne.s32.totalorder %s145, %s146
    %p155 = scmp.eq.s32.totalorder %s23, 0
    %p156 = por %p154, %p155
    %p157 = scmp.ne.s32.totalorder %s145, %s146
    %p158 = scmp.eq.s32.totalorder %s24, 3
    %p159 = por %p157, %p158
    %p161 = scmp.ne.s32.totalorder %s146, %s160
    %p162 = scmp.eq.s32.totalorder %s24, 0
    %p163 = por %p161, %p162
    %s165 = sadd.s32 %s164, 1
    %p168 = scmp.eq.s32.totalorder %s18, 3
    %p169 = scmp.ne.s32.totalorder %s164, %s166
    %p170 = scmp.eq.s32.totalorder %s18, 0
    %p171 = por %p169, %p170
    %p172 = scmp.ne.s32.totalorder %s164, %s166
    %p173 = scmp.eq.s32.totalorder %s23, 3
    %p174 = por %p172, %p173
    %p175 = scmp.ne.s32.totalorder %s166, %s167
    %p176 = scmp.eq.s32.totalorder %s23, 0
    %p177 = por %p175, %p176
    %p178 = scmp.ne.s32.totalorder %s166, %s167
    %p179 = scmp.eq.s32.totalorder %s24, 3
    %p180 = por %p178, %p179
    %p182 = scmp.ne.s32.totalorder %s167, %s181
    %p183 = scmp.eq.s32.totalorder %s24, 0
    %p184 = por %p182, %p183
    %s186 = sadd.s32 %s185, 1
    %p189 = scmp.eq.s32.totalorder %s18, 3
    %p190 = scmp.ne.s32.totalorder %s185, %s187
    %p191 = scmp.eq.s32.totalorder %s18, 0
    %p192 = por %p190, %p191
    %p193 = scmp.ne.s32.totalorder %s185, %s187
    %p194 = scmp.eq.s32.totalorder %s23, 3
    %p195 = por %p193, %p194
    %p196 = scmp.ne.s32.totalorder %s187, %s188
    %p197 = scmp.eq.s32.totalorder %s23, 0
    %p198 = por %p196, %p197
    %p199 = scmp.ne.s32.totalorder %s187, %s188
    %p200 = scmp.eq.s32.totalorder %s24, 3
    %p201 = por %p199, %p200
    %p203 = scmp.ne.s32.totalorder %s188, %s202
    %p204 = scmp.eq.s32.totalorder %s24, 0
    %p205 = por %p203, %p204
    %s207 = sadd.s32 %s206, 1
    %p210 = scmp.eq.s32.totalorder %s18, 3
    %p211 = scmp.ne.s32.totalorder %s206, %s208
    %p212 = scmp.eq.s32.totalorder %s18, 0
    %p213 = por %p211, %p212
    %p214 = scmp.ne.s32.totalorder %s206, %s208
    %p215 = scmp.eq.s32.totalorder %s23, 3
    %p216 = por %p214, %p215
    %p217 = scmp.ne.s32.totalorder %s208, %s209
    %p218 = scmp.eq.s32.totalorder %s23, 0
    %p219 = por %p217, %p218
    %p220 = scmp.ne.s32.totalorder %s208, %s209
    %p221 = scmp.eq.s32.totalorder %s24, 3
    %p222 = por %p220, %p221
    %p224 = scmp.ne.s32.totalorder %s209, %s223
    %p225 = scmp.eq.s32.totalorder %s24, 0
    %p226 = por %p224, %p225
    %s228 = sadd.s32 %s227, 1
    %p231 = scmp.eq.s32.totalorder %s18, 3
    %p232 = scmp.ne.s32.totalorder %s227, %s229
    %p233 = scmp.eq.s32.totalorder %s18, 0
    %p234 = por %p232, %p233
    %p235 = scmp.ne.s32.totalorder %s227, %s229
    %p236 = scmp.eq.s32.totalorder %s23, 3
    %p237 = por %p235, %p236
    %p238 = scmp.ne.s32.totalorder %s229, %s230
    %p239 = scmp.eq.s32.totalorder %s23, 0
    %p240 = por %p238, %p239
    %p241 = scmp.ne.s32.totalorder %s229, %s230
    %p242 = scmp.eq.s32.totalorder %s24, 3
    %p243 = por %p241, %p242
    %p245 = scmp.ne.s32.totalorder %s230, %s244
    %p246 = scmp.eq.s32.totalorder %s24, 0
    %p247 = por %p245, %p246
    %s249 = sadd.s32 %s248, 1
    %p252 = scmp.eq.s32.totalorder %s18, 3
    %p253 = scmp.ne.s32.totalorder %s248, %s250
    %p254 = scmp.eq.s32.totalorder %s18, 0
    %p255 = por %p253, %p254
    %p256 = scmp.ne.s32.totalorder %s248, %s250
    %p257 = scmp.eq.s32.totalorder %s23, 3
    %p258 = por %p256, %p257
    %p259 = scmp.ne.s32.totalorder %s250, %s251
    %p260 = scmp.eq.s32.totalorder %s23, 0
    %p261 = por %p259, %p260
    %p262 = scmp.ne.s32.totalorder %s250, %s251
    %p263 = scmp.eq.s32.totalorder %s24, 3
    %p264 = por %p262, %p263
    %p266 = scmp.ne.s32.totalorder %s251, %s265
    %p267 = scmp.eq.s32.totalorder %s24, 0
    %p268 = por %p266, %p267
    %s270 = sadd.s32 %s269, 1
    %p273 = scmp.eq.s32.totalorder %s18, 3
    %p274 = scmp.ne.s32.totalorder %s269, %s271
    %p275 = scmp.eq.s32.totalorder %s18, 0
    %p276 = por %p274, %p275
    %p277 = scmp.ne.s32.totalorder %s269, %s271
    %p278 = scmp.eq.s32.totalorder %s23, 3
    %p279 = por %p277, %p278
    %p280 = scmp.ne.s32.totalorder %s271, %s272
    %p281 = scmp.eq.s32.totalorder %s23, 0
    %p282 = por %p280, %p281
    %p283 = scmp.ne.s32.totalorder %s271, %s272
    %p284 = scmp.eq.s32.totalorder %s24, 3
    %p285 = por %p283, %p284
    %p287 = scmp.ne.s32.totalorder %s272, %s286
    %p288 = scmp.eq.s32.totalorder %s24, 0
    %p289 = por %p287, %p288
    %s291 = sadd.s32 %s290, 1
    %p294 = scmp.eq.s32.totalorder %s18, 3
    %p295 = scmp.ne.s32.totalorder %s290, %s292
    %p296 = scmp.eq.s32.totalorder %s18, 0
    %p297 = por %p295, %p296
    %p298 = scmp.ne.s32.totalorder %s290, %s292
    %p299 = scmp.eq.s32.totalorder %s23, 3
    %p300 = por %p298, %p299
    %p301 = scmp.ne.s32.totalorder %s292, %s293
    %p302 = scmp.eq.s32.totalorder %s23, 0
    %p303 = por %p301, %p302
    %p304 = scmp.ne.s32.totalorder %s292, %s293
    %p305 = scmp.eq.s32.totalorder %s24, 3
    %p306 = por %p304, %p305
    %p308 = scmp.ne.s32.totalorder %s293, %s307
    %p309 = scmp.eq.s32.totalorder %s24, 0
    %p310 = por %p308, %p309
    %s311 = ssub.s32 %s25, %s37
    %s312 = ssub.s32 %s26, %s33
    %s313 = sor.u32 %s311, %s312
    %p314 = scmp.eq.s32.totalorder %s313, 0
    %s316 = sadd.s32 %s315, 1
    %s317 = scalar_select %p314, %s315, %s316
    %p320 = pneg %p314
    %p321 = scmp.eq.s32.totalorder %s18, 3
    %p322 = por %p320, %p321
    %p323 = scmp.ne.s32.totalorder %s315, %s318
    %p324 = scmp.eq.s32.totalorder %s18, 0
    %p325 = por %p323, %p324
    %p326 = scmp.ne.s32.totalorder %s315, %s318
    %p327 = scmp.eq.s32.totalorder %s23, 3
    %p328 = por %p326, %p327
    %p329 = scmp.ne.s32.totalorder %s318, %s319
    %p330 = scmp.eq.s32.totalorder %s23, 0
    %p331 = por %p329, %p330
    %p332 = scmp.ne.s32.totalorder %s318, %s319
    %p333 = scmp.eq.s32.totalorder %s24, 3
    %p334 = por %p332, %p333
    %p336 = scmp.ne.s32.totalorder %s319, %s335
    %p337 = scmp.eq.s32.totalorder %s24, 0
    %p338 = por %p336, %p337
    %p339 = scmp.le.s32.totalorder 1, %s18
    %p340 = scmp.lt.s32.totalorder %s18, 5
    %p341 = pnand %p339, %p340
    %p342 = pneg %p341
    // Predicated region
    $region9: #{bottleneck_forward.1} parent=5 // pred_check
      _
    $region10: #{bottleneck_forward.1} parent=5 // pred_check_branch
      %344 = sbr.rel (%p341) target = $region12
    $region11: #{bottleneck_forward.1} parent=5 // pred_region
      %s345 = ssub.s32 %s18, 1
      // Predicated region
      $region13: #{bottleneck_forward.1} parent=11 // pred_check
        %p346 = pneg %p135
      $region14: #{bottleneck_forward.1} parent=11 // pred_check_branch
        %348 = sbr.rel (%p346) target = $region16
      $region15: #{bottleneck_forward.1} parent=11 // pred_region
        _
      $region16: #{bottleneck_forward.1} parent=11 // pred_fallthru
        _
      // Predicated region
      $region17: #{bottleneck_forward.1} parent=11 // pred_check
        %p349 = pneg %p156
      $region18: #{bottleneck_forward.1} parent=11 // pred_check_branch
        %351 = sbr.rel (%p349) target = $region20
      $region19: #{bottleneck_forward.1} parent=11 // pred_region
        _
      $region20: #{bottleneck_forward.1} parent=11 // pred_fallthru
        _
      // Predicated region
      $region21: #{bottleneck_forward.1} parent=11 // pred_check
        %p352 = pneg %p177
      $region22: #{bottleneck_forward.1} parent=11 // pred_check_branch
        %354 = sbr.rel (%p352) target = $region24
      $region23: #{bottleneck_forward.1} parent=11 // pred_region
        _
      $region24: #{bottleneck_forward.1} parent=11 // pred_fallthru
        _
      // Predicated region
      $region25: #{bottleneck_forward.1} parent=11 // pred_check
        %p355 = pneg %p198
      $region26: #{bottleneck_forward.1} parent=11 // pred_check_branch
        %357 = sbr.rel (%p355) target = $region28
      $region27: #{bottleneck_forward.1} parent=11 // pred_region
        _
      $region28: #{bottleneck_forward.1} parent=11 // pred_fallthru
        _
      // Predicated region
      $region29: #{bottleneck_forward.1} parent=11 // pred_check
        %p358 = pneg %p219
      $region30: #{bottleneck_forward.1} parent=11 // pred_check_branch
        %360 = sbr.rel (%p358) target = $region32
      $region31: #{bottleneck_forward.1} parent=11 // pred_region
        _
      $region32: #{bottleneck_forward.1} parent=11 // pred_fallthru
        _
      // Predicated region
      $region33: #{bottleneck_forward.1} parent=11 // pred_check
        %p361 = pneg %p240
      $region34: #{bottleneck_forward.1} parent=11 // pred_check_branch
        %363 = sbr.rel (%p361) target = $region36
      $region35: #{bottleneck_forward.1} parent=11 // pred_region
        _
      $region36: #{bottleneck_forward.1} parent=11 // pred_fallthru
        _
      // Predicated region
      $region37: #{bottleneck_forward.1} parent=11 // pred_check
        %p364 = pneg %p261
      $region38: #{bottleneck_forward.1} parent=11 // pred_check_branch
        %366 = sbr.rel (%p364) target = $region40
      $region39: #{bottleneck_forward.1} parent=11 // pred_region
        _
      $region40: #{bottleneck_forward.1} parent=11 // pred_fallthru
        _
      // Predicated region
      $region41: #{bottleneck_forward.1} parent=11 // pred_check
        %p367 = pneg %p282
      $region42: #{bottleneck_forward.1} parent=11 // pred_check_branch
        %369 = sbr.rel (%p367) target = $region44
      $region43: #{bottleneck_forward.1} parent=11 // pred_region
        _
      $region44: #{bottleneck_forward.1} parent=11 // pred_fallthru
        _
      // Predicated region
      $region45: #{bottleneck_forward.1} parent=11 // pred_check
        %p370 = pneg %p303
      $region46: #{bottleneck_forward.1} parent=11 // pred_check_branch
        %372 = sbr.rel (%p370) target = $region48
      $region47: #{bottleneck_forward.1} parent=11 // pred_region
        _
      $region48: #{bottleneck_forward.1} parent=11 // pred_fallthru
        _
    $region12: #{bottleneck_forward.1} parent=5 // pred_fallthru
      _
    %p373 = scmp.lt.s32.totalorder %s18, 4
    // Predicated region
    $region49: #{bottleneck_forward.1} parent=5 // pred_check
      %p374 = pneg %p373
    $region50: #{bottleneck_forward.1} parent=5 // pred_check_branch
      %376 = sbr.rel (%p374) target = $region52
    $region51: #{bottleneck_forward.1} parent=5 // pred_region
      // Predicated region
      $region53: #{bottleneck_forward.1} parent=51 // pred_check
        %p377 = pneg %p52
      $region54: #{bottleneck_forward.1} parent=51 // pred_check_branch
        %379 = sbr.rel (%p377) target = $region56
      $region55: #{bottleneck_forward.1} parent=51 // pred_region
        %p380 = scmp.lt.s32.totalorder %s25, 1
        %s381 = scalar_select %p380, %s25, 1
        %p382 = scmp.lt.s32.totalorder %s26, 1
        %s383 = scalar_select %p382, %s26, 1
        %s384 = smul.addr %s383, 16
        %s385 = smul.addr %s381, 32
        %s386 = sadd.s32 %s384, %s385
        %s387 = smul.addr %s386, 8
        %s388 = scalar_lea.vmem %s0, %s387
      $region56: #{bottleneck_forward.1} parent=51 // pred_fallthru
        _
      // Predicated region
      $region57: #{bottleneck_forward.1} parent=51 // pred_check
        %p389 = pneg %p80
      $region58: #{bottleneck_forward.1} parent=51 // pred_check_branch
        %391 = sbr.rel (%p389) target = $region60
      $region59: #{bottleneck_forward.1} parent=51 // pred_region
        %p392 = scmp.lt.s32.totalorder %s25, 1
        %s393 = scalar_select %p392, %s25, 1
        %p394 = scmp.lt.s32.totalorder %s26, 1
        %s395 = scalar_select %p394, %s26, 1
        %s396 = smul.addr %s395, 2
        %s397 = smul.addr %s393, 4
        %s398 = sadd.s32 %s396, %s397
        %s399 = smul.addr %s398, 8
        %s400 = scalar_lea.vmem %s1, %s399
      $region60: #{bottleneck_forward.1} parent=51 // pred_fallthru
        _
      // Predicated region
      $region61: #{bottleneck_forward.1} parent=51 // pred_check
        %p401 = pneg %p108
      $region62: #{bottleneck_forward.1} parent=51 // pred_check_branch
        %403 = sbr.rel (%p401) target = $region64
      $region63: #{bottleneck_forward.1} parent=51 // pred_region
        %p404 = scmp.lt.s32.totalorder %s25, 1
        %s405 = scalar_select %p404, %s25, 1
        %p406 = scmp.lt.s32.totalorder %s26, 1
        %s407 = scalar_select %p406, %s26, 1
        %s408 = smul.addr %s407, 2
        %s409 = smul.addr %s405, 4
        %s410 = sadd.s32 %s408, %s409
        %s411 = smul.addr %s410, 8
        %s412 = scalar_lea.vmem %s2, %s411
      $region64: #{bottleneck_forward.1} parent=51 // pred_fallthru
        _
    $region52: #{bottleneck_forward.1} parent=5 // pred_fallthru
      _
    %p413 = scmp.le.s32.totalorder 1, %s18
    %p414 = scmp.lt.s32.totalorder %s18, 5
    %p415 = pnand %p413, %p414
    %p416 = pneg %p415
    // Predicated region
    $region65: #{bottleneck_forward.1} parent=5 // pred_check
      _
    $region66: #{bottleneck_forward.1} parent=5 // pred_check_branch
      %418 = sbr.rel (%p415) target = $region68
    $region67: #{bottleneck_forward.1} parent=5 // pred_region
      %s419 = ssub.s32 %s18, 1
      %p420 = scmp.lt.s32.totalorder %s27, 1
      %s421 = scalar_select %p420, %s27, 1
      %p422 = scmp.lt.s32.totalorder %s28, 1
      %s423 = scalar_select %p422, %s28, 1
      %s424 = smul.addr %s423, 16
      %s425 = smul.addr %s421, 32
      %s426 = sadd.s32 %s424, %s425
      %s427 = smul.addr %s426, 8
      %s428 = scalar_lea.vmem %s0, %s427
      %p429 = pneg %p58
      %p430 = pneg %p55
      %p431 = scmp.lt.s32.totalorder %s27, 1
      %s432 = scalar_select %p431, %s27, 1
      %p433 = scmp.lt.s32.totalorder %s28, 1
      %s434 = scalar_select %p433, %s28, 1
      %s435 = smul.addr %s434, 2
      %s436 = smul.addr %s432, 4
      %s437 = sadd.s32 %s435, %s436
      %s438 = smul.addr %s437, 8
      %s439 = scalar_lea.vmem %s1, %s438
      %p440 = pneg %p86
      %p441 = pneg %p83
      %p442 = scmp.lt.s32.totalorder %s27, 1
      %s443 = scalar_select %p442, %s27, 1
      %p444 = scmp.lt.s32.totalorder %s28, 1
      %s445 = scalar_select %p444, %s28, 1
      %s446 = smul.addr %s445, 2
      %s447 = smul.addr %s443, 4
      %s448 = sadd.s32 %s446, %s447
      %s449 = smul.addr %s448, 8
      %s450 = scalar_lea.vmem %s2, %s449
      %p451 = pneg %p114
      %p452 = pneg %p111
      %p453 = pneg %p135
      %p454 = pneg %p132
      %p455 = pneg %p156
      %p456 = pneg %p153
      %p457 = pneg %p177
      %p458 = pneg %p174
      %p459 = pneg %p198
      %p460 = pneg %p195
      %p461 = pneg %p219
      %p462 = pneg %p216
      %p463 = pneg %p240
      %p464 = pneg %p237
      %p465 = pneg %p261
      %p466 = pneg %p258
      %p467 = pneg %p282
      %p468 = pneg %p279
      %p469 = pneg %p303
      %p470 = pneg %p300
      %p471 = pneg %p331
      %p472 = pneg %p328
      %p473 = scmp.lt.s32.totalorder %s27, 1
      %s474 = scalar_select %p473, %s27, 1
      %p475 = scmp.lt.s32.totalorder %s28, 1
      %s476 = scalar_select %p475, %s28, 1
      %s477 = smul.addr %s476, 16
      %s478 = smul.addr %s474, 32
      %s479 = sadd.s32 %s477, %s478
      %s480 = smul.addr %s479, 4
      %s481 = scalar_lea.vmem %s12, %s480
      %p482 = scmp.lt.s32.totalorder %s27, 1
      %s483 = scalar_select %p482, %s27, 1
      %p484 = scmp.lt.s32.totalorder %s28, 1
      %s485 = scalar_select %p484, %s28, 1
      %s486 = smul.addr %s485, 16
      %s487 = smul.addr %s483, 32
      %s488 = sadd.s32 %s486, %s487
      %s489 = smul.addr %s488, 8
      %s490 = scalar_lea.vmem %s0, %s489
      %p491 = scmp.lt.s32.totalorder %s27, 1
      %s492 = scalar_select %p491, %s27, 1
      %p493 = scmp.lt.s32.totalorder %s28, 1
      %s494 = scalar_select %p493, %s28, 1
      %s495 = smul.addr %s494, 2
      %s496 = smul.addr %s492, 4
      %s497 = sadd.s32 %s495, %s496
      %s498 = smul.addr %s497, 8
      %s499 = scalar_lea.vmem %s1, %s498
      %p500 = scmp.lt.s32.totalorder %s27, 1
      %s501 = scalar_select %p500, %s27, 1
      %p502 = scmp.lt.s32.totalorder %s28, 1
      %s503 = scalar_select %p502, %s28, 1
      %s504 = smul.addr %s503, 2
      %s505 = smul.addr %s501, 4
      %s506 = sadd.s32 %s504, %s505
      %s507 = smul.addr %s506, 8
      %s508 = scalar_lea.vmem %s2, %s507
      %p509 = scmp.lt.s32.totalorder %s27, 1
      %s510 = scalar_select %p509, %s27, 1
      %p511 = scmp.lt.s32.totalorder %s28, 1
      %s512 = scalar_select %p511, %s28, 1
      %s513 = smul.addr %s512, 16
      %s514 = smul.addr %s510, 32
      %s515 = sadd.s32 %s513, %s514
      %s516 = smul.addr %s515, 4
      %s517 = scalar_lea.vmem %s12, %s516
      %v519 = vld [vmem:[%s490] sm:$0xff]
      %v520 = vld [vmem:[%s490 + $0x8] sm:$0xff]
      %v521 = vld [vmem:[%s490 + $0x10] sm:$0xff]
      %v522 = vld [vmem:[%s490 + $0x18] sm:$0xff]
      %v523 = vld [vmem:[%s490 + $0x20] sm:$0xff]
      %v524 = vld [vmem:[%s490 + $0x28] sm:$0xff]
      %v525 = vld [vmem:[%s490 + $0x30] sm:$0xff]
      %v526 = vld [vmem:[%s490 + $0x38] sm:$0xff]
      %v527 = vld [vmem:[%s490 + $0x40] sm:$0xff]
      %v528 = vld [vmem:[%s490 + $0x48] sm:$0xff]
      %v529 = vld [vmem:[%s490 + $0x50] sm:$0xff]
      %v530 = vld [vmem:[%s490 + $0x58] sm:$0xff]
      %v531 = vld [vmem:[%s490 + $0x60] sm:$0xff]
      %v532 = vld [vmem:[%s490 + $0x68] sm:$0xff]
      %v533 = vld [vmem:[%s490 + $0x70] sm:$0xff]
      %v534 = vld [vmem:[%s490 + $0x78] sm:$0xff]
      %v535 = vld [vmem:[%s499] sm:$0xff]
      %v536 = vld [vmem:[%s499 + $0x8] sm:$0xff]
      %v537 = vpack.c.bf16 %v536, %v535
      %v538 = vld [vmem:[%s508] sm:$0xff]
      %v539 = vld [vmem:[%s508 + $0x8] sm:$0xff]
      %v540 = vpack.c.bf16 %v539, %v538
      %v541 = vpack.c.bf16 %v520, %v519
      %v542 = vpack.c.bf16 %v522, %v521
      %v543 = vpack.c.bf16 %v524, %v523
      %v544 = vpack.c.bf16 %v526, %v525
      %v545 = vpack.c.bf16 %v528, %v527
      %v546 = vpack.c.bf16 %v530, %v529
      %v547 = vpack.c.bf16 %v532, %v531
      %v548 = vpack.c.bf16 %v534, %v533
      %v549 = vld [vmem:[%s3] sm:$0xf]
      %v550 = vld [vmem:[%s3 + $0x4] sm:$0xf]
      %v551 = vld [vmem:[%s3 + $0x8] sm:$0xf]
      %v552 = vld [vmem:[%s3 + $0xc] sm:$0xf]
      %v553 = vld [vmem:[%s3 + $0x10] sm:$0xf]
      %v554 = vld [vmem:[%s3 + $0x14] sm:$0xf]
      %v555 = vld [vmem:[%s3 + $0x18] sm:$0xf]
      %v556 = vld [vmem:[%s3 + $0x1c] sm:$0xf]
      %v557 = vld [vmem:[%s3 + $0x20] sm:$0xf]
      %v558 = vld [vmem:[%s3 + $0x24] sm:$0xf]
      %v559 = vld [vmem:[%s3 + $0x28] sm:$0xf]
      %v560 = vld [vmem:[%s3 + $0x2c] sm:$0xf]
      %v561 = vld [vmem:[%s3 + $0x30] sm:$0xf]
      %v562 = vld [vmem:[%s3 + $0x34] sm:$0xf]
      %v563 = vld [vmem:[%s3 + $0x38] sm:$0xf]
      %v564 = vld [vmem:[%s3 + $0x3c] sm:$0xf]
      %v581 = vunpack.c.l.b16 %v549
      %v582 = vunpack.c.l.b16 %v550
      %v583 = vunpack.c.l.b16 %v551
      %v584 = vunpack.c.l.b16 %v552
      %v585 = vunpack.c.l.b16 %v553
      %v586 = vunpack.c.l.b16 %v554
      %v587 = vunpack.c.l.b16 %v555
      %v588 = vunpack.c.l.b16 %v556
      %v589 = vunpack.c.l.b16 %v557
      %v590 = vunpack.c.l.b16 %v558
      %v591 = vunpack.c.l.b16 %v559
      %v592 = vunpack.c.l.b16 %v560
      %v593 = vunpack.c.l.b16 %v561
      %v594 = vunpack.c.l.b16 %v562
      %v595 = vunpack.c.l.b16 %v563
      %v596 = vunpack.c.l.b16 %v564
      %v597 = vpack.c.b16 %v582, %v581
      %v598 = vpack.c.b16 %v584, %v583
      %v599 = vpack.c.b16 %v586, %v585
      %v600 = vpack.c.b16 %v588, %v587
      %v601 = vpack.c.b16 %v590, %v589
      %v602 = vpack.c.b16 %v592, %v591
      %v603 = vpack.c.b16 %v594, %v593
      %v604 = vpack.c.b16 %v596, %v595
      %613 = vmatprep.subr.bf16.mxu0 0
      %614 = vmatpush1.bf16.msra.mxu0 %v604
      %615 = vmatprep.subr.bf16.mxu0 0
      %616 = vmatpush1.bf16.msra.mxu0 %v603
      %617 = vmatprep.subr.bf16.mxu0 0
      %618 = vmatpush1.bf16.msra.mxu0 %v602
      %619 = vmatprep.subr.bf16.mxu0 0
      %620 = vmatpush1.bf16.msra.mxu0 %v601
      %621 = vmatprep.subr.bf16.mxu0 0
      %622 = vmatpush1.bf16.msra.mxu0 %v600
      %623 = vmatprep.subr.bf16.mxu0 0
      %624 = vmatpush1.bf16.msra.mxu0 %v599
      %625 = vmatprep.subr.bf16.mxu0 0
      %626 = vmatpush1.bf16.msra.mxu0 %v598
      %627 = vmatprep.subr.bf16.mxu0 0
      %628 = vmatpush1.bf16.msra.mxu0 %v597
      %629 = vmatprep.subr.bf16.mxu0 0
      %630 = vmatpush2.bf16.msra.mxu0 0
      %631 = vmatprep.subr.bf16.mxu0 0
      %632 = vmatpush2.bf16.msra.mxu0 0
      %633 = vmatprep.subr.bf16.mxu0 0
      %634 = vmatpush2.bf16.msra.mxu0 0
      %635 = vmatprep.subr.bf16.mxu0 0
      %636 = vmatpush2.bf16.msra.mxu0 0
      %637 = vmatprep.subr.bf16.mxu0 0
      %638 = vmatpush2.bf16.msra.mxu0 0
      %639 = vmatprep.subr.bf16.mxu0 0
      %640 = vmatpush2.bf16.msra.mxu0 0
      %641 = vmatprep.subr.bf16.mxu0 0
      %642 = vmatpush2.bf16.msra.mxu0 0
      %643 = vmatprep.subr.bf16.mxu0 0
      %644 = vmatpush2.bf16.msra.mxu0 0
      %645 = vmatprep.mubr.bf16.mxu0 0
      %646 = vmatmul.mubr.bf16.gmra.mxu0 %v537
      %v647 = vpop.f32.mrf.mxu0
      %v648 = vadd.f32 0.0, %v647
      %v649 = vpop.f32.mrf.mxu0
      %v650 = vpop.f32.mrf.mxu0
      %v651 = vadd.f32 0.0, %v650
      %v652 = vpop.f32.mrf.mxu0
      %653 = vmatprep.mubr.bf16.mxu0 0
      %654 = vmatmul.mubr.bf16.gmra.mxu0 %v541
      %v655 = vpop.f32.mrf.mxu0
      %v656 = vadd.f32 0.0, %v655
      %v657 = vpop.f32.mrf.mxu0
      %v658 = vpop.f32.mrf.mxu0
      %v659 = vadd.f32 0.0, %v658
      %v660 = vpop.f32.mrf.mxu0
      %661 = vmatprep.mubr.bf16.mxu0 0
      %662 = vmatmul.mubr.bf16.gmra.mxu0 %v542
      %v663 = vpop.f32.mrf.mxu0
      %v664 = vadd.f32 0.0, %v663
      %v665 = vpop.f32.mrf.mxu0
      %v666 = vpop.f32.mrf.mxu0
      %v667 = vadd.f32 0.0, %v666
      %v668 = vpop.f32.mrf.mxu0
      %669 = vmatprep.mubr.bf16.mxu0 0
      %670 = vmatmul.mubr.bf16.gmra.mxu0 %v543
      %v671 = vpop.f32.mrf.mxu0
      %v672 = vadd.f32 0.0, %v671
      %v673 = vpop.f32.mrf.mxu0
      %v674 = vpop.f32.mrf.mxu0
      %v675 = vadd.f32 0.0, %v674
      %v676 = vpop.f32.mrf.mxu0
      %677 = vmatprep.mubr.bf16.mxu0 0
      %678 = vmatmul.mubr.bf16.gmra.mxu0 %v544
      %v679 = vpop.f32.mrf.mxu0
      %v680 = vadd.f32 0.0, %v679
      %v681 = vpop.f32.mrf.mxu0
      %v682 = vpop.f32.mrf.mxu0
      %v683 = vadd.f32 0.0, %v682
      %v684 = vpop.f32.mrf.mxu0
      %685 = vmatprep.mubr.bf16.mxu0 0
      %686 = vmatmul.mubr.bf16.gmra.mxu0 %v545
      %v687 = vpop.f32.mrf.mxu0
      %v688 = vadd.f32 0.0, %v687
      %v689 = vpop.f32.mrf.mxu0
      %v690 = vpop.f32.mrf.mxu0
      %v691 = vadd.f32 0.0, %v690
      %v692 = vpop.f32.mrf.mxu0
      %693 = vmatprep.mubr.bf16.mxu0 0
      %694 = vmatmul.mubr.bf16.gmra.mxu0 %v546
      %v695 = vpop.f32.mrf.mxu0
      %v696 = vadd.f32 0.0, %v695
      %v697 = vpop.f32.mrf.mxu0
      %v698 = vpop.f32.mrf.mxu0
      %v699 = vadd.f32 0.0, %v698
      %v700 = vpop.f32.mrf.mxu0
      %701 = vmatprep.mubr.bf16.mxu0 0
      %702 = vmatmul.mubr.bf16.gmra.mxu0 %v547
      %v703 = vpop.f32.mrf.mxu0
      %v704 = vadd.f32 0.0, %v703
      %v705 = vpop.f32.mrf.mxu0
      %v706 = vpop.f32.mrf.mxu0
      %v707 = vadd.f32 0.0, %v706
      %v708 = vpop.f32.mrf.mxu0
      %709 = vmatprep.mubr.bf16.mxu0 0
      %710 = vmatmul.mubr.bf16.gmra.mxu0 %v548
      %v711 = vpop.f32.mrf.mxu0
      %v712 = vadd.f32 0.0, %v711
      %v713 = vpop.f32.mrf.mxu0
      %v714 = vpop.f32.mrf.mxu0
      %v715 = vadd.f32 0.0, %v714
      %v716 = vpop.f32.mrf.mxu0
      %717 = vmatprep.mubr.bf16.mxu0 0
      %718 = vmatmul.mubr.bf16.gmra.mxu0 %v540
      %v719 = vpop.f32.mrf.mxu0
      %v720 = vadd.f32 0.0, %v719
      %v721 = vpop.f32.mrf.mxu0
      %v722 = vpop.f32.mrf.mxu0
      %v723 = vadd.f32 0.0, %v722
      %v724 = vpop.f32.mrf.mxu0
      %725 = vdwg.mxu0
      %v726 = vld [vmem:[%s6] sm:$0x1]
      %v728 = vlaneseq
      %v729 = vshrl.u32 %v728, 7
      %v730 = vsub.s32 0, %v729
      %v731 = vrot.slane %v726, %v730
      %v733 = vmul.f32 %v648, %v731
      %v734 = vmul.f32 %v651, %v731
      %v735 = vmul.f32 %v656, %v731
      %v736 = vmul.f32 %v659, %v731
      %v737 = vmul.f32 %v664, %v731
      %v738 = vmul.f32 %v667, %v731
      %v739 = vmul.f32 %v672, %v731
      %v740 = vmul.f32 %v675, %v731
      %v741 = vmul.f32 %v680, %v731
      %v742 = vmul.f32 %v683, %v731
      %v743 = vmul.f32 %v688, %v731
      %v744 = vmul.f32 %v691, %v731
      %v745 = vmul.f32 %v696, %v731
      %v746 = vmul.f32 %v699, %v731
      %v747 = vmul.f32 %v704, %v731
      %v748 = vmul.f32 %v707, %v731
      %v749 = vmul.f32 %v712, %v731
      %v750 = vmul.f32 %v715, %v731
      %v751 = vmul.f32 %v720, %v731
      %v752 = vmul.f32 %v723, %v731
      %v753 = vld [vmem:[%s7] sm:$0x1]
      %v755 = vlaneseq
      %v756 = vshrl.u32 %v755, 7
      %v757 = vsub.s32 0, %v756
      %v758 = vrot.slane %v753, %v757
      %v760 = vadd.f32 %v733, %v758
      %v761 = vadd.f32 %v734, %v758
      %v762 = vadd.f32 %v735, %v758
      %v763 = vadd.f32 %v736, %v758
      %v764 = vadd.f32 %v737, %v758
      %v765 = vadd.f32 %v738, %v758
      %v766 = vadd.f32 %v739, %v758
      %v767 = vadd.f32 %v740, %v758
      %v768 = vadd.f32 %v741, %v758
      %v769 = vadd.f32 %v742, %v758
      %v770 = vadd.f32 %v743, %v758
      %v771 = vadd.f32 %v744, %v758
      %v772 = vadd.f32 %v745, %v758
      %v773 = vadd.f32 %v746, %v758
      %v774 = vadd.f32 %v747, %v758
      %v775 = vadd.f32 %v748, %v758
      %v776 = vadd.f32 %v749, %v758
      %v777 = vadd.f32 %v750, %v758
      %v778 = vadd.f32 %v751, %v758
      %v779 = vadd.f32 %v752, %v758
      %v780 = vmax.f32 %v760, 0.0
      %v781 = vmax.f32 %v761, 0.0
      %v782 = vmax.f32 %v762, 0.0
      %v783 = vmax.f32 %v763, 0.0
      %v784 = vmax.f32 %v764, 0.0
      %v785 = vmax.f32 %v765, 0.0
      %v786 = vmax.f32 %v766, 0.0
      %v787 = vmax.f32 %v767, 0.0
      %v788 = vmax.f32 %v768, 0.0
      %v789 = vmax.f32 %v769, 0.0
      %v790 = vmax.f32 %v770, 0.0
      %v791 = vmax.f32 %v771, 0.0
      %v792 = vmax.f32 %v772, 0.0
      %v793 = vmax.f32 %v773, 0.0
      %v794 = vmax.f32 %v774, 0.0
      %v795 = vmax.f32 %v775, 0.0
      %v796 = vmax.f32 %v776, 0.0
      %v797 = vmax.f32 %v777, 0.0
      %v798 = vmax.f32 %v778, 0.0
      %v799 = vmax.f32 %v779, 0.0
      %v800 = vpack.c.bf16 %v781, %v780
      %v801 = vpack.c.bf16 %v783, %v782
      %v802 = vpack.c.bf16 %v785, %v784
      %v803 = vpack.c.bf16 %v787, %v786
      %v804 = vpack.c.bf16 %v789, %v788
      %v805 = vpack.c.bf16 %v791, %v790
      %v806 = vpack.c.bf16 %v793, %v792
      %v807 = vpack.c.bf16 %v795, %v794
      %v808 = vpack.c.bf16 %v797, %v796
      %v809 = vpack.c.bf16 %v799, %v798
      %vm810 = vcmask 1040384
      %vm811 = vsmask.f32 256
      %vm812 = vmand %vm810, %vm811
      %v813 = vld [vmem:[#allocation2] sm:$0x1]
      %v814 = vsel %vm812, 0, %v813
      %815 = vst [vmem:[#allocation2] sm:$0x1] %v814
      %v816 = vld [vmem:[#allocation2 + $0xc] sm:$0x1]
      %v817 = vsel %vm812, 0, %v816
      %818 = vst [vmem:[#allocation2 + $0xc] sm:$0x1] %v817
      %v819 = vld [vmem:[#allocation2 + $0x18] sm:$0x1]
      %v820 = vsel %vm812, 0, %v819
      %821 = vst [vmem:[#allocation2 + $0x18] sm:$0x1] %v820
      %v822 = vld [vmem:[#allocation2 + $0x24] sm:$0x1]
      %v823 = vsel %vm812, 0, %v822
      %824 = vst [vmem:[#allocation2 + $0x24] sm:$0x1] %v823
      %v825 = vld [vmem:[#allocation2 + $0x30] sm:$0x1]
      %v826 = vsel %vm812, 0, %v825
      %827 = vst [vmem:[#allocation2 + $0x30] sm:$0x1] %v826
      %v828 = vld [vmem:[#allocation2 + $0x3c] sm:$0x1]
      %v829 = vsel %vm812, 0, %v828
      %830 = vst [vmem:[#allocation2 + $0x3c] sm:$0x1] %v829
      %v831 = vld [vmem:[#allocation2 + $0x48] sm:$0x1]
      %v832 = vsel %vm812, 0, %v831
      %833 = vst [vmem:[#allocation2 + $0x48] sm:$0x1] %v832
      %v834 = vld [vmem:[#allocation2 + $0x54] sm:$0x1]
      %v835 = vsel %vm812, 0, %v834
      %836 = vst [vmem:[#allocation2 + $0x54] sm:$0x1] %v835
      %v837 = vld [vmem:[#allocation2 + $0x60] sm:$0x1]
      %v838 = vsel %vm812, 0, %v837
      %839 = vst [vmem:[#allocation2 + $0x60] sm:$0x1] %v838
      %v840 = vld [vmem:[#allocation2 + $0x6c] sm:$0x1]
      %v841 = vsel %vm812, 0, %v840
      %842 = vst [vmem:[#allocation2 + $0x6c] sm:$0x1] %v841
      %vm843 = vsmask.f32 7938
      %vm844 = vmand %vm810, %vm843
      %v845 = vld [vmem:[#allocation2 + $0x8] sm:$0x1]
      %v846 = vsel %vm844, 0, %v845
      %847 = vst [vmem:[#allocation2 + $0x8] sm:$0x1] %v846
      %v848 = vld [vmem:[#allocation2 + $0x14] sm:$0x1]
      %v849 = vsel %vm844, 0, %v848
      %850 = vst [vmem:[#allocation2 + $0x14] sm:$0x1] %v849
      %v851 = vld [vmem:[#allocation2 + $0x20] sm:$0x1]
      %v852 = vsel %vm844, 0, %v851
      %853 = vst [vmem:[#allocation2 + $0x20] sm:$0x1] %v852
      %v854 = vld [vmem:[#allocation2 + $0x2c] sm:$0x1]
      %v855 = vsel %vm844, 0, %v854
      %856 = vst [vmem:[#allocation2 + $0x2c] sm:$0x1] %v855
      %v857 = vld [vmem:[#allocation2 + $0x38] sm:$0x1]
      %v858 = vsel %vm844, 0, %v857
      %859 = vst [vmem:[#allocation2 + $0x38] sm:$0x1] %v858
      %v860 = vld [vmem:[#allocation2 + $0x44] sm:$0x1]
      %v861 = vsel %vm844, 0, %v860
      %862 = vst [vmem:[#allocation2 + $0x44] sm:$0x1] %v861
      %v863 = vld [vmem:[#allocation2 + $0x50] sm:$0x1]
      %v864 = vsel %vm844, 0, %v863
      %865 = vst [vmem:[#allocation2 + $0x50] sm:$0x1] %v864
      %v866 = vld [vmem:[#allocation2 + $0x5c] sm:$0x1]
      %v867 = vsel %vm844, 0, %v866
      %868 = vst [vmem:[#allocation2 + $0x5c] sm:$0x1] %v867
      %v869 = vld [vmem:[#allocation2 + $0x68] sm:$0x1]
      %v870 = vsel %vm844, 0, %v869
      %871 = vst [vmem:[#allocation2 + $0x68] sm:$0x1] %v870
      %v872 = vld [vmem:[#allocation2 + $0x74] sm:$0x1]
      %v873 = vsel %vm844, 0, %v872
      %874 = vst [vmem:[#allocation2 + $0x74] sm:$0x1] %v873
      %v883 = vunpack.c.l.b16 %v801
      %v884 = vunpack.c.h.b16 %v801
      %v885 = vunpack.c.l.b16 %v802
      %v886 = vunpack.c.h.b16 %v802
      %v887 = vunpack.c.l.b16 %v803
      %v888 = vunpack.c.h.b16 %v803
      %v889 = vunpack.c.l.b16 %v804
      %v890 = vunpack.c.h.b16 %v804
      %v891 = vunpack.c.l.b16 %v805
      %v892 = vunpack.c.h.b16 %v805
      %v893 = vunpack.c.l.b16 %v806
      %v894 = vunpack.c.h.b16 %v806
      %v895 = vunpack.c.l.b16 %v807
      %v896 = vunpack.c.h.b16 %v807
      %v897 = vunpack.c.l.b16 %v808
      %v898 = vunpack.c.h.b16 %v808
      %v899 = vpack.c.b16 %v883, %v883
      %v900 = vpack.c.b16 %v884, %v884
      %v901 = vpack.c.b16 %v885, %v885
      %v902 = vpack.c.b16 %v886, %v886
      %v903 = vpack.c.b16 %v887, %v887
      %v904 = vpack.c.b16 %v888, %v888
      %v905 = vpack.c.b16 %v889, %v889
      %v906 = vpack.c.b16 %v890, %v890
      %v907 = vpack.c.b16 %v891, %v891
      %v908 = vpack.c.b16 %v892, %v892
      %v909 = vpack.c.b16 %v893, %v893
      %v910 = vpack.c.b16 %v894, %v894
      %v911 = vpack.c.b16 %v895, %v895
      %v912 = vpack.c.b16 %v896, %v896
      %v913 = vpack.c.b16 %v897, %v897
      %v914 = vpack.c.b16 %v898, %v898
      %vm915 = vsmask.f32 4368
      %vm916 = vmor %vm811, %vm915
      %v918 = vshrl.u32 %v899, 16
      %v920 = vrot.slane %v918, 7
      %v921 = vshll.u32 %v899, 16
      %v923 = vor.u32 %v920, %v921
      %v924 = vrot.slane %v920, 4
      %v926 = vshrl.u32 %v900, 16
      %v928 = vrot.slane %v926, 7
      %v929 = vshll.u32 %v900, 16
      %v931 = vor.u32 %v928, %v929
      %v932 = vsel %vm916, %v924, %v931
      %v933 = vrot.slane %v928, 4
      %v935 = vshrl.u32 %v901, 16
      %v937 = vrot.slane %v935, 7
      %v938 = vshll.u32 %v901, 16
      %v940 = vor.u32 %v937, %v938
      %v941 = vrot.slane %v937, 4
      %v943 = vshrl.u32 %v902, 16
      %v945 = vrot.slane %v943, 7
      %v946 = vshll.u32 %v902, 16
      %v948 = vor.u32 %v945, %v946
      %v949 = vsel %vm916, %v941, %v948
      %v950 = vrot.slane %v945, 4
      %v952 = vshrl.u32 %v903, 16
      %v954 = vrot.slane %v952, 7
      %v955 = vshll.u32 %v903, 16
      %v957 = vor.u32 %v954, %v955
      %v958 = vrot.slane %v954, 4
      %v960 = vshrl.u32 %v904, 16
      %v962 = vrot.slane %v960, 7
      %v963 = vshll.u32 %v904, 16
      %v965 = vor.u32 %v962, %v963
      %v966 = vsel %vm916, %v958, %v965
      %v967 = vrot.slane %v962, 4
      %v969 = vshrl.u32 %v905, 16
      %v971 = vrot.slane %v969, 7
      %v972 = vshll.u32 %v905, 16
      %v974 = vor.u32 %v971, %v972
      %v975 = vrot.slane %v971, 4
      %v977 = vshrl.u32 %v906, 16
      %v979 = vrot.slane %v977, 7
      %v980 = vshll.u32 %v906, 16
      %v982 = vor.u32 %v979, %v980
      %v983 = vsel %vm916, %v975, %v982
      %v984 = vrot.slane %v979, 4
      %v986 = vshrl.u32 %v907, 16
      %v988 = vrot.slane %v986, 7
      %v989 = vshll.u32 %v907, 16
      %v991 = vor.u32 %v988, %v989
      %v992 = vrot.slane %v988, 4
      %v994 = vshrl.u32 %v908, 16
      %v996 = vrot.slane %v994, 7
      %v997 = vshll.u32 %v908, 16
      %v999 = vor.u32 %v996, %v997
      %v1000 = vsel %vm916, %v992, %v999
      %v1001 = vrot.slane %v996, 4
      %v1003 = vshrl.u32 %v909, 16
      %v1005 = vrot.slane %v1003, 7
      %v1006 = vshll.u32 %v909, 16
      %v1008 = vor.u32 %v1005, %v1006
      %v1009 = vrot.slane %v1005, 4
      %v1011 = vshrl.u32 %v910, 16
      %v1013 = vrot.slane %v1011, 7
      %v1014 = vshll.u32 %v910, 16
      %v1016 = vor.u32 %v1013, %v1014
      %v1017 = vsel %vm916, %v1009, %v1016
      %v1018 = vrot.slane %v1013, 4
      %v1020 = vshrl.u32 %v911, 16
      %v1022 = vrot.slane %v1020, 7
      %v1023 = vshll.u32 %v911, 16
      %v1025 = vor.u32 %v1022, %v1023
      %v1026 = vrot.slane %v1022, 4
      %v1028 = vshrl.u32 %v912, 16
      %v1030 = vrot.slane %v1028, 7
      %v1031 = vshll.u32 %v912, 16
      %v1033 = vor.u32 %v1030, %v1031
      %v1034 = vsel %vm916, %v1026, %v1033
      %v1035 = vrot.slane %v1030, 4
      %v1037 = vshrl.u32 %v913, 16
      %v1039 = vrot.slane %v1037, 7
      %v1040 = vshll.u32 %v913, 16
      %v1042 = vor.u32 %v1039, %v1040
      %v1043 = vrot.slane %v1039, 4
      %v1045 = vshrl.u32 %v914, 16
      %v1047 = vrot.slane %v1045, 7
      %v1048 = vshll.u32 %v914, 16
      %v1050 = vor.u32 %v1047, %v1048
      %v1051 = vsel %vm916, %v1043, %v1050
      %v1052 = vrot.slane %v1047, 4
      %s1077 = scalar_lea.vmem [#allocation2], 12
      %vm1078 = vcmask 1043456
      %vm1079 = vmand %vm1078, %vm843
      %v1080 = vld [vmem:[%s1077] sm:$0xf]
      %v1081 = vsel %vm1079, %v923, %v1080
      %1082 = vst [vmem:[%s1077] sm:$0xf] %v1081
      %1083 = vst [vmem:[%s1077 + $0x4] sm:$0xf] %v932
      %v1084 = vld [vmem:[%s1077 + $0x8] sm:$0x1]
      %v1085 = vsel %vm812, %v933, %v1084
      %1086 = vst [vmem:[%s1077 + $0x8] sm:$0x1] %v1085
      %v1087 = vld [vmem:[%s1077 + $0xc] sm:$0xf]
      %v1088 = vsel %vm1079, %v940, %v1087
      %1089 = vst [vmem:[%s1077 + $0xc] sm:$0xf] %v1088
      %1090 = vst [vmem:[%s1077 + $0x10] sm:$0xf] %v949
      %v1091 = vld [vmem:[%s1077 + $0x14] sm:$0x1]
      %v1092 = vsel %vm812, %v950, %v1091
      %1093 = vst [vmem:[%s1077 + $0x14] sm:$0x1] %v1092
      %v1094 = vld [vmem:[%s1077 + $0x18] sm:$0xf]
      %v1095 = vsel %vm1079, %v957, %v1094
      %1096 = vst [vmem:[%s1077 + $0x18] sm:$0xf] %v1095
      %1097 = vst [vmem:[%s1077 + $0x1c] sm:$0xf] %v966
      %v1098 = vld [vmem:[%s1077 + $0x20] sm:$0x1]
      %v1099 = vsel %vm812, %v967, %v1098
      %1100 = vst [vmem:[%s1077 + $0x20] sm:$0x1] %v1099
      %v1101 = vld [vmem:[%s1077 + $0x24] sm:$0xf]
      %v1102 = vsel %vm1079, %v974, %v1101
      %1103 = vst [vmem:[%s1077 + $0x24] sm:$0xf] %v1102
      %1104 = vst [vmem:[%s1077 + $0x28] sm:$0xf] %v983
      %v1105 = vld [vmem:[%s1077 + $0x2c] sm:$0x1]
      %v1106 = vsel %vm812, %v984, %v1105
      %1107 = vst [vmem:[%s1077 + $0x2c] sm:$0x1] %v1106
      %v1108 = vld [vmem:[%s1077 + $0x30] sm:$0xf]
      %v1109 = vsel %vm1079, %v991, %v1108
      %1110 = vst [vmem:[%s1077 + $0x30] sm:$0xf] %v1109
      %1111 = vst [vmem:[%s1077 + $0x34] sm:$0xf] %v1000
      %v1112 = vld [vmem:[%s1077 + $0x38] sm:$0x1]
      %v1113 = vsel %vm812, %v1001, %v1112
      %1114 = vst [vmem:[%s1077 + $0x38] sm:$0x1] %v1113
      %v1115 = vld [vmem:[%s1077 + $0x3c] sm:$0xf]
      %v1116 = vsel %vm1079, %v1008, %v1115
      %1117 = vst [vmem:[%s1077 + $0x3c] sm:$0xf] %v1116
      %1118 = vst [vmem:[%s1077 + $0x40] sm:$0xf] %v1017
      %v1119 = vld [vmem:[%s1077 + $0x44] sm:$0x1]
      %v1120 = vsel %vm812, %v1018, %v1119
      %1121 = vst [vmem:[%s1077 + $0x44] sm:$0x1] %v1120
      %v1122 = vld [vmem:[%s1077 + $0x48] sm:$0xf]
      %v1123 = vsel %vm1079, %v1025, %v1122
      %1124 = vst [vmem:[%s1077 + $0x48] sm:$0xf] %v1123
      %1125 = vst [vmem:[%s1077 + $0x4c] sm:$0xf] %v1034
      %v1126 = vld [vmem:[%s1077 + $0x50] sm:$0x1]
      %v1127 = vsel %vm812, %v1035, %v1126
      %1128 = vst [vmem:[%s1077 + $0x50] sm:$0x1] %v1127
      %v1129 = vld [vmem:[%s1077 + $0x54] sm:$0xf]
      %v1130 = vsel %vm1079, %v1042, %v1129
      %1131 = vst [vmem:[%s1077 + $0x54] sm:$0xf] %v1130
      %1132 = vst [vmem:[%s1077 + $0x58] sm:$0xf] %v1051
      %v1133 = vld [vmem:[%s1077 + $0x5c] sm:$0x1]
      %v1134 = vsel %vm812, %v1052, %v1133
      %1135 = vst [vmem:[%s1077 + $0x5c] sm:$0x1] %v1134
      %p1136 = scmp.gt.s32.totalorder %s28, 0
      %s1137 = scalar_select %p1136, 1, 0
      %v1138 = vstv %s1137
      %vm1139 = vcmp.eq.s32.totalorder %v1138, 1
      %v1140 = vsel %vm1139, %v800, 0
      %p1141 = scmp.lt.s32.totalorder %s28, 1
      %s1142 = scalar_select %p1141, 1, 0
      %v1143 = vstv %s1142
      %vm1144 = vcmp.eq.s32.totalorder %v1143, 1
      %v1145 = vsel %vm1144, %v809, 0
      %v1147 = vunpack.c.l.b16 %v1140
      %v1148 = vunpack.c.h.b16 %v1140
      %v1149 = vpack.c.b16 %v1147, %v1147
      %v1150 = vpack.c.b16 %v1148, %v1148
      %v1152 = vshrl.u32 %v1149, 16
      %v1154 = vrot.slane %v1152, 7
      %v1155 = vshll.u32 %v1149, 16
      %v1157 = vor.u32 %v1154, %v1155
      %v1158 = vrot.slane %v1154, 4
      %v1160 = vshrl.u32 %v1150, 16
      %v1162 = vrot.slane %v1160, 7
      %v1163 = vshll.u32 %v1150, 16
      %v1165 = vor.u32 %v1162, %v1163
      %v1166 = vsel %vm916, %v1158, %v1165
      %v1167 = vrot.slane %v1162, 4
      %v1171 = vld [vmem:[#allocation2] sm:$0xf]
      %v1172 = vsel %vm1079, %v1157, %v1171
      %1173 = vst [vmem:[#allocation2] sm:$0xf] %v1172
      %1174 = vst [vmem:[#allocation2 + $0x4] sm:$0xf] %v1166
      %v1175 = vld [vmem:[#allocation2 + $0x8] sm:$0x1]
      %v1176 = vsel %vm812, %v1167, %v1175
      %1177 = vst [vmem:[#allocation2 + $0x8] sm:$0x1] %v1176
      %v1179 = vunpack.c.l.b16 %v1145
      %v1180 = vunpack.c.h.b16 %v1145
      %v1181 = vpack.c.b16 %v1179, %v1179
      %v1182 = vpack.c.b16 %v1180, %v1180
      %v1184 = vshrl.u32 %v1181, 16
      %v1186 = vrot.slane %v1184, 7
      %v1187 = vshll.u32 %v1181, 16
      %v1189 = vor.u32 %v1186, %v1187
      %v1190 = vrot.slane %v1186, 4
      %v1192 = vshrl.u32 %v1182, 16
      %v1194 = vrot.slane %v1192, 7
      %v1195 = vshll.u32 %v1182, 16
      %v1197 = vor.u32 %v1194, %v1195
      %v1198 = vsel %vm916, %v1190, %v1197
      %v1199 = vrot.slane %v1194, 4
      %s1203 = scalar_lea.vmem [#allocation2], 108
      %v1204 = vld [vmem:[%s1203] sm:$0xf]
      %v1205 = vsel %vm1079, %v1189, %v1204
      %1206 = vst [vmem:[%s1203] sm:$0xf] %v1205
      %1207 = vst [vmem:[%s1203 + $0x4] sm:$0xf] %v1198
      %v1208 = vld [vmem:[%s1203 + $0x8] sm:$0x1]
      %v1209 = vsel %vm812, %v1199, %v1208
      %1210 = vst [vmem:[%s1203 + $0x8] sm:$0x1] %v1209
      %v1211 = vld [vmem:[#allocation2] sm:$0xf]
      %v1212 = vld [vmem:[#allocation2 + $0x4] sm:$0xf]
      %v1213 = vld [vmem:[#allocation2 + $0xc] sm:$0xf]
      %v1214 = vld [vmem:[#allocation2 + $0x10] sm:$0xf]
      %v1215 = vld [vmem:[#allocation2 + $0x18] sm:$0xf]
      %v1216 = vld [vmem:[#allocation2 + $0x1c] sm:$0xf]
      %v1217 = vld [vmem:[#allocation2 + $0x24] sm:$0xf]
      %v1218 = vld [vmem:[#allocation2 + $0x28] sm:$0xf]
      %v1219 = vld [vmem:[#allocation2 + $0x30] sm:$0xf]
      %v1220 = vld [vmem:[#allocation2 + $0x34] sm:$0xf]
      %v1221 = vld [vmem:[#allocation2 + $0x3c] sm:$0xf]
      %v1222 = vld [vmem:[#allocation2 + $0x40] sm:$0xf]
      %v1223 = vld [vmem:[#allocation2 + $0x48] sm:$0xf]
      %v1224 = vld [vmem:[#allocation2 + $0x4c] sm:$0xf]
      %v1225 = vld [vmem:[#allocation2 + $0x54] sm:$0xf]
      %v1226 = vld [vmem:[#allocation2 + $0x58] sm:$0xf]
      %1227 = vst [vmem:[#allocation3] sm:$0xf] %v1211
      %1228 = vst [vmem:[#allocation3 + $0x24] sm:$0xf] %v1212
      %1229 = vst [vmem:[#allocation3 + $0x48] sm:$0xf] %v1213
      %1230 = vst [vmem:[#allocation3 + $0x6c] sm:$0xf] %v1214
      %1231 = vst [vmem:[#allocation3 + $0x90] sm:$0xf] %v1215
      %1232 = vst [vmem:[#allocation3 + $0xb4] sm:$0xf] %v1216
      %1233 = vst [vmem:[#allocation3 + $0xd8] sm:$0xf] %v1217
      %1234 = vst [vmem:[#allocation3 + $0xfc] sm:$0xf] %v1218
      %1235 = vst [vmem:[#allocation3 + $0x120] sm:$0xf] %v1219
      %1236 = vst [vmem:[#allocation3 + $0x144] sm:$0xf] %v1220
      %1237 = vst [vmem:[#allocation3 + $0x168] sm:$0xf] %v1221
      %1238 = vst [vmem:[#allocation3 + $0x18c] sm:$0xf] %v1222
      %1239 = vst [vmem:[#allocation3 + $0x1b0] sm:$0xf] %v1223
      %1240 = vst [vmem:[#allocation3 + $0x1d4] sm:$0xf] %v1224
      %1241 = vst [vmem:[#allocation3 + $0x1f8] sm:$0xf] %v1225
      %1242 = vst [vmem:[#allocation3 + $0x21c] sm:$0xf] %v1226
      %v1243 = vld [vmem:[#allocation2] sm:$0xf]
      %v1244 = vld [vmem:[#allocation2 + $0x4] sm:$0xf]
      %v1245 = vld [vmem:[#allocation2 + $0x8] sm:$0x1]
      %v1246 = vld [vmem:[#allocation2 + $0xc] sm:$0xf]
      %v1247 = vld [vmem:[#allocation2 + $0x10] sm:$0xf]
      %v1248 = vld [vmem:[#allocation2 + $0x14] sm:$0x1]
      %v1249 = vld [vmem:[#allocation2 + $0x18] sm:$0xf]
      %v1250 = vld [vmem:[#allocation2 + $0x1c] sm:$0xf]
      %v1251 = vld [vmem:[#allocation2 + $0x20] sm:$0x1]
      %v1252 = vld [vmem:[#allocation2 + $0x24] sm:$0xf]
      %v1253 = vld [vmem:[#allocation2 + $0x28] sm:$0xf]
      %v1254 = vld [vmem:[#allocation2 + $0x2c] sm:$0x1]
      %v1255 = vld [vmem:[#allocation2 + $0x30] sm:$0xf]
      %v1256 = vld [vmem:[#allocation2 + $0x34] sm:$0xf]
      %v1257 = vld [vmem:[#allocation2 + $0x38] sm:$0x1]
      %v1258 = vld [vmem:[#allocation2 + $0x3c] sm:$0xf]
      %v1259 = vld [vmem:[#allocation2 + $0x40] sm:$0xf]
      %v1260 = vld [vmem:[#allocation2 + $0x44] sm:$0x1]
      %v1261 = vld [vmem:[#allocation2 + $0x48] sm:$0xf]
      %v1262 = vld [vmem:[#allocation2 + $0x4c] sm:$0xf]
      %v1263 = vld [vmem:[#allocation2 + $0x50] sm:$0x1]
      %v1264 = vld [vmem:[#allocation2 + $0x54] sm:$0xf]
      %v1265 = vld [vmem:[#allocation2 + $0x58] sm:$0xf]
      %v1266 = vld [vmem:[#allocation2 + $0x5c] sm:$0x1]
      %vm1267 = vsmask.f32 3328
      %vm1268 = vsmask.f32 7440
      %vm1269 = vmor %vm1267, %vm1268
      %v1271 = vshrl.u32 %v1243, 16
      %v1273 = vrot.slane %v1271, 4
      %v1274 = vshll.u32 %v1243, 16
      %v1276 = vrot.slane %v1274, 5
      %v1277 = vor.u32 %v1273, %v1276
      %v1278 = vrot.slane %v1277, 4
      %v1280 = vshll.u32 %v1244, 16
      %v1282 = vrot.slane %v1280, 5
      %v1283 = vsel %vm1269, %v1278, %v1282
      %v1284 = vshrl.u32 %v1244, 16
      %v1286 = vrot.slane %v1284, 4
      %v1287 = vor.u32 %v1286, %v1282
      %v1288 = vrot.slane %v1287, 4
      %v1290 = vshll.u32 %v1245, 16
      %v1292 = vrot.slane %v1290, 5
      %v1293 = vsel %vm1269, %v1288, %v1292
      %v1295 = vshrl.u32 %v1246, 16
      %v1297 = vrot.slane %v1295, 4
      %v1298 = vshll.u32 %v1246, 16
      %v1300 = vrot.slane %v1298, 5
      %v1301 = vor.u32 %v1297, %v1300
      %v1302 = vrot.slane %v1301, 4
      %v1304 = vshll.u32 %v1247, 16
      %v1306 = vrot.slane %v1304, 5
      %v1307 = vsel %vm1269, %v1302, %v1306
      %v1308 = vshrl.u32 %v1247, 16
      %v1310 = vrot.slane %v1308, 4
      %v1311 = vor.u32 %v1310, %v1306
      %v1312 = vrot.slane %v1311, 4
      %v1314 = vshll.u32 %v1248, 16
      %v1316 = vrot.slane %v1314, 5
      %v1317 = vsel %vm1269, %v1312, %v1316
      %v1319 = vshrl.u32 %v1249, 16
      %v1321 = vrot.slane %v1319, 4
      %v1322 = vshll.u32 %v1249, 16
      %v1324 = vrot.slane %v1322, 5
      %v1325 = vor.u32 %v1321, %v1324
      %v1326 = vrot.slane %v1325, 4
      %v1328 = vshll.u32 %v1250, 16
      %v1330 = vrot.slane %v1328, 5
      %v1331 = vsel %vm1269, %v1326, %v1330
      %v1332 = vshrl.u32 %v1250, 16
      %v1334 = vrot.slane %v1332, 4
      %v1335 = vor.u32 %v1334, %v1330
      %v1336 = vrot.slane %v1335, 4
      %v1338 = vshll.u32 %v1251, 16
      %v1340 = vrot.slane %v1338, 5
      %v1341 = vsel %vm1269, %v1336, %v1340
      %v1343 = vshrl.u32 %v1252, 16
      %v1345 = vrot.slane %v1343, 4
      %v1346 = vshll.u32 %v1252, 16
      %v1348 = vrot.slane %v1346, 5
      %v1349 = vor.u32 %v1345, %v1348
      %v1350 = vrot.slane %v1349, 4
      %v1352 = vshll.u32 %v1253, 16
      %v1354 = vrot.slane %v1352, 5
      %v1355 = vsel %vm1269, %v1350, %v1354
      %v1356 = vshrl.u32 %v1253, 16
      %v1358 = vrot.slane %v1356, 4
      %v1359 = vor.u32 %v1358, %v1354
      %v1360 = vrot.slane %v1359, 4
      %v1362 = vshll.u32 %v1254, 16
      %v1364 = vrot.slane %v1362, 5
      %v1365 = vsel %vm1269, %v1360, %v1364
      %v1367 = vshrl.u32 %v1255, 16
      %v1369 = vrot.slane %v1367, 4
      %v1370 = vshll.u32 %v1255, 16
      %v1372 = vrot.slane %v1370, 5
      %v1373 = vor.u32 %v1369, %v1372
      %v1374 = vrot.slane %v1373, 4
      %v1376 = vshll.u32 %v1256, 16
      %v1378 = vrot.slane %v1376, 5
      %v1379 = vsel %vm1269, %v1374, %v1378
      %v1380 = vshrl.u32 %v1256, 16
      %v1382 = vrot.slane %v1380, 4
      %v1383 = vor.u32 %v1382, %v1378
      %v1384 = vrot.slane %v1383, 4
      %v1386 = vshll.u32 %v1257, 16
      %v1388 = vrot.slane %v1386, 5
      %v1389 = vsel %vm1269, %v1384, %v1388
      %v1391 = vshrl.u32 %v1258, 16
      %v1393 = vrot.slane %v1391, 4
      %v1394 = vshll.u32 %v1258, 16
      %v1396 = vrot.slane %v1394, 5
      %v1397 = vor.u32 %v1393, %v1396
      %v1398 = vrot.slane %v1397, 4
      %v1400 = vshll.u32 %v1259, 16
      %v1402 = vrot.slane %v1400, 5
      %v1403 = vsel %vm1269, %v1398, %v1402
      %v1404 = vshrl.u32 %v1259, 16
      %v1406 = vrot.slane %v1404, 4
      %v1407 = vor.u32 %v1406, %v1402
      %v1408 = vrot.slane %v1407, 4
      %v1410 = vshll.u32 %v1260, 16
      %v1412 = vrot.slane %v1410, 5
      %v1413 = vsel %vm1269, %v1408, %v1412
      %v1415 = vshrl.u32 %v1261, 16
      %v1417 = vrot.slane %v1415, 4
      %v1418 = vshll.u32 %v1261, 16
      %v1420 = vrot.slane %v1418, 5
      %v1421 = vor.u32 %v1417, %v1420
      %v1422 = vrot.slane %v1421, 4
      %v1424 = vshll.u32 %v1262, 16
      %v1426 = vrot.slane %v1424, 5
      %v1427 = vsel %vm1269, %v1422, %v1426
      %v1428 = vshrl.u32 %v1262, 16
      %v1430 = vrot.slane %v1428, 4
      %v1431 = vor.u32 %v1430, %v1426
      %v1432 = vrot.slane %v1431, 4
      %v1434 = vshll.u32 %v1263, 16
      %v1436 = vrot.slane %v1434, 5
      %v1437 = vsel %vm1269, %v1432, %v1436
      %v1439 = vshrl.u32 %v1264, 16
      %v1441 = vrot.slane %v1439, 4
      %v1442 = vshll.u32 %v1264, 16
      %v1444 = vrot.slane %v1442, 5
      %v1445 = vor.u32 %v1441, %v1444
      %v1446 = vrot.slane %v1445, 4
      %v1448 = vshll.u32 %v1265, 16
      %v1450 = vrot.slane %v1448, 5
      %v1451 = vsel %vm1269, %v1446, %v1450
      %v1452 = vshrl.u32 %v1265, 16
      %v1454 = vrot.slane %v1452, 4
      %v1455 = vor.u32 %v1454, %v1450
      %v1456 = vrot.slane %v1455, 4
      %v1458 = vshll.u32 %v1266, 16
      %v1460 = vrot.slane %v1458, 5
      %v1461 = vsel %vm1269, %v1456, %v1460
      %1478 = vst [vmem:[#allocation3 + $0x4] sm:$0xf] %v1283
      %1479 = vst [vmem:[#allocation3 + $0x28] sm:$0xf] %v1293
      %1480 = vst [vmem:[#allocation3 + $0x4c] sm:$0xf] %v1307
      %1481 = vst [vmem:[#allocation3 + $0x70] sm:$0xf] %v1317
      %1482 = vst [vmem:[#allocation3 + $0x94] sm:$0xf] %v1331
      %1483 = vst [vmem:[#allocation3 + $0xb8] sm:$0xf] %v1341
      %1484 = vst [vmem:[#allocation3 + $0xdc] sm:$0xf] %v1355
      %1485 = vst [vmem:[#allocation3 + $0x100] sm:$0xf] %v1365
      %1486 = vst [vmem:[#allocation3 + $0x124] sm:$0xf] %v1379
      %1487 = vst [vmem:[#allocation3 + $0x148] sm:$0xf] %v1389
      %1488 = vst [vmem:[#allocation3 + $0x16c] sm:$0xf] %v1403
      %1489 = vst [vmem:[#allocation3 + $0x190] sm:$0xf] %v1413
      %1490 = vst [vmem:[#allocation3 + $0x1b4] sm:$0xf] %v1427
      %1491 = vst [vmem:[#allocation3 + $0x1d8] sm:$0xf] %v1437
      %1492 = vst [vmem:[#allocation3 + $0x1fc] sm:$0xf] %v1451
      %1493 = vst [vmem:[#allocation3 + $0x220] sm:$0xf] %v1461
      %v1494 = vld [vmem:[#allocation2] sm:$0xe]
      %v1495 = vld [vmem:[#allocation2 + $0x4] sm:$0xf]
      %v1496 = vld [vmem:[#allocation2 + $0x8] sm:$0x1]
      %v1497 = vld [vmem:[#allocation2 + $0xc] sm:$0xe]
      %v1498 = vld [vmem:[#allocation2 + $0x10] sm:$0xf]
      %v1499 = vld [vmem:[#allocation2 + $0x14] sm:$0x1]
      %v1500 = vld [vmem:[#allocation2 + $0x18] sm:$0xe]
      %v1501 = vld [vmem:[#allocation2 + $0x1c] sm:$0xf]
      %v1502 = vld [vmem:[#allocation2 + $0x20] sm:$0x1]
      %v1503 = vld [vmem:[#allocation2 + $0x24] sm:$0xe]
      %v1504 = vld [vmem:[#allocation2 + $0x28] sm:$0xf]
      %v1505 = vld [vmem:[#allocation2 + $0x2c] sm:$0x1]
      %v1506 = vld [vmem:[#allocation2 + $0x30] sm:$0xe]
      %v1507 = vld [vmem:[#allocation2 + $0x34] sm:$0xf]
      %v1508 = vld [vmem:[#allocation2 + $0x38] sm:$0x1]
      %v1509 = vld [vmem:[#allocation2 + $0x3c] sm:$0xe]
      %v1510 = vld [vmem:[#allocation2 + $0x40] sm:$0xf]
      %v1511 = vld [vmem:[#allocation2 + $0x44] sm:$0x1]
      %v1512 = vld [vmem:[#allocation2 + $0x48] sm:$0xe]
      %v1513 = vld [vmem:[#allocation2 + $0x4c] sm:$0xf]
      %v1514 = vld [vmem:[#allocation2 + $0x50] sm:$0x1]
      %v1515 = vld [vmem:[#allocation2 + $0x54] sm:$0xe]
      %v1516 = vld [vmem:[#allocation2 + $0x58] sm:$0xf]
      %v1517 = vld [vmem:[#allocation2 + $0x5c] sm:$0x1]
      %vm1542 = vcmask 1042432
      %vm1543 = vcmask 1046532
      %vm1544 = vmor %vm1542, %vm1543
      %v1545 = vrot.slane %v1494, 5
      %v1546 = vrot.slane %v1545, 4
      %v1547 = vrot.slane %v1495, 5
      %v1548 = vsel %vm1544, %v1546, %v1547
      %v1549 = vrot.slane %v1547, 4
      %v1550 = vrot.slane %v1496, 5
      %v1551 = vsel %vm1544, %v1549, %v1550
      %v1552 = vrot.slane %v1497, 5
      %v1553 = vrot.slane %v1552, 4
      %v1554 = vrot.slane %v1498, 5
      %v1555 = vsel %vm1544, %v1553, %v1554
      %v1556 = vrot.slane %v1554, 4
      %v1557 = vrot.slane %v1499, 5
      %v1558 = vsel %vm1544, %v1556, %v1557
      %v1559 = vrot.slane %v1500, 5
      %v1560 = vrot.slane %v1559, 4
      %v1561 = vrot.slane %v1501, 5
      %v1562 = vsel %vm1544, %v1560, %v1561
      %v1563 = vrot.slane %v1561, 4
      %v1564 = vrot.slane %v1502, 5
      %v1565 = vsel %vm1544, %v1563, %v1564
      %v1566 = vrot.slane %v1503, 5
      %v1567 = vrot.slane %v1566, 4
      %v1568 = vrot.slane %v1504, 5
      %v1569 = vsel %vm1544, %v1567, %v1568
      %v1570 = vrot.slane %v1568, 4
      %v1571 = vrot.slane %v1505, 5
      %v1572 = vsel %vm1544, %v1570, %v1571
      %v1573 = vrot.slane %v1506, 5
      %v1574 = vrot.slane %v1573, 4
      %v1575 = vrot.slane %v1507, 5
      %v1576 = vsel %vm1544, %v1574, %v1575
      %v1577 = vrot.slane %v1575, 4
      %v1578 = vrot.slane %v1508, 5
      %v1579 = vsel %vm1544, %v1577, %v1578
      %v1580 = vrot.slane %v1509, 5
      %v1581 = vrot.slane %v1580, 4
      %v1582 = vrot.slane %v1510, 5
      %v1583 = vsel %vm1544, %v1581, %v1582
      %v1584 = vrot.slane %v1582, 4
      %v1585 = vrot.slane %v1511, 5
      %v1586 = vsel %vm1544, %v1584, %v1585
      %v1587 = vrot.slane %v1512, 5
      %v1588 = vrot.slane %v1587, 4
      %v1589 = vrot.slane %v1513, 5
      %v1590 = vsel %vm1544, %v1588, %v1589
      %v1591 = vrot.slane %v1589, 4
      %v1592 = vrot.slane %v1514, 5
      %v1593 = vsel %vm1544, %v1591, %v1592
      %v1594 = vrot.slane %v1515, 5
      %v1595 = vrot.slane %v1594, 4
      %v1596 = vrot.slane %v1516, 5
      %v1597 = vsel %vm1544, %v1595, %v1596
      %v1598 = vrot.slane %v1596, 4
      %v1599 = vrot.slane %v1517, 5
      %v1600 = vsel %vm1544, %v1598, %v1599
      %1617 = vst [vmem:[#allocation3 + $0x8] sm:$0xf] %v1548
      %1618 = vst [vmem:[#allocation3 + $0x2c] sm:$0xf] %v1551
      %1619 = vst [vmem:[#allocation3 + $0x50] sm:$0xf] %v1555
      %1620 = vst [vmem:[#allocation3 + $0x74] sm:$0xf] %v1558
      %1621 = vst [vmem:[#allocation3 + $0x98] sm:$0xf] %v1562
      %1622 = vst [vmem:[#allocation3 + $0xbc] sm:$0xf] %v1565
      %1623 = vst [vmem:[#allocation3 + $0xe0] sm:$0xf] %v1569
      %1624 = vst [vmem:[#allocation3 + $0x104] sm:$0xf] %v1572
      %1625 = vst [vmem:[#allocation3 + $0x128] sm:$0xf] %v1576
      %1626 = vst [vmem:[#allocation3 + $0x14c] sm:$0xf] %v1579
      %1627 = vst [vmem:[#allocation3 + $0x170] sm:$0xf] %v1583
      %1628 = vst [vmem:[#allocation3 + $0x194] sm:$0xf] %v1586
      %1629 = vst [vmem:[#allocation3 + $0x1b8] sm:$0xf] %v1590
      %1630 = vst [vmem:[#allocation3 + $0x1dc] sm:$0xf] %v1593
      %1631 = vst [vmem:[#allocation3 + $0x200] sm:$0xf] %v1597
      %1632 = vst [vmem:[#allocation3 + $0x224] sm:$0xf] %v1600
      %v1633 = vld [vmem:[%s1077] sm:$0xf]
      %v1634 = vld [vmem:[%s1077 + $0x4] sm:$0xf]
      %v1635 = vld [vmem:[%s1077 + $0xc] sm:$0xf]
      %v1636 = vld [vmem:[%s1077 + $0x10] sm:$0xf]
      %v1637 = vld [vmem:[%s1077 + $0x18] sm:$0xf]
      %v1638 = vld [vmem:[%s1077 + $0x1c] sm:$0xf]
      %v1639 = vld [vmem:[%s1077 + $0x24] sm:$0xf]
      %v1640 = vld [vmem:[%s1077 + $0x28] sm:$0xf]
      %v1641 = vld [vmem:[%s1077 + $0x30] sm:$0xf]
      %v1642 = vld [vmem:[%s1077 + $0x34] sm:$0xf]
      %v1643 = vld [vmem:[%s1077 + $0x3c] sm:$0xf]
      %v1644 = vld [vmem:[%s1077 + $0x40] sm:$0xf]
      %v1645 = vld [vmem:[%s1077 + $0x48] sm:$0xf]
      %v1646 = vld [vmem:[%s1077 + $0x4c] sm:$0xf]
      %v1647 = vld [vmem:[%s1077 + $0x54] sm:$0xf]
      %v1648 = vld [vmem:[%s1077 + $0x58] sm:$0xf]
      %1649 = vst [vmem:[#allocation3 + $0xc] sm:$0xf] %v1633
      %1650 = vst [vmem:[#allocation3 + $0x30] sm:$0xf] %v1634
      %1651 = vst [vmem:[#allocation3 + $0x54] sm:$0xf] %v1635
      %1652 = vst [vmem:[#allocation3 + $0x78] sm:$0xf] %v1636
      %1653 = vst [vmem:[#allocation3 + $0x9c] sm:$0xf] %v1637
      %1654 = vst [vmem:[#allocation3 + $0xc0] sm:$0xf] %v1638
      %1655 = vst [vmem:[#allocation3 + $0xe4] sm:$0xf] %v1639
      %1656 = vst [vmem:[#allocation3 + $0x108] sm:$0xf] %v1640
      %1657 = vst [vmem:[#allocation3 + $0x12c] sm:$0xf] %v1641
      %1658 = vst [vmem:[#allocation3 + $0x150] sm:$0xf] %v1642
      %1659 = vst [vmem:[#allocation3 + $0x174] sm:$0xf] %v1643
      %1660 = vst [vmem:[#allocation3 + $0x198] sm:$0xf] %v1644
      %1661 = vst [vmem:[#allocation3 + $0x1bc] sm:$0xf] %v1645
      %1662 = vst [vmem:[#allocation3 + $0x1e0] sm:$0xf] %v1646
      %1663 = vst [vmem:[#allocation3 + $0x204] sm:$0xf] %v1647
      %1664 = vst [vmem:[#allocation3 + $0x228] sm:$0xf] %v1648
      %v1665 = vld [vmem:[%s1077] sm:$0xf]
      %v1666 = vld [vmem:[%s1077 + $0x4] sm:$0xf]
      %v1667 = vld [vmem:[%s1077 + $0x8] sm:$0x1]
      %v1668 = vld [vmem:[%s1077 + $0xc] sm:$0xf]
      %v1669 = vld [vmem:[%s1077 + $0x10] sm:$0xf]
      %v1670 = vld [vmem:[%s1077 + $0x14] sm:$0x1]
      %v1671 = vld [vmem:[%s1077 + $0x18] sm:$0xf]
      %v1672 = vld [vmem:[%s1077 + $0x1c] sm:$0xf]
      %v1673 = vld [vmem:[%s1077 + $0x20] sm:$0x1]
      %v1674 = vld [vmem:[%s1077 + $0x24] sm:$0xf]
      %v1675 = vld [vmem:[%s1077 + $0x28] sm:$0xf]
      %v1676 = vld [vmem:[%s1077 + $0x2c] sm:$0x1]
      %v1677 = vld [vmem:[%s1077 + $0x30] sm:$0xf]
      %v1678 = vld [vmem:[%s1077 + $0x34] sm:$0xf]
      %v1679 = vld [vmem:[%s1077 + $0x38] sm:$0x1]
      %v1680 = vld [vmem:[%s1077 + $0x3c] sm:$0xf]
      %v1681 = vld [vmem:[%s1077 + $0x40] sm:$0xf]
      %v1682 = vld [vmem:[%s1077 + $0x44] sm:$0x1]
      %v1683 = vld [vmem:[%s1077 + $0x48] sm:$0xf]
      %v1684 = vld [vmem:[%s1077 + $0x4c] sm:$0xf]
      %v1685 = vld [vmem:[%s1077 + $0x50] sm:$0x1]
      %v1686 = vld [vmem:[%s1077 + $0x54] sm:$0xf]
      %v1687 = vld [vmem:[%s1077 + $0x58] sm:$0xf]
      %v1688 = vld [vmem:[%s1077 + $0x5c] sm:$0x1]
      %v1690 = vshrl.u32 %v1665, 16
      %v1692 = vrot.slane %v1690, 4
      %v1693 = vshll.u32 %v1665, 16
      %v1695 = vrot.slane %v1693, 5
      %v1696 = vor.u32 %v1692, %v1695
      %v1697 = vrot.slane %v1696, 4
      %v1699 = vshll.u32 %v1666, 16
      %v1701 = vrot.slane %v1699, 5
      %v1702 = vsel %vm1269, %v1697, %v1701
      %v1703 = vshrl.u32 %v1666, 16
      %v1705 = vrot.slane %v1703, 4
      %v1706 = vor.u32 %v1705, %v1701
      %v1707 = vrot.slane %v1706, 4
      %v1709 = vshll.u32 %v1667, 16
      %v1711 = vrot.slane %v1709, 5
      %v1712 = vsel %vm1269, %v1707, %v1711
      %v1714 = vshrl.u32 %v1668, 16
      %v1716 = vrot.slane %v1714, 4
      %v1717 = vshll.u32 %v1668, 16
      %v1719 = vrot.slane %v1717, 5
      %v1720 = vor.u32 %v1716, %v1719
      %v1721 = vrot.slane %v1720, 4
      %v1723 = vshll.u32 %v1669, 16
      %v1725 = vrot.slane %v1723, 5
      %v1726 = vsel %vm1269, %v1721, %v1725
      %v1727 = vshrl.u32 %v1669, 16
      %v1729 = vrot.slane %v1727, 4
      %v1730 = vor.u32 %v1729, %v1725
      %v1731 = vrot.slane %v1730, 4
      %v1733 = vshll.u32 %v1670, 16
      %v1735 = vrot.slane %v1733, 5
      %v1736 = vsel %vm1269, %v1731, %v1735
      %v1738 = vshrl.u32 %v1671, 16
      %v1740 = vrot.slane %v1738, 4
      %v1741 = vshll.u32 %v1671, 16
      %v1743 = vrot.slane %v1741, 5
      %v1744 = vor.u32 %v1740, %v1743
      %v1745 = vrot.slane %v1744, 4
      %v1747 = vshll.u32 %v1672, 16
      %v1749 = vrot.slane %v1747, 5
      %v1750 = vsel %vm1269, %v1745, %v1749
      %v1751 = vshrl.u32 %v1672, 16
      %v1753 = vrot.slane %v1751, 4
      %v1754 = vor.u32 %v1753, %v1749
      %v1755 = vrot.slane %v1754, 4
      %v1757 = vshll.u32 %v1673, 16
      %v1759 = vrot.slane %v1757, 5
      %v1760 = vsel %vm1269, %v1755, %v1759
      %v1762 = vshrl.u32 %v1674, 16
      %v1764 = vrot.slane %v1762, 4
      %v1765 = vshll.u32 %v1674, 16
      %v1767 = vrot.slane %v1765, 5
      %v1768 = vor.u32 %v1764, %v1767
      %v1769 = vrot.slane %v1768, 4
      %v1771 = vshll.u32 %v1675, 16
      %v1773 = vrot.slane %v1771, 5
      %v1774 = vsel %vm1269, %v1769, %v1773
      %v1775 = vshrl.u32 %v1675, 16
      %v1777 = vrot.slane %v1775, 4
      %v1778 = vor.u32 %v1777, %v1773
      %v1779 = vrot.slane %v1778, 4
      %v1781 = vshll.u32 %v1676, 16
      %v1783 = vrot.slane %v1781, 5
      %v1784 = vsel %vm1269, %v1779, %v1783
      %v1786 = vshrl.u32 %v1677, 16
      %v1788 = vrot.slane %v1786, 4
      %v1789 = vshll.u32 %v1677, 16
      %v1791 = vrot.slane %v1789, 5
      %v1792 = vor.u32 %v1788, %v1791
      %v1793 = vrot.slane %v1792, 4
      %v1795 = vshll.u32 %v1678, 16
      %v1797 = vrot.slane %v1795, 5
      %v1798 = vsel %vm1269, %v1793, %v1797
      %v1799 = vshrl.u32 %v1678, 16
      %v1801 = vrot.slane %v1799, 4
      %v1802 = vor.u32 %v1801, %v1797
      %v1803 = vrot.slane %v1802, 4
      %v1805 = vshll.u32 %v1679, 16
      %v1807 = vrot.slane %v1805, 5
      %v1808 = vsel %vm1269, %v1803, %v1807
      %v1810 = vshrl.u32 %v1680, 16
      %v1812 = vrot.slane %v1810, 4
      %v1813 = vshll.u32 %v1680, 16
      %v1815 = vrot.slane %v1813, 5
      %v1816 = vor.u32 %v1812, %v1815
      %v1817 = vrot.slane %v1816, 4
      %v1819 = vshll.u32 %v1681, 16
      %v1821 = vrot.slane %v1819, 5
      %v1822 = vsel %vm1269, %v1817, %v1821
      %v1823 = vshrl.u32 %v1681, 16
      %v1825 = vrot.slane %v1823, 4
      %v1826 = vor.u32 %v1825, %v1821
      %v1827 = vrot.slane %v1826, 4
      %v1829 = vshll.u32 %v1682, 16
      %v1831 = vrot.slane %v1829, 5
      %v1832 = vsel %vm1269, %v1827, %v1831
      %v1834 = vshrl.u32 %v1683, 16
      %v1836 = vrot.slane %v1834, 4
      %v1837 = vshll.u32 %v1683, 16
      %v1839 = vrot.slane %v1837, 5
      %v1840 = vor.u32 %v1836, %v1839
      %v1841 = vrot.slane %v1840, 4
      %v1843 = vshll.u32 %v1684, 16
      %v1845 = vrot.slane %v1843, 5
      %v1846 = vsel %vm1269, %v1841, %v1845
      %v1847 = vshrl.u32 %v1684, 16
      %v1849 = vrot.slane %v1847, 4
      %v1850 = vor.u32 %v1849, %v1845
      %v1851 = vrot.slane %v1850, 4
      %v1853 = vshll.u32 %v1685, 16
      %v1855 = vrot.slane %v1853, 5
      %v1856 = vsel %vm1269, %v1851, %v1855
      %v1858 = vshrl.u32 %v1686, 16
      %v1860 = vrot.slane %v1858, 4
      %v1861 = vshll.u32 %v1686, 16
      %v1863 = vrot.slane %v1861, 5
      %v1864 = vor.u32 %v1860, %v1863
      %v1865 = vrot.slane %v1864, 4
      %v1867 = vshll.u32 %v1687, 16
      %v1869 = vrot.slane %v1867, 5
      %v1870 = vsel %vm1269, %v1865, %v1869
      %v1871 = vshrl.u32 %v1687, 16
      %v1873 = vrot.slane %v1871, 4
      %v1874 = vor.u32 %v1873, %v1869
      %v1875 = vrot.slane %v1874, 4
      %v1877 = vshll.u32 %v1688, 16
      %v1879 = vrot.slane %v1877, 5
      %v1880 = vsel %vm1269, %v1875, %v1879
      %1897 = vst [vmem:[#allocation3 + $0x10] sm:$0xf] %v1702
      %1898 = vst [vmem:[#allocation3 + $0x34] sm:$0xf] %v1712
      %1899 = vst [vmem:[#allocation3 + $0x58] sm:$0xf] %v1726
      %1900 = vst [vmem:[#allocation3 + $0x7c] sm:$0xf] %v1736
      %1901 = vst [vmem:[#allocation3 + $0xa0] sm:$0xf] %v1750
      %1902 = vst [vmem:[#allocation3 + $0xc4] sm:$0xf] %v1760
      %1903 = vst [vmem:[#allocation3 + $0xe8] sm:$0xf] %v1774
      %1904 = vst [vmem:[#allocation3 + $0x10c] sm:$0xf] %v1784
      %1905 = vst [vmem:[#allocation3 + $0x130] sm:$0xf] %v1798
      %1906 = vst [vmem:[#allocation3 + $0x154] sm:$0xf] %v1808
      %1907 = vst [vmem:[#allocation3 + $0x178] sm:$0xf] %v1822
      %1908 = vst [vmem:[#allocation3 + $0x19c] sm:$0xf] %v1832
      %1909 = vst [vmem:[#allocation3 + $0x1c0] sm:$0xf] %v1846
      %1910 = vst [vmem:[#allocation3 + $0x1e4] sm:$0xf] %v1856
      %1911 = vst [vmem:[#allocation3 + $0x208] sm:$0xf] %v1870
      %1912 = vst [vmem:[#allocation3 + $0x22c] sm:$0xf] %v1880
      %v1913 = vld [vmem:[%s1077] sm:$0xe]
      %v1914 = vld [vmem:[%s1077 + $0x4] sm:$0xf]
      %v1915 = vld [vmem:[%s1077 + $0x8] sm:$0x1]
      %v1916 = vld [vmem:[%s1077 + $0xc] sm:$0xe]
      %v1917 = vld [vmem:[%s1077 + $0x10] sm:$0xf]
      %v1918 = vld [vmem:[%s1077 + $0x14] sm:$0x1]
      %v1919 = vld [vmem:[%s1077 + $0x18] sm:$0xe]
      %v1920 = vld [vmem:[%s1077 + $0x1c] sm:$0xf]
      %v1921 = vld [vmem:[%s1077 + $0x20] sm:$0x1]
      %v1922 = vld [vmem:[%s1077 + $0x24] sm:$0xe]
      %v1923 = vld [vmem:[%s1077 + $0x28] sm:$0xf]
      %v1924 = vld [vmem:[%s1077 + $0x2c] sm:$0x1]
      %v1925 = vld [vmem:[%s1077 + $0x30] sm:$0xe]
      %v1926 = vld [vmem:[%s1077 + $0x34] sm:$0xf]
      %v1927 = vld [vmem:[%s1077 + $0x38] sm:$0x1]
      %v1928 = vld [vmem:[%s1077 + $0x3c] sm:$0xe]
      %v1929 = vld [vmem:[%s1077 + $0x40] sm:$0xf]
      %v1930 = vld [vmem:[%s1077 + $0x44] sm:$0x1]
      %v1931 = vld [vmem:[%s1077 + $0x48] sm:$0xe]
      %v1932 = vld [vmem:[%s1077 + $0x4c] sm:$0xf]
      %v1933 = vld [vmem:[%s1077 + $0x50] sm:$0x1]
      %v1934 = vld [vmem:[%s1077 + $0x54] sm:$0xe]
      %v1935 = vld [vmem:[%s1077 + $0x58] sm:$0xf]
      %v1936 = vld [vmem:[%s1077 + $0x5c] sm:$0x1]
      %v1961 = vrot.slane %v1913, 5
      %v1962 = vrot.slane %v1961, 4
      %v1963 = vrot.slane %v1914, 5
      %v1964 = vsel %vm1544, %v1962, %v1963
      %v1965 = vrot.slane %v1963, 4
      %v1966 = vrot.slane %v1915, 5
      %v1967 = vsel %vm1544, %v1965, %v1966
      %v1968 = vrot.slane %v1916, 5
      %v1969 = vrot.slane %v1968, 4
      %v1970 = vrot.slane %v1917, 5
      %v1971 = vsel %vm1544, %v1969, %v1970
      %v1972 = vrot.slane %v1970, 4
      %v1973 = vrot.slane %v1918, 5
      %v1974 = vsel %vm1544, %v1972, %v1973
      %v1975 = vrot.slane %v1919, 5
      %v1976 = vrot.slane %v1975, 4
      %v1977 = vrot.slane %v1920, 5
      %v1978 = vsel %vm1544, %v1976, %v1977
      %v1979 = vrot.slane %v1977, 4
      %v1980 = vrot.slane %v1921, 5
      %v1981 = vsel %vm1544, %v1979, %v1980
      %v1982 = vrot.slane %v1922, 5
      %v1983 = vrot.slane %v1982, 4
      %v1984 = vrot.slane %v1923, 5
      %v1985 = vsel %vm1544, %v1983, %v1984
      %v1986 = vrot.slane %v1984, 4
      %v1987 = vrot.slane %v1924, 5
      %v1988 = vsel %vm1544, %v1986, %v1987
      %v1989 = vrot.slane %v1925, 5
      %v1990 = vrot.slane %v1989, 4
      %v1991 = vrot.slane %v1926, 5
      %v1992 = vsel %vm1544, %v1990, %v1991
      %v1993 = vrot.slane %v1991, 4
      %v1994 = vrot.slane %v1927, 5
      %v1995 = vsel %vm1544, %v1993, %v1994
      %v1996 = vrot.slane %v1928, 5
      %v1997 = vrot.slane %v1996, 4
      %v1998 = vrot.slane %v1929, 5
      %v1999 = vsel %vm1544, %v1997, %v1998
      %v2000 = vrot.slane %v1998, 4
      %v2001 = vrot.slane %v1930, 5
      %v2002 = vsel %vm1544, %v2000, %v2001
      %v2003 = vrot.slane %v1931, 5
      %v2004 = vrot.slane %v2003, 4
      %v2005 = vrot.slane %v1932, 5
      %v2006 = vsel %vm1544, %v2004, %v2005
      %v2007 = vrot.slane %v2005, 4
      %v2008 = vrot.slane %v1933, 5
      %v2009 = vsel %vm1544, %v2007, %v2008
      %v2010 = vrot.slane %v1934, 5
      %v2011 = vrot.slane %v2010, 4
      %v2012 = vrot.slane %v1935, 5
      %v2013 = vsel %vm1544, %v2011, %v2012
      %v2014 = vrot.slane %v2012, 4
      %v2015 = vrot.slane %v1936, 5
      %v2016 = vsel %vm1544, %v2014, %v2015
      %2033 = vst [vmem:[#allocation3 + $0x14] sm:$0xf] %v1964
      %2034 = vst [vmem:[#allocation3 + $0x38] sm:$0xf] %v1967
      %2035 = vst [vmem:[#allocation3 + $0x5c] sm:$0xf] %v1971
      %2036 = vst [vmem:[#allocation3 + $0x80] sm:$0xf] %v1974
      %2037 = vst [vmem:[#allocation3 + $0xa4] sm:$0xf] %v1978
      %2038 = vst [vmem:[#allocation3 + $0xc8] sm:$0xf] %v1981
      %2039 = vst [vmem:[#allocation3 + $0xec] sm:$0xf] %v1985
      %2040 = vst [vmem:[#allocation3 + $0x110] sm:$0xf] %v1988
      %2041 = vst [vmem:[#allocation3 + $0x134] sm:$0xf] %v1992
      %2042 = vst [vmem:[#allocation3 + $0x158] sm:$0xf] %v1995
      %2043 = vst [vmem:[#allocation3 + $0x17c] sm:$0xf] %v1999
      %2044 = vst [vmem:[#allocation3 + $0x1a0] sm:$0xf] %v2002
      %2045 = vst [vmem:[#allocation3 + $0x1c4] sm:$0xf] %v2006
      %2046 = vst [vmem:[#allocation3 + $0x1e8] sm:$0xf] %v2009
      %2047 = vst [vmem:[#allocation3 + $0x20c] sm:$0xf] %v2013
      %2048 = vst [vmem:[#allocation3 + $0x230] sm:$0xf] %v2016
      %s2049 = scalar_lea.vmem [#allocation2], 24
      %v2050 = vld [vmem:[%s2049] sm:$0xf]
      %v2051 = vld [vmem:[%s2049 + $0x4] sm:$0xf]
      %v2052 = vld [vmem:[%s2049 + $0xc] sm:$0xf]
      %v2053 = vld [vmem:[%s2049 + $0x10] sm:$0xf]
      %v2054 = vld [vmem:[%s2049 + $0x18] sm:$0xf]
      %v2055 = vld [vmem:[%s2049 + $0x1c] sm:$0xf]
      %v2056 = vld [vmem:[%s2049 + $0x24] sm:$0xf]
      %v2057 = vld [vmem:[%s2049 + $0x28] sm:$0xf]
      %v2058 = vld [vmem:[%s2049 + $0x30] sm:$0xf]
      %v2059 = vld [vmem:[%s2049 + $0x34] sm:$0xf]
      %v2060 = vld [vmem:[%s2049 + $0x3c] sm:$0xf]
      %v2061 = vld [vmem:[%s2049 + $0x40] sm:$0xf]
      %v2062 = vld [vmem:[%s2049 + $0x48] sm:$0xf]
      %v2063 = vld [vmem:[%s2049 + $0x4c] sm:$0xf]
      %v2064 = vld [vmem:[%s2049 + $0x54] sm:$0xf]
      %v2065 = vld [vmem:[%s2049 + $0x58] sm:$0xf]
      %2066 = vst [vmem:[#allocation3 + $0x18] sm:$0xf] %v2050
      %2067 = vst [vmem:[#allocation3 + $0x3c] sm:$0xf] %v2051
      %2068 = vst [vmem:[#allocation3 + $0x60] sm:$0xf] %v2052
      %2069 = vst [vmem:[#allocation3 + $0x84] sm:$0xf] %v2053
      %2070 = vst [vmem:[#allocation3 + $0xa8] sm:$0xf] %v2054
      %2071 = vst [vmem:[#allocation3 + $0xcc] sm:$0xf] %v2055
      %2072 = vst [vmem:[#allocation3 + $0xf0] sm:$0xf] %v2056
      %2073 = vst [vmem:[#allocation3 + $0x114] sm:$0xf] %v2057
      %2074 = vst [vmem:[#allocation3 + $0x138] sm:$0xf] %v2058
      %2075 = vst [vmem:[#allocation3 + $0x15c] sm:$0xf] %v2059
      %2076 = vst [vmem:[#allocation3 + $0x180] sm:$0xf] %v2060
      %2077 = vst [vmem:[#allocation3 + $0x1a4] sm:$0xf] %v2061
      %2078 = vst [vmem:[#allocation3 + $0x1c8] sm:$0xf] %v2062
      %2079 = vst [vmem:[#allocation3 + $0x1ec] sm:$0xf] %v2063
      %2080 = vst [vmem:[#allocation3 + $0x210] sm:$0xf] %v2064
      %2081 = vst [vmem:[#allocation3 + $0x234] sm:$0xf] %v2065
      %v2082 = vld [vmem:[%s2049] sm:$0xf]
      %v2083 = vld [vmem:[%s2049 + $0x4] sm:$0xf]
      %v2084 = vld [vmem:[%s2049 + $0x8] sm:$0x1]
      %v2085 = vld [vmem:[%s2049 + $0xc] sm:$0xf]
      %v2086 = vld [vmem:[%s2049 + $0x10] sm:$0xf]
      %v2087 = vld [vmem:[%s2049 + $0x14] sm:$0x1]
      %v2088 = vld [vmem:[%s2049 + $0x18] sm:$0xf]
      %v2089 = vld [vmem:[%s2049 + $0x1c] sm:$0xf]
      %v2090 = vld [vmem:[%s2049 + $0x20] sm:$0x1]
      %v2091 = vld [vmem:[%s2049 + $0x24] sm:$0xf]
      %v2092 = vld [vmem:[%s2049 + $0x28] sm:$0xf]
      %v2093 = vld [vmem:[%s2049 + $0x2c] sm:$0x1]
      %v2094 = vld [vmem:[%s2049 + $0x30] sm:$0xf]
      %v2095 = vld [vmem:[%s2049 + $0x34] sm:$0xf]
      %v2096 = vld [vmem:[%s2049 + $0x38] sm:$0x1]
      %v2097 = vld [vmem:[%s2049 + $0x3c] sm:$0xf]
      %v2098 = vld [vmem:[%s2049 + $0x40] sm:$0xf]
      %v2099 = vld [vmem:[%s2049 + $0x44] sm:$0x1]
      %v2100 = vld [vmem:[%s2049 + $0x48] sm:$0xf]
      %v2101 = vld [vmem:[%s2049 + $0x4c] sm:$0xf]
      %v2102 = vld [vmem:[%s2049 + $0x50] sm:$0x1]
      %v2103 = vld [vmem:[%s2049 + $0x54] sm:$0xf]
      %v2104 = vld [vmem:[%s2049 + $0x58] sm:$0xf]
      %v2105 = vld [vmem:[%s2049 + $0x5c] sm:$0x1]
      %v2107 = vshrl.u32 %v2082, 16
      %v2109 = vrot.slane %v2107, 4
      %v2110 = vshll.u32 %v2082, 16
      %v2112 = vrot.slane %v2110, 5
      %v2113 = vor.u32 %v2109, %v2112
      %v2114 = vrot.slane %v2113, 4
      %v2116 = vshll.u32 %v2083, 16
      %v2118 = vrot.slane %v2116, 5
      %v2119 = vsel %vm1269, %v2114, %v2118
      %v2120 = vshrl.u32 %v2083, 16
      %v2122 = vrot.slane %v2120, 4
      %v2123 = vor.u32 %v2122, %v2118
      %v2124 = vrot.slane %v2123, 4
      %v2126 = vshll.u32 %v2084, 16
      %v2128 = vrot.slane %v2126, 5
      %v2129 = vsel %vm1269, %v2124, %v2128
      %v2131 = vshrl.u32 %v2085, 16
      %v2133 = vrot.slane %v2131, 4
      %v2134 = vshll.u32 %v2085, 16
      %v2136 = vrot.slane %v2134, 5
      %v2137 = vor.u32 %v2133, %v2136
      %v2138 = vrot.slane %v2137, 4
      %v2140 = vshll.u32 %v2086, 16
      %v2142 = vrot.slane %v2140, 5
      %v2143 = vsel %vm1269, %v2138, %v2142
      %v2144 = vshrl.u32 %v2086, 16
      %v2146 = vrot.slane %v2144, 4
      %v2147 = vor.u32 %v2146, %v2142
      %v2148 = vrot.slane %v2147, 4
      %v2150 = vshll.u32 %v2087, 16
      %v2152 = vrot.slane %v2150, 5
      %v2153 = vsel %vm1269, %v2148, %v2152
      %v2155 = vshrl.u32 %v2088, 16
      %v2157 = vrot.slane %v2155, 4
      %v2158 = vshll.u32 %v2088, 16
      %v2160 = vrot.slane %v2158, 5
      %v2161 = vor.u32 %v2157, %v2160
      %v2162 = vrot.slane %v2161, 4
      %v2164 = vshll.u32 %v2089, 16
      %v2166 = vrot.slane %v2164, 5
      %v2167 = vsel %vm1269, %v2162, %v2166
      %v2168 = vshrl.u32 %v2089, 16
      %v2170 = vrot.slane %v2168, 4
      %v2171 = vor.u32 %v2170, %v2166
      %v2172 = vrot.slane %v2171, 4
      %v2174 = vshll.u32 %v2090, 16
      %v2176 = vrot.slane %v2174, 5
      %v2177 = vsel %vm1269, %v2172, %v2176
      %v2179 = vshrl.u32 %v2091, 16
      %v2181 = vrot.slane %v2179, 4
      %v2182 = vshll.u32 %v2091, 16
      %v2184 = vrot.slane %v2182, 5
      %v2185 = vor.u32 %v2181, %v2184
      %v2186 = vrot.slane %v2185, 4
      %v2188 = vshll.u32 %v2092, 16
      %v2190 = vrot.slane %v2188, 5
      %v2191 = vsel %vm1269, %v2186, %v2190
      %v2192 = vshrl.u32 %v2092, 16
      %v2194 = vrot.slane %v2192, 4
      %v2195 = vor.u32 %v2194, %v2190
      %v2196 = vrot.slane %v2195, 4
      %v2198 = vshll.u32 %v2093, 16
      %v2200 = vrot.slane %v2198, 5
      %v2201 = vsel %vm1269, %v2196, %v2200
      %v2203 = vshrl.u32 %v2094, 16
      %v2205 = vrot.slane %v2203, 4
      %v2206 = vshll.u32 %v2094, 16
      %v2208 = vrot.slane %v2206, 5
      %v2209 = vor.u32 %v2205, %v2208
      %v2210 = vrot.slane %v2209, 4
      %v2212 = vshll.u32 %v2095, 16
      %v2214 = vrot.slane %v2212, 5
      %v2215 = vsel %vm1269, %v2210, %v2214
      %v2216 = vshrl.u32 %v2095, 16
      %v2218 = vrot.slane %v2216, 4
      %v2219 = vor.u32 %v2218, %v2214
      %v2220 = vrot.slane %v2219, 4
      %v2222 = vshll.u32 %v2096, 16
      %v2224 = vrot.slane %v2222, 5
      %v2225 = vsel %vm1269, %v2220, %v2224
      %v2227 = vshrl.u32 %v2097, 16
      %v2229 = vrot.slane %v2227, 4
      %v2230 = vshll.u32 %v2097, 16
      %v2232 = vrot.slane %v2230, 5
      %v2233 = vor.u32 %v2229, %v2232
      %v2234 = vrot.slane %v2233, 4
      %v2236 = vshll.u32 %v2098, 16
      %v2238 = vrot.slane %v2236, 5
      %v2239 = vsel %vm1269, %v2234, %v2238
      %v2240 = vshrl.u32 %v2098, 16
      %v2242 = vrot.slane %v2240, 4
      %v2243 = vor.u32 %v2242, %v2238
      %v2244 = vrot.slane %v2243, 4
      %v2246 = vshll.u32 %v2099, 16
      %v2248 = vrot.slane %v2246, 5
      %v2249 = vsel %vm1269, %v2244, %v2248
      %v2251 = vshrl.u32 %v2100, 16
      %v2253 = vrot.slane %v2251, 4
      %v2254 = vshll.u32 %v2100, 16
      %v2256 = vrot.slane %v2254, 5
      %v2257 = vor.u32 %v2253, %v2256
      %v2258 = vrot.slane %v2257, 4
      %v2260 = vshll.u32 %v2101, 16
      %v2262 = vrot.slane %v2260, 5
      %v2263 = vsel %vm1269, %v2258, %v2262
      %v2264 = vshrl.u32 %v2101, 16
      %v2266 = vrot.slane %v2264, 4
      %v2267 = vor.u32 %v2266, %v2262
      %v2268 = vrot.slane %v2267, 4
      %v2270 = vshll.u32 %v2102, 16
      %v2272 = vrot.slane %v2270, 5
      %v2273 = vsel %vm1269, %v2268, %v2272
      %v2275 = vshrl.u32 %v2103, 16
      %v2277 = vrot.slane %v2275, 4
      %v2278 = vshll.u32 %v2103, 16
      %v2280 = vrot.slane %v2278, 5
      %v2281 = vor.u32 %v2277, %v2280
      %v2282 = vrot.slane %v2281, 4
      %v2284 = vshll.u32 %v2104, 16
      %v2286 = vrot.slane %v2284, 5
      %v2287 = vsel %vm1269, %v2282, %v2286
      %v2288 = vshrl.u32 %v2104, 16
      %v2290 = vrot.slane %v2288, 4
      %v2291 = vor.u32 %v2290, %v2286
      %v2292 = vrot.slane %v2291, 4
      %v2294 = vshll.u32 %v2105, 16
      %v2296 = vrot.slane %v2294, 5
      %v2297 = vsel %vm1269, %v2292, %v2296
      %2314 = vst [vmem:[#allocation3 + $0x1c] sm:$0xf] %v2119
      %2315 = vst [vmem:[#allocation3 + $0x40] sm:$0xf] %v2129
      %2316 = vst [vmem:[#allocation3 + $0x64] sm:$0xf] %v2143
      %2317 = vst [vmem:[#allocation3 + $0x88] sm:$0xf] %v2153
      %2318 = vst [vmem:[#allocation3 + $0xac] sm:$0xf] %v2167
      %2319 = vst [vmem:[#allocation3 + $0xd0] sm:$0xf] %v2177
      %2320 = vst [vmem:[#allocation3 + $0xf4] sm:$0xf] %v2191
      %2321 = vst [vmem:[#allocation3 + $0x118] sm:$0xf] %v2201
      %2322 = vst [vmem:[#allocation3 + $0x13c] sm:$0xf] %v2215
      %2323 = vst [vmem:[#allocation3 + $0x160] sm:$0xf] %v2225
      %2324 = vst [vmem:[#allocation3 + $0x184] sm:$0xf] %v2239
      %2325 = vst [vmem:[#allocation3 + $0x1a8] sm:$0xf] %v2249
      %2326 = vst [vmem:[#allocation3 + $0x1cc] sm:$0xf] %v2263
      %2327 = vst [vmem:[#allocation3 + $0x1f0] sm:$0xf] %v2273
      %2328 = vst [vmem:[#allocation3 + $0x214] sm:$0xf] %v2287
      %2329 = vst [vmem:[#allocation3 + $0x238] sm:$0xf] %v2297
      %v2330 = vld [vmem:[%s2049] sm:$0xe]
      %v2331 = vld [vmem:[%s2049 + $0x4] sm:$0xf]
      %v2332 = vld [vmem:[%s2049 + $0x8] sm:$0x1]
      %v2333 = vld [vmem:[%s2049 + $0xc] sm:$0xe]
      %v2334 = vld [vmem:[%s2049 + $0x10] sm:$0xf]
      %v2335 = vld [vmem:[%s2049 + $0x14] sm:$0x1]
      %v2336 = vld [vmem:[%s2049 + $0x18] sm:$0xe]
      %v2337 = vld [vmem:[%s2049 + $0x1c] sm:$0xf]
      %v2338 = vld [vmem:[%s2049 + $0x20] sm:$0x1]
      %v2339 = vld [vmem:[%s2049 + $0x24] sm:$0xe]
      %v2340 = vld [vmem:[%s2049 + $0x28] sm:$0xf]
      %v2341 = vld [vmem:[%s2049 + $0x2c] sm:$0x1]
      %v2342 = vld [vmem:[%s2049 + $0x30] sm:$0xe]
      %v2343 = vld [vmem:[%s2049 + $0x34] sm:$0xf]
      %v2344 = vld [vmem:[%s2049 + $0x38] sm:$0x1]
      %v2345 = vld [vmem:[%s2049 + $0x3c] sm:$0xe]
      %v2346 = vld [vmem:[%s2049 + $0x40] sm:$0xf]
      %v2347 = vld [vmem:[%s2049 + $0x44] sm:$0x1]
      %v2348 = vld [vmem:[%s2049 + $0x48] sm:$0xe]
      %v2349 = vld [vmem:[%s2049 + $0x4c] sm:$0xf]
      %v2350 = vld [vmem:[%s2049 + $0x50] sm:$0x1]
      %v2351 = vld [vmem:[%s2049 + $0x54] sm:$0xe]
      %v2352 = vld [vmem:[%s2049 + $0x58] sm:$0xf]
      %v2353 = vld [vmem:[%s2049 + $0x5c] sm:$0x1]
      %v2378 = vrot.slane %v2330, 5
      %v2379 = vrot.slane %v2378, 4
      %v2380 = vrot.slane %v2331, 5
      %v2381 = vsel %vm1544, %v2379, %v2380
      %v2382 = vrot.slane %v2380, 4
      %v2383 = vrot.slane %v2332, 5
      %v2384 = vsel %vm1544, %v2382, %v2383
      %v2385 = vrot.slane %v2333, 5
      %v2386 = vrot.slane %v2385, 4
      %v2387 = vrot.slane %v2334, 5
      %v2388 = vsel %vm1544, %v2386, %v2387
      %v2389 = vrot.slane %v2387, 4
      %v2390 = vrot.slane %v2335, 5
      %v2391 = vsel %vm1544, %v2389, %v2390
      %v2392 = vrot.slane %v2336, 5
      %v2393 = vrot.slane %v2392, 4
      %v2394 = vrot.slane %v2337, 5
      %v2395 = vsel %vm1544, %v2393, %v2394
      %v2396 = vrot.slane %v2394, 4
      %v2397 = vrot.slane %v2338, 5
      %v2398 = vsel %vm1544, %v2396, %v2397
      %v2399 = vrot.slane %v2339, 5
      %v2400 = vrot.slane %v2399, 4
      %v2401 = vrot.slane %v2340, 5
      %v2402 = vsel %vm1544, %v2400, %v2401
      %v2403 = vrot.slane %v2401, 4
      %v2404 = vrot.slane %v2341, 5
      %v2405 = vsel %vm1544, %v2403, %v2404
      %v2406 = vrot.slane %v2342, 5
      %v2407 = vrot.slane %v2406, 4
      %v2408 = vrot.slane %v2343, 5
      %v2409 = vsel %vm1544, %v2407, %v2408
      %v2410 = vrot.slane %v2408, 4
      %v2411 = vrot.slane %v2344, 5
      %v2412 = vsel %vm1544, %v2410, %v2411
      %v2413 = vrot.slane %v2345, 5
      %v2414 = vrot.slane %v2413, 4
      %v2415 = vrot.slane %v2346, 5
      %v2416 = vsel %vm1544, %v2414, %v2415
      %v2417 = vrot.slane %v2415, 4
      %v2418 = vrot.slane %v2347, 5
      %v2419 = vsel %vm1544, %v2417, %v2418
      %v2420 = vrot.slane %v2348, 5
      %v2421 = vrot.slane %v2420, 4
      %v2422 = vrot.slane %v2349, 5
      %v2423 = vsel %vm1544, %v2421, %v2422
      %v2424 = vrot.slane %v2422, 4
      %v2425 = vrot.slane %v2350, 5
      %v2426 = vsel %vm1544, %v2424, %v2425
      %v2427 = vrot.slane %v2351, 5
      %v2428 = vrot.slane %v2427, 4
      %v2429 = vrot.slane %v2352, 5
      %v2430 = vsel %vm1544, %v2428, %v2429
      %v2431 = vrot.slane %v2429, 4
      %v2432 = vrot.slane %v2353, 5
      %v2433 = vsel %vm1544, %v2431, %v2432
      %2450 = vst [vmem:[#allocation3 + $0x20] sm:$0xf] %v2381
      %2451 = vst [vmem:[#allocation3 + $0x44] sm:$0xf] %v2384
      %2452 = vst [vmem:[#allocation3 + $0x68] sm:$0xf] %v2388
      %2453 = vst [vmem:[#allocation3 + $0x8c] sm:$0xf] %v2391
      %2454 = vst [vmem:[#allocation3 + $0xb0] sm:$0xf] %v2395
      %2455 = vst [vmem:[#allocation3 + $0xd4] sm:$0xf] %v2398
      %2456 = vst [vmem:[#allocation3 + $0xf8] sm:$0xf] %v2402
      %2457 = vst [vmem:[#allocation3 + $0x11c] sm:$0xf] %v2405
      %2458 = vst [vmem:[#allocation3 + $0x140] sm:$0xf] %v2409
      %2459 = vst [vmem:[#allocation3 + $0x164] sm:$0xf] %v2412
      %2460 = vst [vmem:[#allocation3 + $0x188] sm:$0xf] %v2416
      %2461 = vst [vmem:[#allocation3 + $0x1ac] sm:$0xf] %v2419
      %2462 = vst [vmem:[#allocation3 + $0x1d0] sm:$0xf] %v2423
      %2463 = vst [vmem:[#allocation3 + $0x1f4] sm:$0xf] %v2426
      %2464 = vst [vmem:[#allocation3 + $0x218] sm:$0xf] %v2430
      %2465 = vst [vmem:[#allocation3 + $0x23c] sm:$0xf] %v2433
      %v2466 = vld [vmem:[#allocation3] sm:$0xff]
      %v2467 = vld [vmem:[#allocation3 + $0x8] sm:$0xff]
      %v2468 = vld [vmem:[#allocation3 + $0x10] sm:$0xff]
      %v2469 = vld [vmem:[#allocation3 + $0x18] sm:$0xff]
      %v2470 = vld [vmem:[#allocation3 + $0x20] sm:$0xf]
      %v2471 = vld [vmem:[#allocation3 + $0x24] sm:$0xff]
      %v2472 = vld [vmem:[#allocation3 + $0x2c] sm:$0xff]
      %v2473 = vld [vmem:[#allocation3 + $0x34] sm:$0xff]
      %v2474 = vld [vmem:[#allocation3 + $0x3c] sm:$0xff]
      %v2475 = vld [vmem:[#allocation3 + $0x44] sm:$0xf]
      %v2476 = vld [vmem:[#allocation3 + $0x48] sm:$0xff]
      %v2477 = vld [vmem:[#allocation3 + $0x50] sm:$0xff]
      %v2478 = vld [vmem:[#allocation3 + $0x58] sm:$0xff]
      %v2479 = vld [vmem:[#allocation3 + $0x60] sm:$0xff]
      %v2480 = vld [vmem:[#allocation3 + $0x68] sm:$0xf]
      %v2481 = vld [vmem:[#allocation3 + $0x6c] sm:$0xff]
      %v2482 = vld [vmem:[#allocation3 + $0x74] sm:$0xff]
      %v2483 = vld [vmem:[#allocation3 + $0x7c] sm:$0xff]
      %v2484 = vld [vmem:[#allocation3 + $0x84] sm:$0xff]
      %v2485 = vld [vmem:[#allocation3 + $0x8c] sm:$0xf]
      %v2486 = vld [vmem:[#allocation3 + $0x90] sm:$0xff]
      %v2487 = vld [vmem:[#allocation3 + $0x98] sm:$0xff]
      %v2488 = vld [vmem:[#allocation3 + $0xa0] sm:$0xff]
      %v2489 = vld [vmem:[#allocation3 + $0xa8] sm:$0xff]
      %v2490 = vld [vmem:[#allocation3 + $0xb0] sm:$0xf]
      %v2491 = vld [vmem:[#allocation3 + $0xb4] sm:$0xff]
      %v2492 = vld [vmem:[#allocation3 + $0xbc] sm:$0xff]
      %v2493 = vld [vmem:[#allocation3 + $0xc4] sm:$0xff]
      %v2494 = vld [vmem:[#allocation3 + $0xcc] sm:$0xff]
      %v2495 = vld [vmem:[#allocation3 + $0xd4] sm:$0xf]
      %v2496 = vld [vmem:[#allocation3 + $0xd8] sm:$0xff]
      %v2497 = vld [vmem:[#allocation3 + $0xe0] sm:$0xff]
      %v2498 = vld [vmem:[#allocation3 + $0xe8] sm:$0xff]
      %v2499 = vld [vmem:[#allocation3 + $0xf0] sm:$0xff]
      %v2500 = vld [vmem:[#allocation3 + $0xf8] sm:$0xf]
      %v2501 = vld [vmem:[#allocation3 + $0xfc] sm:$0xff]
      %v2502 = vld [vmem:[#allocation3 + $0x104] sm:$0xff]
      %v2503 = vld [vmem:[#allocation3 + $0x10c] sm:$0xff]
      %v2504 = vld [vmem:[#allocation3 + $0x114] sm:$0xff]
      %v2505 = vld [vmem:[#allocation3 + $0x11c] sm:$0xf]
      %v2506 = vld [vmem:[#allocation3 + $0x120] sm:$0xff]
      %v2507 = vld [vmem:[#allocation3 + $0x128] sm:$0xff]
      %v2508 = vld [vmem:[#allocation3 + $0x130] sm:$0xff]
      %v2509 = vld [vmem:[#allocation3 + $0x138] sm:$0xff]
      %v2510 = vld [vmem:[#allocation3 + $0x140] sm:$0xf]
      %v2511 = vld [vmem:[#allocation3 + $0x144] sm:$0xff]
      %v2512 = vld [vmem:[#allocation3 + $0x14c] sm:$0xff]
      %v2513 = vld [vmem:[#allocation3 + $0x154] sm:$0xff]
      %v2514 = vld [vmem:[#allocation3 + $0x15c] sm:$0xff]
      %v2515 = vld [vmem:[#allocation3 + $0x164] sm:$0xf]
      %v2516 = vld [vmem:[#allocation3 + $0x168] sm:$0xff]
      %v2517 = vld [vmem:[#allocation3 + $0x170] sm:$0xff]
      %v2518 = vld [vmem:[#allocation3 + $0x178] sm:$0xff]
      %v2519 = vld [vmem:[#allocation3 + $0x180] sm:$0xff]
      %v2520 = vld [vmem:[#allocation3 + $0x188] sm:$0xf]
      %v2521 = vld [vmem:[#allocation3 + $0x18c] sm:$0xff]
      %v2522 = vld [vmem:[#allocation3 + $0x194] sm:$0xff]
      %v2523 = vld [vmem:[#allocation3 + $0x19c] sm:$0xff]
      %v2524 = vld [vmem:[#allocation3 + $0x1a4] sm:$0xff]
      %v2525 = vld [vmem:[#allocation3 + $0x1ac] sm:$0xf]
      %v2526 = vld [vmem:[#allocation3 + $0x1b0] sm:$0xff]
      %v2527 = vld [vmem:[#allocation3 + $0x1b8] sm:$0xff]
      %v2528 = vld [vmem:[#allocation3 + $0x1c0] sm:$0xff]
      %v2529 = vld [vmem:[#allocation3 + $0x1c8] sm:$0xff]
      %v2530 = vld [vmem:[#allocation3 + $0x1d0] sm:$0xf]
      %v2531 = vld [vmem:[#allocation3 + $0x1d4] sm:$0xff]
      %v2532 = vld [vmem:[#allocation3 + $0x1dc] sm:$0xff]
      %v2533 = vld [vmem:[#allocation3 + $0x1e4] sm:$0xff]
      %v2534 = vld [vmem:[#allocation3 + $0x1ec] sm:$0xff]
      %v2535 = vld [vmem:[#allocation3 + $0x1f4] sm:$0xf]
      %v2536 = vld [vmem:[#allocation3 + $0x1f8] sm:$0xff]
      %v2537 = vld [vmem:[#allocation3 + $0x200] sm:$0xff]
      %v2538 = vld [vmem:[#allocation3 + $0x208] sm:$0xff]
      %v2539 = vld [vmem:[#allocation3 + $0x210] sm:$0xff]
      %v2540 = vld [vmem:[#allocation3 + $0x218] sm:$0xf]
      %v2541 = vld [vmem:[#allocation3 + $0x21c] sm:$0xff]
      %v2542 = vld [vmem:[#allocation3 + $0x224] sm:$0xff]
      %v2543 = vld [vmem:[#allocation3 + $0x22c] sm:$0xff]
      %v2544 = vld [vmem:[#allocation3 + $0x234] sm:$0xff]
      %v2545 = vld [vmem:[#allocation3 + $0x23c] sm:$0xf]
      %v2546 = vld [vmem:[%s4] sm:$0xf]
      %v2547 = vld [vmem:[%s4 + $0x4] sm:$0xf]
      %v2548 = vld [vmem:[%s4 + $0x8] sm:$0xf]
      %v2549 = vld [vmem:[%s4 + $0xc] sm:$0xf]
      %v2550 = vld [vmem:[%s4 + $0x10] sm:$0xf]
      %v2551 = vld [vmem:[%s4 + $0x14] sm:$0xf]
      %v2552 = vld [vmem:[%s4 + $0x18] sm:$0xf]
      %v2553 = vld [vmem:[%s4 + $0x1c] sm:$0xf]
      %v2554 = vld [vmem:[%s4 + $0x20] sm:$0xf]
      %v2555 = vld [vmem:[%s4 + $0x24] sm:$0xf]
      %v2556 = vld [vmem:[%s4 + $0x28] sm:$0xf]
      %v2557 = vld [vmem:[%s4 + $0x2c] sm:$0xf]
      %v2558 = vld [vmem:[%s4 + $0x30] sm:$0xf]
      %v2559 = vld [vmem:[%s4 + $0x34] sm:$0xf]
      %v2560 = vld [vmem:[%s4 + $0x38] sm:$0xf]
      %v2561 = vld [vmem:[%s4 + $0x3c] sm:$0xf]
      %v2562 = vld [vmem:[%s4 + $0x40] sm:$0xf]
      %v2563 = vld [vmem:[%s4 + $0x44] sm:$0xf]
      %v2564 = vld [vmem:[%s4 + $0x48] sm:$0xf]
      %v2565 = vld [vmem:[%s4 + $0x4c] sm:$0xf]
      %v2566 = vld [vmem:[%s4 + $0x50] sm:$0xf]
      %v2567 = vld [vmem:[%s4 + $0x54] sm:$0xf]
      %v2568 = vld [vmem:[%s4 + $0x58] sm:$0xf]
      %v2569 = vld [vmem:[%s4 + $0x5c] sm:$0xf]
      %v2570 = vld [vmem:[%s4 + $0x60] sm:$0xf]
      %v2571 = vld [vmem:[%s4 + $0x64] sm:$0xf]
      %v2572 = vld [vmem:[%s4 + $0x68] sm:$0xf]
      %v2573 = vld [vmem:[%s4 + $0x6c] sm:$0xf]
      %v2574 = vld [vmem:[%s4 + $0x70] sm:$0xf]
      %v2575 = vld [vmem:[%s4 + $0x74] sm:$0xf]
      %v2576 = vld [vmem:[%s4 + $0x78] sm:$0xf]
      %v2577 = vld [vmem:[%s4 + $0x7c] sm:$0xf]
      %v2578 = vld [vmem:[%s4 + $0x80] sm:$0xf]
      %v2579 = vld [vmem:[%s4 + $0x84] sm:$0xf]
      %v2580 = vld [vmem:[%s4 + $0x88] sm:$0xf]
      %v2581 = vld [vmem:[%s4 + $0x8c] sm:$0xf]
      %v2582 = vld [vmem:[%s4 + $0x90] sm:$0xf]
      %v2583 = vld [vmem:[%s4 + $0x94] sm:$0xf]
      %v2584 = vld [vmem:[%s4 + $0x98] sm:$0xf]
      %v2585 = vld [vmem:[%s4 + $0x9c] sm:$0xf]
      %v2586 = vld [vmem:[%s4 + $0xa0] sm:$0xf]
      %v2587 = vld [vmem:[%s4 + $0xa4] sm:$0xf]
      %v2588 = vld [vmem:[%s4 + $0xa8] sm:$0xf]
      %v2589 = vld [vmem:[%s4 + $0xac] sm:$0xf]
      %v2590 = vld [vmem:[%s4 + $0xb0] sm:$0xf]
      %v2591 = vld [vmem:[%s4 + $0xb4] sm:$0xf]
      %v2592 = vld [vmem:[%s4 + $0xb8] sm:$0xf]
      %v2593 = vld [vmem:[%s4 + $0xbc] sm:$0xf]
      %v2594 = vld [vmem:[%s4 + $0xc0] sm:$0xf]
      %v2595 = vld [vmem:[%s4 + $0xc4] sm:$0xf]
      %v2596 = vld [vmem:[%s4 + $0xc8] sm:$0xf]
      %v2597 = vld [vmem:[%s4 + $0xcc] sm:$0xf]
      %v2598 = vld [vmem:[%s4 + $0xd0] sm:$0xf]
      %v2599 = vld [vmem:[%s4 + $0xd4] sm:$0xf]
      %v2600 = vld [vmem:[%s4 + $0xd8] sm:$0xf]
      %v2601 = vld [vmem:[%s4 + $0xdc] sm:$0xf]
      %v2602 = vld [vmem:[%s4 + $0xe0] sm:$0xf]
      %v2603 = vld [vmem:[%s4 + $0xe4] sm:$0xf]
      %v2604 = vld [vmem:[%s4 + $0xe8] sm:$0xf]
      %v2605 = vld [vmem:[%s4 + $0xec] sm:$0xf]
      %v2606 = vld [vmem:[%s4 + $0xf0] sm:$0xf]
      %v2607 = vld [vmem:[%s4 + $0xf4] sm:$0xf]
      %v2608 = vld [vmem:[%s4 + $0xf8] sm:$0xf]
      %v2609 = vld [vmem:[%s4 + $0xfc] sm:$0xf]
      %v2610 = vld [vmem:[%s4 + $0x100] sm:$0xf]
      %v2611 = vld [vmem:[%s4 + $0x104] sm:$0xf]
      %v2612 = vld [vmem:[%s4 + $0x108] sm:$0xf]
      %v2613 = vld [vmem:[%s4 + $0x10c] sm:$0xf]
      %v2614 = vld [vmem:[%s4 + $0x110] sm:$0xf]
      %v2615 = vld [vmem:[%s4 + $0x114] sm:$0xf]
      %v2616 = vld [vmem:[%s4 + $0x118] sm:$0xf]
      %v2617 = vld [vmem:[%s4 + $0x11c] sm:$0xf]
      %v2618 = vld [vmem:[%s4 + $0x120] sm:$0xf]
      %v2619 = vld [vmem:[%s4 + $0x124] sm:$0xf]
      %v2620 = vld [vmem:[%s4 + $0x128] sm:$0xf]
      %v2621 = vld [vmem:[%s4 + $0x12c] sm:$0xf]
      %v2622 = vld [vmem:[%s4 + $0x130] sm:$0xf]
      %v2623 = vld [vmem:[%s4 + $0x134] sm:$0xf]
      %v2624 = vld [vmem:[%s4 + $0x138] sm:$0xf]
      %v2625 = vld [vmem:[%s4 + $0x13c] sm:$0xf]
      %v2626 = vld [vmem:[%s4 + $0x140] sm:$0xf]
      %v2627 = vld [vmem:[%s4 + $0x144] sm:$0xf]
      %v2628 = vld [vmem:[%s4 + $0x148] sm:$0xf]
      %v2629 = vld [vmem:[%s4 + $0x14c] sm:$0xf]
      %v2630 = vld [vmem:[%s4 + $0x150] sm:$0xf]
      %v2631 = vld [vmem:[%s4 + $0x154] sm:$0xf]
      %v2632 = vld [vmem:[%s4 + $0x158] sm:$0xf]
      %v2633 = vld [vmem:[%s4 + $0x15c] sm:$0xf]
      %v2634 = vld [vmem:[%s4 + $0x160] sm:$0xf]
      %v2635 = vld [vmem:[%s4 + $0x164] sm:$0xf]
      %v2636 = vld [vmem:[%s4 + $0x168] sm:$0xf]
      %v2637 = vld [vmem:[%s4 + $0x16c] sm:$0xf]
      %v2638 = vld [vmem:[%s4 + $0x170] sm:$0xf]
      %v2639 = vld [vmem:[%s4 + $0x174] sm:$0xf]
      %v2640 = vld [vmem:[%s4 + $0x178] sm:$0xf]
      %v2641 = vld [vmem:[%s4 + $0x17c] sm:$0xf]
      %v2642 = vld [vmem:[%s4 + $0x180] sm:$0xf]
      %v2643 = vld [vmem:[%s4 + $0x184] sm:$0xf]
      %v2644 = vld [vmem:[%s4 + $0x188] sm:$0xf]
      %v2645 = vld [vmem:[%s4 + $0x18c] sm:$0xf]
      %v2646 = vld [vmem:[%s4 + $0x190] sm:$0xf]
      %v2647 = vld [vmem:[%s4 + $0x194] sm:$0xf]
      %v2648 = vld [vmem:[%s4 + $0x198] sm:$0xf]
      %v2649 = vld [vmem:[%s4 + $0x19c] sm:$0xf]
      %v2650 = vld [vmem:[%s4 + $0x1a0] sm:$0xf]
      %v2651 = vld [vmem:[%s4 + $0x1a4] sm:$0xf]
      %v2652 = vld [vmem:[%s4 + $0x1a8] sm:$0xf]
      %v2653 = vld [vmem:[%s4 + $0x1ac] sm:$0xf]
      %v2654 = vld [vmem:[%s4 + $0x1b0] sm:$0xf]
      %v2655 = vld [vmem:[%s4 + $0x1b4] sm:$0xf]
      %v2656 = vld [vmem:[%s4 + $0x1b8] sm:$0xf]
      %v2657 = vld [vmem:[%s4 + $0x1bc] sm:$0xf]
      %v2658 = vld [vmem:[%s4 + $0x1c0] sm:$0xf]
      %v2659 = vld [vmem:[%s4 + $0x1c4] sm:$0xf]
      %v2660 = vld [vmem:[%s4 + $0x1c8] sm:$0xf]
      %v2661 = vld [vmem:[%s4 + $0x1cc] sm:$0xf]
      %v2662 = vld [vmem:[%s4 + $0x1d0] sm:$0xf]
      %v2663 = vld [vmem:[%s4 + $0x1d4] sm:$0xf]
      %v2664 = vld [vmem:[%s4 + $0x1d8] sm:$0xf]
      %v2665 = vld [vmem:[%s4 + $0x1dc] sm:$0xf]
      %v2666 = vld [vmem:[%s4 + $0x1e0] sm:$0xf]
      %v2667 = vld [vmem:[%s4 + $0x1e4] sm:$0xf]
      %v2668 = vld [vmem:[%s4 + $0x1e8] sm:$0xf]
      %v2669 = vld [vmem:[%s4 + $0x1ec] sm:$0xf]
      %v2670 = vld [vmem:[%s4 + $0x1f0] sm:$0xf]
      %v2671 = vld [vmem:[%s4 + $0x1f4] sm:$0xf]
      %v2672 = vld [vmem:[%s4 + $0x1f8] sm:$0xf]
      %v2673 = vld [vmem:[%s4 + $0x1fc] sm:$0xf]
      %v2674 = vld [vmem:[%s4 + $0x200] sm:$0xf]
      %v2675 = vld [vmem:[%s4 + $0x204] sm:$0xf]
      %v2676 = vld [vmem:[%s4 + $0x208] sm:$0xf]
      %v2677 = vld [vmem:[%s4 + $0x20c] sm:$0xf]
      %v2678 = vld [vmem:[%s4 + $0x210] sm:$0xf]
      %v2679 = vld [vmem:[%s4 + $0x214] sm:$0xf]
      %v2680 = vld [vmem:[%s4 + $0x218] sm:$0xf]
      %v2681 = vld [vmem:[%s4 + $0x21c] sm:$0xf]
      %v2682 = vld [vmem:[%s4 + $0x220] sm:$0xf]
      %v2683 = vld [vmem:[%s4 + $0x224] sm:$0xf]
      %v2684 = vld [vmem:[%s4 + $0x228] sm:$0xf]
      %v2685 = vld [vmem:[%s4 + $0x22c] sm:$0xf]
      %v2686 = vld [vmem:[%s4 + $0x230] sm:$0xf]
      %v2687 = vld [vmem:[%s4 + $0x234] sm:$0xf]
      %v2688 = vld [vmem:[%s4 + $0x238] sm:$0xf]
      %v2689 = vld [vmem:[%s4 + $0x23c] sm:$0xf]
      %v2770 = vunpack.c.l.b16 %v2466
      %v2771 = vunpack.c.h.b16 %v2466
      %v2772 = vunpack.c.l.b16 %v2467
      %v2773 = vunpack.c.h.b16 %v2467
      %v2774 = vunpack.c.l.b16 %v2468
      %v2775 = vunpack.c.h.b16 %v2468
      %v2776 = vunpack.c.l.b16 %v2469
      %v2777 = vunpack.c.h.b16 %v2469
      %v2778 = vunpack.c.l.b16 %v2470
      %v2779 = vunpack.c.l.b16 %v2471
      %v2780 = vunpack.c.h.b16 %v2471
      %v2781 = vunpack.c.l.b16 %v2472
      %v2782 = vunpack.c.h.b16 %v2472
      %v2783 = vunpack.c.l.b16 %v2473
      %v2784 = vunpack.c.h.b16 %v2473
      %v2785 = vunpack.c.l.b16 %v2474
      %v2786 = vunpack.c.h.b16 %v2474
      %v2787 = vunpack.c.l.b16 %v2475
      %v2788 = vunpack.c.l.b16 %v2476
      %v2789 = vunpack.c.h.b16 %v2476
      %v2790 = vunpack.c.l.b16 %v2477
      %v2791 = vunpack.c.h.b16 %v2477
      %v2792 = vunpack.c.l.b16 %v2478
      %v2793 = vunpack.c.h.b16 %v2478
      %v2794 = vunpack.c.l.b16 %v2479
      %v2795 = vunpack.c.h.b16 %v2479
      %v2796 = vunpack.c.l.b16 %v2480
      %v2797 = vunpack.c.l.b16 %v2481
      %v2798 = vunpack.c.h.b16 %v2481
      %v2799 = vunpack.c.l.b16 %v2482
      %v2800 = vunpack.c.h.b16 %v2482
      %v2801 = vunpack.c.l.b16 %v2483
      %v2802 = vunpack.c.h.b16 %v2483
      %v2803 = vunpack.c.l.b16 %v2484
      %v2804 = vunpack.c.h.b16 %v2484
      %v2805 = vunpack.c.l.b16 %v2485
      %v2806 = vunpack.c.l.b16 %v2486
      %v2807 = vunpack.c.h.b16 %v2486
      %v2808 = vunpack.c.l.b16 %v2487
      %v2809 = vunpack.c.h.b16 %v2487
      %v2810 = vunpack.c.l.b16 %v2488
      %v2811 = vunpack.c.h.b16 %v2488
      %v2812 = vunpack.c.l.b16 %v2489
      %v2813 = vunpack.c.h.b16 %v2489
      %v2814 = vunpack.c.l.b16 %v2490
      %v2815 = vunpack.c.l.b16 %v2491
      %v2816 = vunpack.c.h.b16 %v2491
      %v2817 = vunpack.c.l.b16 %v2492
      %v2818 = vunpack.c.h.b16 %v2492
      %v2819 = vunpack.c.l.b16 %v2493
      %v2820 = vunpack.c.h.b16 %v2493
      %v2821 = vunpack.c.l.b16 %v2494
      %v2822 = vunpack.c.h.b16 %v2494
      %v2823 = vunpack.c.l.b16 %v2495
      %v2824 = vunpack.c.l.b16 %v2496
      %v2825 = vunpack.c.h.b16 %v2496
      %v2826 = vunpack.c.l.b16 %v2497
      %v2827 = vunpack.c.h.b16 %v2497
      %v2828 = vunpack.c.l.b16 %v2498
      %v2829 = vunpack.c.h.b16 %v2498
      %v2830 = vunpack.c.l.b16 %v2499
      %v2831 = vunpack.c.h.b16 %v2499
      %v2832 = vunpack.c.l.b16 %v2500
      %v2833 = vunpack.c.l.b16 %v2501
      %v2834 = vunpack.c.h.b16 %v2501
      %v2835 = vunpack.c.l.b16 %v2502
      %v2836 = vunpack.c.h.b16 %v2502
      %v2837 = vunpack.c.l.b16 %v2503
      %v2838 = vunpack.c.h.b16 %v2503
      %v2839 = vunpack.c.l.b16 %v2504
      %v2840 = vunpack.c.h.b16 %v2504
      %v2841 = vunpack.c.l.b16 %v2505
      %v2842 = vunpack.c.l.b16 %v2506
      %v2843 = vunpack.c.h.b16 %v2506
      %v2844 = vunpack.c.l.b16 %v2507
      %v2845 = vunpack.c.h.b16 %v2507
      %v2846 = vunpack.c.l.b16 %v2508
      %v2847 = vunpack.c.h.b16 %v2508
      %v2848 = vunpack.c.l.b16 %v2509
      %v2849 = vunpack.c.h.b16 %v2509
      %v2850 = vunpack.c.l.b16 %v2510
      %v2851 = vunpack.c.l.b16 %v2511
      %v2852 = vunpack.c.h.b16 %v2511
      %v2853 = vunpack.c.l.b16 %v2512
      %v2854 = vunpack.c.h.b16 %v2512
      %v2855 = vunpack.c.l.b16 %v2513
      %v2856 = vunpack.c.h.b16 %v2513
      %v2857 = vunpack.c.l.b16 %v2514
      %v2858 = vunpack.c.h.b16 %v2514
      %v2859 = vunpack.c.l.b16 %v2515
      %v2860 = vunpack.c.l.b16 %v2516
      %v2861 = vunpack.c.h.b16 %v2516
      %v2862 = vunpack.c.l.b16 %v2517
      %v2863 = vunpack.c.h.b16 %v2517
      %v2864 = vunpack.c.l.b16 %v2518
      %v2865 = vunpack.c.h.b16 %v2518
      %v2866 = vunpack.c.l.b16 %v2519
      %v2867 = vunpack.c.h.b16 %v2519
      %v2868 = vunpack.c.l.b16 %v2520
      %v2869 = vunpack.c.l.b16 %v2521
      %v2870 = vunpack.c.h.b16 %v2521
      %v2871 = vunpack.c.l.b16 %v2522
      %v2872 = vunpack.c.h.b16 %v2522
      %v2873 = vunpack.c.l.b16 %v2523
      %v2874 = vunpack.c.h.b16 %v2523
      %v2875 = vunpack.c.l.b16 %v2524
      %v2876 = vunpack.c.h.b16 %v2524
      %v2877 = vunpack.c.l.b16 %v2525
      %v2878 = vunpack.c.l.b16 %v2526
      %v2879 = vunpack.c.h.b16 %v2526
      %v2880 = vunpack.c.l.b16 %v2527
      %v2881 = vunpack.c.h.b16 %v2527
      %v2882 = vunpack.c.l.b16 %v2528
      %v2883 = vunpack.c.h.b16 %v2528
      %v2884 = vunpack.c.l.b16 %v2529
      %v2885 = vunpack.c.h.b16 %v2529
      %v2886 = vunpack.c.l.b16 %v2530
      %v2887 = vunpack.c.l.b16 %v2531
      %v2888 = vunpack.c.h.b16 %v2531
      %v2889 = vunpack.c.l.b16 %v2532
      %v2890 = vunpack.c.h.b16 %v2532
      %v2891 = vunpack.c.l.b16 %v2533
      %v2892 = vunpack.c.h.b16 %v2533
      %v2893 = vunpack.c.l.b16 %v2534
      %v2894 = vunpack.c.h.b16 %v2534
      %v2895 = vunpack.c.l.b16 %v2535
      %v2896 = vunpack.c.l.b16 %v2536
      %v2897 = vunpack.c.h.b16 %v2536
      %v2898 = vunpack.c.l.b16 %v2537
      %v2899 = vunpack.c.h.b16 %v2537
      %v2900 = vunpack.c.l.b16 %v2538
      %v2901 = vunpack.c.h.b16 %v2538
      %v2902 = vunpack.c.l.b16 %v2539
      %v2903 = vunpack.c.h.b16 %v2539
      %v2904 = vunpack.c.l.b16 %v2540
      %v2905 = vunpack.c.l.b16 %v2541
      %v2906 = vunpack.c.h.b16 %v2541
      %v2907 = vunpack.c.l.b16 %v2542
      %v2908 = vunpack.c.h.b16 %v2542
      %v2909 = vunpack.c.l.b16 %v2543
      %v2910 = vunpack.c.h.b16 %v2543
      %v2911 = vunpack.c.l.b16 %v2544
      %v2912 = vunpack.c.h.b16 %v2544
      %v2913 = vunpack.c.l.b16 %v2545
      %v2914 = vpack.c.b16 %v2779, %v2770
      %v2915 = vpack.c.b16 %v2780, %v2771
      %v2916 = vpack.c.b16 %v2781, %v2772
      %v2917 = vpack.c.b16 %v2782, %v2773
      %v2918 = vpack.c.b16 %v2783, %v2774
      %v2919 = vpack.c.b16 %v2784, %v2775
      %v2920 = vpack.c.b16 %v2785, %v2776
      %v2921 = vpack.c.b16 %v2786, %v2777
      %v2922 = vpack.c.b16 %v2787, %v2778
      %v2923 = vpack.c.b16 %v2797, %v2788
      %v2924 = vpack.c.b16 %v2798, %v2789
      %v2925 = vpack.c.b16 %v2799, %v2790
      %v2926 = vpack.c.b16 %v2800, %v2791
      %v2927 = vpack.c.b16 %v2801, %v2792
      %v2928 = vpack.c.b16 %v2802, %v2793
      %v2929 = vpack.c.b16 %v2803, %v2794
      %v2930 = vpack.c.b16 %v2804, %v2795
      %v2931 = vpack.c.b16 %v2805, %v2796
      %v2932 = vpack.c.b16 %v2815, %v2806
      %v2933 = vpack.c.b16 %v2816, %v2807
      %v2934 = vpack.c.b16 %v2817, %v2808
      %v2935 = vpack.c.b16 %v2818, %v2809
      %v2936 = vpack.c.b16 %v2819, %v2810
      %v2937 = vpack.c.b16 %v2820, %v2811
      %v2938 = vpack.c.b16 %v2821, %v2812
      %v2939 = vpack.c.b16 %v2822, %v2813
      %v2940 = vpack.c.b16 %v2823, %v2814
      %v2941 = vpack.c.b16 %v2833, %v2824
      %v2942 = vpack.c.b16 %v2834, %v2825
      %v2943 = vpack.c.b16 %v2835, %v2826
      %v2944 = vpack.c.b16 %v2836, %v2827
      %v2945 = vpack.c.b16 %v2837, %v2828
      %v2946 = vpack.c.b16 %v2838, %v2829
      %v2947 = vpack.c.b16 %v2839, %v2830
      %v2948 = vpack.c.b16 %v2840, %v2831
      %v2949 = vpack.c.b16 %v2841, %v2832
      %v2950 = vpack.c.b16 %v2851, %v2842
      %v2951 = vpack.c.b16 %v2852, %v2843
      %v2952 = vpack.c.b16 %v2853, %v2844
      %v2953 = vpack.c.b16 %v2854, %v2845
      %v2954 = vpack.c.b16 %v2855, %v2846
      %v2955 = vpack.c.b16 %v2856, %v2847
      %v2956 = vpack.c.b16 %v2857, %v2848
      %v2957 = vpack.c.b16 %v2858, %v2849
      %v2958 = vpack.c.b16 %v2859, %v2850
      %v2959 = vpack.c.b16 %v2869, %v2860
      %v2960 = vpack.c.b16 %v2870, %v2861
      %v2961 = vpack.c.b16 %v2871, %v2862
      %v2962 = vpack.c.b16 %v2872, %v2863
      %v2963 = vpack.c.b16 %v2873, %v2864
      %v2964 = vpack.c.b16 %v2874, %v2865
      %v2965 = vpack.c.b16 %v2875, %v2866
      %v2966 = vpack.c.b16 %v2876, %v2867
      %v2967 = vpack.c.b16 %v2877, %v2868
      %v2968 = vpack.c.b16 %v2887, %v2878
      %v2969 = vpack.c.b16 %v2888, %v2879
      %v2970 = vpack.c.b16 %v2889, %v2880
      %v2971 = vpack.c.b16 %v2890, %v2881
      %v2972 = vpack.c.b16 %v2891, %v2882
      %v2973 = vpack.c.b16 %v2892, %v2883
      %v2974 = vpack.c.b16 %v2893, %v2884
      %v2975 = vpack.c.b16 %v2894, %v2885
      %v2976 = vpack.c.b16 %v2895, %v2886
      %v2977 = vpack.c.b16 %v2905, %v2896
      %v2978 = vpack.c.b16 %v2906, %v2897
      %v2979 = vpack.c.b16 %v2907, %v2898
      %v2980 = vpack.c.b16 %v2908, %v2899
      %v2981 = vpack.c.b16 %v2909, %v2900
      %v2982 = vpack.c.b16 %v2910, %v2901
      %v2983 = vpack.c.b16 %v2911, %v2902
      %v2984 = vpack.c.b16 %v2912, %v2903
      %v2985 = vpack.c.b16 %v2913, %v2904
      %v3202 = vunpack.c.l.b16 %v2546
      %v3203 = vunpack.c.l.b16 %v2547
      %v3204 = vunpack.c.l.b16 %v2548
      %v3205 = vunpack.c.l.b16 %v2549
      %v3206 = vunpack.c.l.b16 %v2550
      %v3207 = vunpack.c.l.b16 %v2551
      %v3208 = vunpack.c.l.b16 %v2552
      %v3209 = vunpack.c.l.b16 %v2553
      %v3210 = vunpack.c.l.b16 %v2554
      %v3211 = vunpack.c.l.b16 %v2555
      %v3212 = vunpack.c.l.b16 %v2556
      %v3213 = vunpack.c.l.b16 %v2557
      %v3214 = vunpack.c.l.b16 %v2558
      %v3215 = vunpack.c.l.b16 %v2559
      %v3216 = vunpack.c.l.b16 %v2560
      %v3217 = vunpack.c.l.b16 %v2561
      %v3218 = vunpack.c.l.b16 %v2562
      %v3219 = vunpack.c.l.b16 %v2563
      %v3220 = vunpack.c.l.b16 %v2564
      %v3221 = vunpack.c.l.b16 %v2565
      %v3222 = vunpack.c.l.b16 %v2566
      %v3223 = vunpack.c.l.b16 %v2567
      %v3224 = vunpack.c.l.b16 %v2568
      %v3225 = vunpack.c.l.b16 %v2569
      %v3226 = vunpack.c.l.b16 %v2570
      %v3227 = vunpack.c.l.b16 %v2571
      %v3228 = vunpack.c.l.b16 %v2572
      %v3229 = vunpack.c.l.b16 %v2573
      %v3230 = vunpack.c.l.b16 %v2574
      %v3231 = vunpack.c.l.b16 %v2575
      %v3232 = vunpack.c.l.b16 %v2576
      %v3233 = vunpack.c.l.b16 %v2577
      %v3234 = vunpack.c.l.b16 %v2578
      %v3235 = vunpack.c.l.b16 %v2579
      %v3236 = vunpack.c.l.b16 %v2580
      %v3237 = vunpack.c.l.b16 %v2581
      %v3238 = vunpack.c.l.b16 %v2582
      %v3239 = vunpack.c.l.b16 %v2583
      %v3240 = vunpack.c.l.b16 %v2584
      %v3241 = vunpack.c.l.b16 %v2585
      %v3242 = vunpack.c.l.b16 %v2586
      %v3243 = vunpack.c.l.b16 %v2587
      %v3244 = vunpack.c.l.b16 %v2588
      %v3245 = vunpack.c.l.b16 %v2589
      %v3246 = vunpack.c.l.b16 %v2590
      %v3247 = vunpack.c.l.b16 %v2591
      %v3248 = vunpack.c.l.b16 %v2592
      %v3249 = vunpack.c.l.b16 %v2593
      %v3250 = vunpack.c.l.b16 %v2594
      %v3251 = vunpack.c.l.b16 %v2595
      %v3252 = vunpack.c.l.b16 %v2596
      %v3253 = vunpack.c.l.b16 %v2597
      %v3254 = vunpack.c.l.b16 %v2598
      %v3255 = vunpack.c.l.b16 %v2599
      %v3256 = vunpack.c.l.b16 %v2600
      %v3257 = vunpack.c.l.b16 %v2601
      %v3258 = vunpack.c.l.b16 %v2602
      %v3259 = vunpack.c.l.b16 %v2603
      %v3260 = vunpack.c.l.b16 %v2604
      %v3261 = vunpack.c.l.b16 %v2605
      %v3262 = vunpack.c.l.b16 %v2606
      %v3263 = vunpack.c.l.b16 %v2607
      %v3264 = vunpack.c.l.b16 %v2608
      %v3265 = vunpack.c.l.b16 %v2609
      %v3266 = vunpack.c.l.b16 %v2610
      %v3267 = vunpack.c.l.b16 %v2611
      %v3268 = vunpack.c.l.b16 %v2612
      %v3269 = vunpack.c.l.b16 %v2613
      %v3270 = vunpack.c.l.b16 %v2614
      %v3271 = vunpack.c.l.b16 %v2615
      %v3272 = vunpack.c.l.b16 %v2616
      %v3273 = vunpack.c.l.b16 %v2617
      %v3274 = vunpack.c.l.b16 %v2618
      %v3275 = vunpack.c.l.b16 %v2619
      %v3276 = vunpack.c.l.b16 %v2620
      %v3277 = vunpack.c.l.b16 %v2621
      %v3278 = vunpack.c.l.b16 %v2622
      %v3279 = vunpack.c.l.b16 %v2623
      %v3280 = vunpack.c.l.b16 %v2624
      %v3281 = vunpack.c.l.b16 %v2625
      %v3282 = vunpack.c.l.b16 %v2626
      %v3283 = vunpack.c.l.b16 %v2627
      %v3284 = vunpack.c.l.b16 %v2628
      %v3285 = vunpack.c.l.b16 %v2629
      %v3286 = vunpack.c.l.b16 %v2630
      %v3287 = vunpack.c.l.b16 %v2631
      %v3288 = vunpack.c.l.b16 %v2632
      %v3289 = vunpack.c.l.b16 %v2633
      %v3290 = vunpack.c.l.b16 %v2634
      %v3291 = vunpack.c.l.b16 %v2635
      %v3292 = vunpack.c.l.b16 %v2636
      %v3293 = vunpack.c.l.b16 %v2637
      %v3294 = vunpack.c.l.b16 %v2638
      %v3295 = vunpack.c.l.b16 %v2639
      %v3296 = vunpack.c.l.b16 %v2640
      %v3297 = vunpack.c.l.b16 %v2641
      %v3298 = vunpack.c.l.b16 %v2642
      %v3299 = vunpack.c.l.b16 %v2643
      %v3300 = vunpack.c.l.b16 %v2644
      %v3301 = vunpack.c.l.b16 %v2645
      %v3302 = vunpack.c.l.b16 %v2646
      %v3303 = vunpack.c.l.b16 %v2647
      %v3304 = vunpack.c.l.b16 %v2648
      %v3305 = vunpack.c.l.b16 %v2649
      %v3306 = vunpack.c.l.b16 %v2650
      %v3307 = vunpack.c.l.b16 %v2651
      %v3308 = vunpack.c.l.b16 %v2652
      %v3309 = vunpack.c.l.b16 %v2653
      %v3310 = vunpack.c.l.b16 %v2654
      %v3311 = vunpack.c.l.b16 %v2655
      %v3312 = vunpack.c.l.b16 %v2656
      %v3313 = vunpack.c.l.b16 %v2657
      %v3314 = vunpack.c.l.b16 %v2658
      %v3315 = vunpack.c.l.b16 %v2659
      %v3316 = vunpack.c.l.b16 %v2660
      %v3317 = vunpack.c.l.b16 %v2661
      %v3318 = vunpack.c.l.b16 %v2662
      %v3319 = vunpack.c.l.b16 %v2663
      %v3320 = vunpack.c.l.b16 %v2664
      %v3321 = vunpack.c.l.b16 %v2665
      %v3322 = vunpack.c.l.b16 %v2666
      %v3323 = vunpack.c.l.b16 %v2667
      %v3324 = vunpack.c.l.b16 %v2668
      %v3325 = vunpack.c.l.b16 %v2669
      %v3326 = vunpack.c.l.b16 %v2670
      %v3327 = vunpack.c.l.b16 %v2671
      %v3328 = vunpack.c.l.b16 %v2672
      %v3329 = vunpack.c.l.b16 %v2673
      %v3330 = vunpack.c.l.b16 %v2674
      %v3331 = vunpack.c.l.b16 %v2675
      %v3332 = vunpack.c.l.b16 %v2676
      %v3333 = vunpack.c.l.b16 %v2677
      %v3334 = vunpack.c.l.b16 %v2678
      %v3335 = vunpack.c.l.b16 %v2679
      %v3336 = vunpack.c.l.b16 %v2680
      %v3337 = vunpack.c.l.b16 %v2681
      %v3338 = vunpack.c.l.b16 %v2682
      %v3339 = vunpack.c.l.b16 %v2683
      %v3340 = vunpack.c.l.b16 %v2684
      %v3341 = vunpack.c.l.b16 %v2685
      %v3342 = vunpack.c.l.b16 %v2686
      %v3343 = vunpack.c.l.b16 %v2687
      %v3344 = vunpack.c.l.b16 %v2688
      %v3345 = vunpack.c.l.b16 %v2689
      %v3346 = vpack.c.b16 %v3203, %v3202
      %v3347 = vpack.c.b16 %v3205, %v3204
      %v3348 = vpack.c.b16 %v3207, %v3206
      %v3349 = vpack.c.b16 %v3209, %v3208
      %v3350 = vpack.c.b16 %v3211, %v3210
      %v3351 = vpack.c.b16 %v3213, %v3212
      %v3352 = vpack.c.b16 %v3215, %v3214
      %v3353 = vpack.c.b16 %v3217, %v3216
      %v3354 = vpack.c.b16 %v3219, %v3218
      %v3355 = vpack.c.b16 %v3221, %v3220
      %v3356 = vpack.c.b16 %v3223, %v3222
      %v3357 = vpack.c.b16 %v3225, %v3224
      %v3358 = vpack.c.b16 %v3227, %v3226
      %v3359 = vpack.c.b16 %v3229, %v3228
      %v3360 = vpack.c.b16 %v3231, %v3230
      %v3361 = vpack.c.b16 %v3233, %v3232
      %v3362 = vpack.c.b16 %v3235, %v3234
      %v3363 = vpack.c.b16 %v3237, %v3236
      %v3364 = vpack.c.b16 %v3239, %v3238
      %v3365 = vpack.c.b16 %v3241, %v3240
      %v3366 = vpack.c.b16 %v3243, %v3242
      %v3367 = vpack.c.b16 %v3245, %v3244
      %v3368 = vpack.c.b16 %v3247, %v3246
      %v3369 = vpack.c.b16 %v3249, %v3248
      %v3370 = vpack.c.b16 %v3251, %v3250
      %v3371 = vpack.c.b16 %v3253, %v3252
      %v3372 = vpack.c.b16 %v3255, %v3254
      %v3373 = vpack.c.b16 %v3257, %v3256
      %v3374 = vpack.c.b16 %v3259, %v3258
      %v3375 = vpack.c.b16 %v3261, %v3260
      %v3376 = vpack.c.b16 %v3263, %v3262
      %v3377 = vpack.c.b16 %v3265, %v3264
      %v3378 = vpack.c.b16 %v3267, %v3266
      %v3379 = vpack.c.b16 %v3269, %v3268
      %v3380 = vpack.c.b16 %v3271, %v3270
      %v3381 = vpack.c.b16 %v3273, %v3272
      %v3382 = vpack.c.b16 %v3275, %v3274
      %v3383 = vpack.c.b16 %v3277, %v3276
      %v3384 = vpack.c.b16 %v3279, %v3278
      %v3385 = vpack.c.b16 %v3281, %v3280
      %v3386 = vpack.c.b16 %v3283, %v3282
      %v3387 = vpack.c.b16 %v3285, %v3284
      %v3388 = vpack.c.b16 %v3287, %v3286
      %v3389 = vpack.c.b16 %v3289, %v3288
      %v3390 = vpack.c.b16 %v3291, %v3290
      %v3391 = vpack.c.b16 %v3293, %v3292
      %v3392 = vpack.c.b16 %v3295, %v3294
      %v3393 = vpack.c.b16 %v3297, %v3296
      %v3394 = vpack.c.b16 %v3299, %v3298
      %v3395 = vpack.c.b16 %v3301, %v3300
      %v3396 = vpack.c.b16 %v3303, %v3302
      %v3397 = vpack.c.b16 %v3305, %v3304
      %v3398 = vpack.c.b16 %v3307, %v3306
      %v3399 = vpack.c.b16 %v3309, %v3308
      %v3400 = vpack.c.b16 %v3311, %v3310
      %v3401 = vpack.c.b16 %v3313, %v3312
      %v3402 = vpack.c.b16 %v3315, %v3314
      %v3403 = vpack.c.b16 %v3317, %v3316
      %v3404 = vpack.c.b16 %v3319, %v3318
      %v3405 = vpack.c.b16 %v3321, %v3320
      %v3406 = vpack.c.b16 %v3323, %v3322
      %v3407 = vpack.c.b16 %v3325, %v3324
      %v3408 = vpack.c.b16 %v3327, %v3326
      %v3409 = vpack.c.b16 %v3329, %v3328
      %v3410 = vpack.c.b16 %v3331, %v3330
      %v3411 = vpack.c.b16 %v3333, %v3332
      %v3412 = vpack.c.b16 %v3335, %v3334
      %v3413 = vpack.c.b16 %v3337, %v3336
      %v3414 = vpack.c.b16 %v3339, %v3338
      %v3415 = vpack.c.b16 %v3341, %v3340
      %v3416 = vpack.c.b16 %v3343, %v3342
      %v3417 = vpack.c.b16 %v3345, %v3344
      %3490 = vmatprep.subr.bf16.mxu0 0
      %3491 = vmatpush1.bf16.msra.mxu0 %v3353
      %3492 = vmatprep.subr.bf16.mxu0 0
      %3493 = vmatpush1.bf16.msra.mxu0 %v3352
      %3494 = vmatprep.subr.bf16.mxu0 0
      %3495 = vmatpush1.bf16.msra.mxu0 %v3351
      %3496 = vmatprep.subr.bf16.mxu0 0
      %3497 = vmatpush1.bf16.msra.mxu0 %v3350
      %3498 = vmatprep.subr.bf16.mxu0 0
      %3499 = vmatpush1.bf16.msra.mxu0 %v3349
      %3500 = vmatprep.subr.bf16.mxu0 0
      %3501 = vmatpush1.bf16.msra.mxu0 %v3348
      %3502 = vmatprep.subr.bf16.mxu0 0
      %3503 = vmatpush1.bf16.msra.mxu0 %v3347
      %3504 = vmatprep.subr.bf16.mxu0 0
      %3505 = vmatpush1.bf16.msra.mxu0 %v3346
      %3506 = vmatprep.subr.bf16.mxu0 0
      %3507 = vmatpush2.bf16.msra.mxu0 %v3361
      %3508 = vmatprep.subr.bf16.mxu0 0
      %3509 = vmatpush2.bf16.msra.mxu0 %v3360
      %3510 = vmatprep.subr.bf16.mxu0 0
      %3511 = vmatpush2.bf16.msra.mxu0 %v3359
      %3512 = vmatprep.subr.bf16.mxu0 0
      %3513 = vmatpush2.bf16.msra.mxu0 %v3358
      %3514 = vmatprep.subr.bf16.mxu0 0
      %3515 = vmatpush2.bf16.msra.mxu0 %v3357
      %3516 = vmatprep.subr.bf16.mxu0 0
      %3517 = vmatpush2.bf16.msra.mxu0 %v3356
      %3518 = vmatprep.subr.bf16.mxu0 0
      %3519 = vmatpush2.bf16.msra.mxu0 %v3355
      %3520 = vmatprep.subr.bf16.mxu0 0
      %3521 = vmatpush2.bf16.msra.mxu0 %v3354
      %3522 = vmatprep.mubr.bf16.mxu0 %v2915
      %3523 = vmatmul.mubr.bf16.gmra.mxu0 %v2914
      %v3524 = vpop.f32.mrf.mxu0
      %v3525 = vadd.f32 0.0, %v3524
      %v3526 = vpop.f32.mrf.mxu0
      %v3527 = vpop.f32.mrf.mxu0
      %v3528 = vadd.f32 0.0, %v3527
      %v3529 = vpop.f32.mrf.mxu0
      %3530 = vmatprep.mubr.bf16.mxu0 %v2924
      %3531 = vmatmul.mubr.bf16.gmra.mxu0 %v2923
      %v3532 = vpop.f32.mrf.mxu0
      %v3533 = vadd.f32 0.0, %v3532
      %v3534 = vpop.f32.mrf.mxu0
      %v3535 = vpop.f32.mrf.mxu0
      %v3536 = vadd.f32 0.0, %v3535
      %v3537 = vpop.f32.mrf.mxu0
      %3538 = vmatprep.mubr.bf16.mxu0 %v2933
      %3539 = vmatmul.mubr.bf16.gmra.mxu0 %v2932
      %v3540 = vpop.f32.mrf.mxu0
      %v3541 = vadd.f32 0.0, %v3540
      %v3542 = vpop.f32.mrf.mxu0
      %v3543 = vpop.f32.mrf.mxu0
      %v3544 = vadd.f32 0.0, %v3543
      %v3545 = vpop.f32.mrf.mxu0
      %3546 = vmatprep.mubr.bf16.mxu0 %v2942
      %3547 = vmatmul.mubr.bf16.gmra.mxu0 %v2941
      %v3548 = vpop.f32.mrf.mxu0
      %v3549 = vadd.f32 0.0, %v3548
      %v3550 = vpop.f32.mrf.mxu0
      %v3551 = vpop.f32.mrf.mxu0
      %v3552 = vadd.f32 0.0, %v3551
      %v3553 = vpop.f32.mrf.mxu0
      %3554 = vmatprep.mubr.bf16.mxu0 %v2951
      %3555 = vmatmul.mubr.bf16.gmra.mxu0 %v2950
      %v3556 = vpop.f32.mrf.mxu0
      %v3557 = vadd.f32 0.0, %v3556
      %v3558 = vpop.f32.mrf.mxu0
      %v3559 = vpop.f32.mrf.mxu0
      %v3560 = vadd.f32 0.0, %v3559
      %v3561 = vpop.f32.mrf.mxu0
      %3562 = vmatprep.mubr.bf16.mxu0 %v2960
      %3563 = vmatmul.mubr.bf16.gmra.mxu0 %v2959
      %v3564 = vpop.f32.mrf.mxu0
      %v3565 = vadd.f32 0.0, %v3564
      %v3566 = vpop.f32.mrf.mxu0
      %v3567 = vpop.f32.mrf.mxu0
      %v3568 = vadd.f32 0.0, %v3567
      %v3569 = vpop.f32.mrf.mxu0
      %3570 = vmatprep.mubr.bf16.mxu0 %v2969
      %3571 = vmatmul.mubr.bf16.gmra.mxu0 %v2968
      %v3572 = vpop.f32.mrf.mxu0
      %v3573 = vadd.f32 0.0, %v3572
      %v3574 = vpop.f32.mrf.mxu0
      %v3575 = vpop.f32.mrf.mxu0
      %v3576 = vadd.f32 0.0, %v3575
      %v3577 = vpop.f32.mrf.mxu0
      %3578 = vmatprep.mubr.bf16.mxu0 %v2978
      %3579 = vmatmul.mubr.bf16.gmra.mxu0 %v2977
      %v3580 = vpop.f32.mrf.mxu0
      %v3581 = vadd.f32 0.0, %v3580
      %v3582 = vpop.f32.mrf.mxu0
      %v3583 = vpop.f32.mrf.mxu0
      %v3584 = vadd.f32 0.0, %v3583
      %v3585 = vpop.f32.mrf.mxu0
      %3586 = vdwg.mxu0
      %3587 = vmatprep.subr.bf16.mxu0 0
      %3588 = vmatpush1.bf16.msra.mxu0 %v3369
      %3589 = vmatprep.subr.bf16.mxu0 0
      %3590 = vmatpush1.bf16.msra.mxu0 %v3368
      %3591 = vmatprep.subr.bf16.mxu0 0
      %3592 = vmatpush1.bf16.msra.mxu0 %v3367
      %3593 = vmatprep.subr.bf16.mxu0 0
      %3594 = vmatpush1.bf16.msra.mxu0 %v3366
      %3595 = vmatprep.subr.bf16.mxu0 0
      %3596 = vmatpush1.bf16.msra.mxu0 %v3365
      %3597 = vmatprep.subr.bf16.mxu0 0
      %3598 = vmatpush1.bf16.msra.mxu0 %v3364
      %3599 = vmatprep.subr.bf16.mxu0 0
      %3600 = vmatpush1.bf16.msra.mxu0 %v3363
      %3601 = vmatprep.subr.bf16.mxu0 0
      %3602 = vmatpush1.bf16.msra.mxu0 %v3362
      %3603 = vmatprep.subr.bf16.mxu0 0
      %3604 = vmatpush2.bf16.msra.mxu0 %v3377
      %3605 = vmatprep.subr.bf16.mxu0 0
      %3606 = vmatpush2.bf16.msra.mxu0 %v3376
      %3607 = vmatprep.subr.bf16.mxu0 0
      %3608 = vmatpush2.bf16.msra.mxu0 %v3375
      %3609 = vmatprep.subr.bf16.mxu0 0
      %3610 = vmatpush2.bf16.msra.mxu0 %v3374
      %3611 = vmatprep.subr.bf16.mxu0 0
      %3612 = vmatpush2.bf16.msra.mxu0 %v3373
      %3613 = vmatprep.subr.bf16.mxu0 0
      %3614 = vmatpush2.bf16.msra.mxu0 %v3372
      %3615 = vmatprep.subr.bf16.mxu0 0
      %3616 = vmatpush2.bf16.msra.mxu0 %v3371
      %3617 = vmatprep.subr.bf16.mxu0 0
      %3618 = vmatpush2.bf16.msra.mxu0 %v3370
      %3619 = vmatprep.mubr.bf16.mxu0 %v2917
      %3620 = vmatmul.mubr.bf16.gmra.mxu0 %v2916
      %v3621 = vpop.f32.mrf.mxu0
      %v3622 = vadd.f32 %v3525, %v3621
      %v3623 = vpop.f32.mrf.mxu0
      %v3624 = vpop.f32.mrf.mxu0
      %v3625 = vadd.f32 %v3528, %v3624
      %v3626 = vpop.f32.mrf.mxu0
      %3627 = vmatprep.mubr.bf16.mxu0 %v2926
      %3628 = vmatmul.mubr.bf16.gmra.mxu0 %v2925
      %v3629 = vpop.f32.mrf.mxu0
      %v3630 = vadd.f32 %v3533, %v3629
      %v3631 = vpop.f32.mrf.mxu0
      %v3632 = vpop.f32.mrf.mxu0
      %v3633 = vadd.f32 %v3536, %v3632
      %v3634 = vpop.f32.mrf.mxu0
      %3635 = vmatprep.mubr.bf16.mxu0 %v2935
      %3636 = vmatmul.mubr.bf16.gmra.mxu0 %v2934
      %v3637 = vpop.f32.mrf.mxu0
      %v3638 = vadd.f32 %v3541, %v3637
      %v3639 = vpop.f32.mrf.mxu0
      %v3640 = vpop.f32.mrf.mxu0
      %v3641 = vadd.f32 %v3544, %v3640
      %v3642 = vpop.f32.mrf.mxu0
      %3643 = vmatprep.mubr.bf16.mxu0 %v2944
      %3644 = vmatmul.mubr.bf16.gmra.mxu0 %v2943
      %v3645 = vpop.f32.mrf.mxu0
      %v3646 = vadd.f32 %v3549, %v3645
      %v3647 = vpop.f32.mrf.mxu0
      %v3648 = vpop.f32.mrf.mxu0
      %v3649 = vadd.f32 %v3552, %v3648
      %v3650 = vpop.f32.mrf.mxu0
      %3651 = vmatprep.mubr.bf16.mxu0 %v2953
      %3652 = vmatmul.mubr.bf16.gmra.mxu0 %v2952
      %v3653 = vpop.f32.mrf.mxu0
      %v3654 = vadd.f32 %v3557, %v3653
      %v3655 = vpop.f32.mrf.mxu0
      %v3656 = vpop.f32.mrf.mxu0
      %v3657 = vadd.f32 %v3560, %v3656
      %v3658 = vpop.f32.mrf.mxu0
      %3659 = vmatprep.mubr.bf16.mxu0 %v2962
      %3660 = vmatmul.mubr.bf16.gmra.mxu0 %v2961
      %v3661 = vpop.f32.mrf.mxu0
      %v3662 = vadd.f32 %v3565, %v3661
      %v3663 = vpop.f32.mrf.mxu0
      %v3664 = vpop.f32.mrf.mxu0
      %v3665 = vadd.f32 %v3568, %v3664
      %v3666 = vpop.f32.mrf.mxu0
      %3667 = vmatprep.mubr.bf16.mxu0 %v2971
      %3668 = vmatmul.mubr.bf16.gmra.mxu0 %v2970
      %v3669 = vpop.f32.mrf.mxu0
      %v3670 = vadd.f32 %v3573, %v3669
      %v3671 = vpop.f32.mrf.mxu0
      %v3672 = vpop.f32.mrf.mxu0
      %v3673 = vadd.f32 %v3576, %v3672
      %v3674 = vpop.f32.mrf.mxu0
      %3675 = vmatprep.mubr.bf16.mxu0 %v2980
      %3676 = vmatmul.mubr.bf16.gmra.mxu0 %v2979
      %v3677 = vpop.f32.mrf.mxu0
      %v3678 = vadd.f32 %v3581, %v3677
      %v3679 = vpop.f32.mrf.mxu0
      %v3680 = vpop.f32.mrf.mxu0
      %v3681 = vadd.f32 %v3584, %v3680
      %v3682 = vpop.f32.mrf.mxu0
      %3683 = vdwg.mxu0
      %3684 = vmatprep.subr.bf16.mxu0 0
      %3685 = vmatpush1.bf16.msra.mxu0 %v3385
      %3686 = vmatprep.subr.bf16.mxu0 0
      %3687 = vmatpush1.bf16.msra.mxu0 %v3384
      %3688 = vmatprep.subr.bf16.mxu0 0
      %3689 = vmatpush1.bf16.msra.mxu0 %v3383
      %3690 = vmatprep.subr.bf16.mxu0 0
      %3691 = vmatpush1.bf16.msra.mxu0 %v3382
      %3692 = vmatprep.subr.bf16.mxu0 0
      %3693 = vmatpush1.bf16.msra.mxu0 %v3381
      %3694 = vmatprep.subr.bf16.mxu0 0
      %3695 = vmatpush1.bf16.msra.mxu0 %v3380
      %3696 = vmatprep.subr.bf16.mxu0 0
      %3697 = vmatpush1.bf16.msra.mxu0 %v3379
      %3698 = vmatprep.subr.bf16.mxu0 0
      %3699 = vmatpush1.bf16.msra.mxu0 %v3378
      %3700 = vmatprep.subr.bf16.mxu0 0
      %3701 = vmatpush2.bf16.msra.mxu0 %v3393
      %3702 = vmatprep.subr.bf16.mxu0 0
      %3703 = vmatpush2.bf16.msra.mxu0 %v3392
      %3704 = vmatprep.subr.bf16.mxu0 0
      %3705 = vmatpush2.bf16.msra.mxu0 %v3391
      %3706 = vmatprep.subr.bf16.mxu0 0
      %3707 = vmatpush2.bf16.msra.mxu0 %v3390
      %3708 = vmatprep.subr.bf16.mxu0 0
      %3709 = vmatpush2.bf16.msra.mxu0 %v3389
      %3710 = vmatprep.subr.bf16.mxu0 0
      %3711 = vmatpush2.bf16.msra.mxu0 %v3388
      %3712 = vmatprep.subr.bf16.mxu0 0
      %3713 = vmatpush2.bf16.msra.mxu0 %v3387
      %3714 = vmatprep.subr.bf16.mxu0 0
      %3715 = vmatpush2.bf16.msra.mxu0 %v3386
      %3716 = vmatprep.mubr.bf16.mxu0 %v2919
      %3717 = vmatmul.mubr.bf16.gmra.mxu0 %v2918
      %v3718 = vpop.f32.mrf.mxu0
      %v3719 = vadd.f32 %v3622, %v3718
      %v3720 = vpop.f32.mrf.mxu0
      %v3721 = vpop.f32.mrf.mxu0
      %v3722 = vadd.f32 %v3625, %v3721
      %v3723 = vpop.f32.mrf.mxu0
      %3724 = vmatprep.mubr.bf16.mxu0 %v2928
      %3725 = vmatmul.mubr.bf16.gmra.mxu0 %v2927
      %v3726 = vpop.f32.mrf.mxu0
      %v3727 = vadd.f32 %v3630, %v3726
      %v3728 = vpop.f32.mrf.mxu0
      %v3729 = vpop.f32.mrf.mxu0
      %v3730 = vadd.f32 %v3633, %v3729
      %v3731 = vpop.f32.mrf.mxu0
      %3732 = vmatprep.mubr.bf16.mxu0 %v2937
      %3733 = vmatmul.mubr.bf16.gmra.mxu0 %v2936
      %v3734 = vpop.f32.mrf.mxu0
      %v3735 = vadd.f32 %v3638, %v3734
      %v3736 = vpop.f32.mrf.mxu0
      %v3737 = vpop.f32.mrf.mxu0
      %v3738 = vadd.f32 %v3641, %v3737
      %v3739 = vpop.f32.mrf.mxu0
      %3740 = vmatprep.mubr.bf16.mxu0 %v2946
      %3741 = vmatmul.mubr.bf16.gmra.mxu0 %v2945
      %v3742 = vpop.f32.mrf.mxu0
      %v3743 = vadd.f32 %v3646, %v3742
      %v3744 = vpop.f32.mrf.mxu0
      %v3745 = vpop.f32.mrf.mxu0
      %v3746 = vadd.f32 %v3649, %v3745
      %v3747 = vpop.f32.mrf.mxu0
      %3748 = vmatprep.mubr.bf16.mxu0 %v2955
      %3749 = vmatmul.mubr.bf16.gmra.mxu0 %v2954
      %v3750 = vpop.f32.mrf.mxu0
      %v3751 = vadd.f32 %v3654, %v3750
      %v3752 = vpop.f32.mrf.mxu0
      %v3753 = vpop.f32.mrf.mxu0
      %v3754 = vadd.f32 %v3657, %v3753
      %v3755 = vpop.f32.mrf.mxu0
      %3756 = vmatprep.mubr.bf16.mxu0 %v2964
      %3757 = vmatmul.mubr.bf16.gmra.mxu0 %v2963
      %v3758 = vpop.f32.mrf.mxu0
      %v3759 = vadd.f32 %v3662, %v3758
      %v3760 = vpop.f32.mrf.mxu0
      %v3761 = vpop.f32.mrf.mxu0
      %v3762 = vadd.f32 %v3665, %v3761
      %v3763 = vpop.f32.mrf.mxu0
      %3764 = vmatprep.mubr.bf16.mxu0 %v2973
      %3765 = vmatmul.mubr.bf16.gmra.mxu0 %v2972
      %v3766 = vpop.f32.mrf.mxu0
      %v3767 = vadd.f32 %v3670, %v3766
      %v3768 = vpop.f32.mrf.mxu0
      %v3769 = vpop.f32.mrf.mxu0
      %v3770 = vadd.f32 %v3673, %v3769
      %v3771 = vpop.f32.mrf.mxu0
      %3772 = vmatprep.mubr.bf16.mxu0 %v2982
      %3773 = vmatmul.mubr.bf16.gmra.mxu0 %v2981
      %v3774 = vpop.f32.mrf.mxu0
      %v3775 = vadd.f32 %v3678, %v3774
      %v3776 = vpop.f32.mrf.mxu0
      %v3777 = vpop.f32.mrf.mxu0
      %v3778 = vadd.f32 %v3681, %v3777
      %v3779 = vpop.f32.mrf.mxu0
      %3780 = vdwg.mxu0
      %3781 = vmatprep.subr.bf16.mxu0 0
      %3782 = vmatpush1.bf16.msra.mxu0 %v3401
      %3783 = vmatprep.subr.bf16.mxu0 0
      %3784 = vmatpush1.bf16.msra.mxu0 %v3400
      %3785 = vmatprep.subr.bf16.mxu0 0
      %3786 = vmatpush1.bf16.msra.mxu0 %v3399
      %3787 = vmatprep.subr.bf16.mxu0 0
      %3788 = vmatpush1.bf16.msra.mxu0 %v3398
      %3789 = vmatprep.subr.bf16.mxu0 0
      %3790 = vmatpush1.bf16.msra.mxu0 %v3397
      %3791 = vmatprep.subr.bf16.mxu0 0
      %3792 = vmatpush1.bf16.msra.mxu0 %v3396
      %3793 = vmatprep.subr.bf16.mxu0 0
      %3794 = vmatpush1.bf16.msra.mxu0 %v3395
      %3795 = vmatprep.subr.bf16.mxu0 0
      %3796 = vmatpush1.bf16.msra.mxu0 %v3394
      %3797 = vmatprep.subr.bf16.mxu0 0
      %3798 = vmatpush2.bf16.msra.mxu0 %v3409
      %3799 = vmatprep.subr.bf16.mxu0 0
      %3800 = vmatpush2.bf16.msra.mxu0 %v3408
      %3801 = vmatprep.subr.bf16.mxu0 0
      %3802 = vmatpush2.bf16.msra.mxu0 %v3407
      %3803 = vmatprep.subr.bf16.mxu0 0
      %3804 = vmatpush2.bf16.msra.mxu0 %v3406
      %3805 = vmatprep.subr.bf16.mxu0 0
      %3806 = vmatpush2.bf16.msra.mxu0 %v3405
      %3807 = vmatprep.subr.bf16.mxu0 0
      %3808 = vmatpush2.bf16.msra.mxu0 %v3404
      %3809 = vmatprep.subr.bf16.mxu0 0
      %3810 = vmatpush2.bf16.msra.mxu0 %v3403
      %3811 = vmatprep.subr.bf16.mxu0 0
      %3812 = vmatpush2.bf16.msra.mxu0 %v3402
      %3813 = vmatprep.mubr.bf16.mxu0 %v2921
      %3814 = vmatmul.mubr.bf16.gmra.mxu0 %v2920
      %v3815 = vpop.f32.mrf.mxu0
      %v3816 = vadd.f32 %v3719, %v3815
      %v3817 = vpop.f32.mrf.mxu0
      %v3818 = vpop.f32.mrf.mxu0
      %v3819 = vadd.f32 %v3722, %v3818
      %v3820 = vpop.f32.mrf.mxu0
      %3821 = vmatprep.mubr.bf16.mxu0 %v2930
      %3822 = vmatmul.mubr.bf16.gmra.mxu0 %v2929
      %v3823 = vpop.f32.mrf.mxu0
      %v3824 = vadd.f32 %v3727, %v3823
      %v3825 = vpop.f32.mrf.mxu0
      %v3826 = vpop.f32.mrf.mxu0
      %v3827 = vadd.f32 %v3730, %v3826
      %v3828 = vpop.f32.mrf.mxu0
      %3829 = vmatprep.mubr.bf16.mxu0 %v2939
      %3830 = vmatmul.mubr.bf16.gmra.mxu0 %v2938
      %v3831 = vpop.f32.mrf.mxu0
      %v3832 = vadd.f32 %v3735, %v3831
      %v3833 = vpop.f32.mrf.mxu0
      %v3834 = vpop.f32.mrf.mxu0
      %v3835 = vadd.f32 %v3738, %v3834
      %v3836 = vpop.f32.mrf.mxu0
      %3837 = vmatprep.mubr.bf16.mxu0 %v2948
      %3838 = vmatmul.mubr.bf16.gmra.mxu0 %v2947
      %v3839 = vpop.f32.mrf.mxu0
      %v3840 = vadd.f32 %v3743, %v3839
      %v3841 = vpop.f32.mrf.mxu0
      %v3842 = vpop.f32.mrf.mxu0
      %v3843 = vadd.f32 %v3746, %v3842
      %v3844 = vpop.f32.mrf.mxu0
      %3845 = vmatprep.mubr.bf16.mxu0 %v2957
      %3846 = vmatmul.mubr.bf16.gmra.mxu0 %v2956
      %v3847 = vpop.f32.mrf.mxu0
      %v3848 = vadd.f32 %v3751, %v3847
      %v3849 = vpop.f32.mrf.mxu0
      %v3850 = vpop.f32.mrf.mxu0
      %v3851 = vadd.f32 %v3754, %v3850
      %v3852 = vpop.f32.mrf.mxu0
      %3853 = vmatprep.mubr.bf16.mxu0 %v2966
      %3854 = vmatmul.mubr.bf16.gmra.mxu0 %v2965
      %v3855 = vpop.f32.mrf.mxu0
      %v3856 = vadd.f32 %v3759, %v3855
      %v3857 = vpop.f32.mrf.mxu0
      %v3858 = vpop.f32.mrf.mxu0
      %v3859 = vadd.f32 %v3762, %v3858
      %v3860 = vpop.f32.mrf.mxu0
      %3861 = vmatprep.mubr.bf16.mxu0 %v2975
      %3862 = vmatmul.mubr.bf16.gmra.mxu0 %v2974
      %v3863 = vpop.f32.mrf.mxu0
      %v3864 = vadd.f32 %v3767, %v3863
      %v3865 = vpop.f32.mrf.mxu0
      %v3866 = vpop.f32.mrf.mxu0
      %v3867 = vadd.f32 %v3770, %v3866
      %v3868 = vpop.f32.mrf.mxu0
      %3869 = vmatprep.mubr.bf16.mxu0 %v2984
      %3870 = vmatmul.mubr.bf16.gmra.mxu0 %v2983
      %v3871 = vpop.f32.mrf.mxu0
      %v3872 = vadd.f32 %v3775, %v3871
      %v3873 = vpop.f32.mrf.mxu0
      %v3874 = vpop.f32.mrf.mxu0
      %v3875 = vadd.f32 %v3778, %v3874
      %v3876 = vpop.f32.mrf.mxu0
      %3877 = vdwg.mxu0
      %3878 = vmatprep.subr.bf16.mxu0 0
      %3879 = vmatpush1.bf16.msra.mxu0 %v3417
      %3880 = vmatprep.subr.bf16.mxu0 0
      %3881 = vmatpush1.bf16.msra.mxu0 %v3416
      %3882 = vmatprep.subr.bf16.mxu0 0
      %3883 = vmatpush1.bf16.msra.mxu0 %v3415
      %3884 = vmatprep.subr.bf16.mxu0 0
      %3885 = vmatpush1.bf16.msra.mxu0 %v3414
      %3886 = vmatprep.subr.bf16.mxu0 0
      %3887 = vmatpush1.bf16.msra.mxu0 %v3413
      %3888 = vmatprep.subr.bf16.mxu0 0
      %3889 = vmatpush1.bf16.msra.mxu0 %v3412
      %3890 = vmatprep.subr.bf16.mxu0 0
      %3891 = vmatpush1.bf16.msra.mxu0 %v3411
      %3892 = vmatprep.subr.bf16.mxu0 0
      %3893 = vmatpush1.bf16.msra.mxu0 %v3410
      %3894 = vmatprep.subr.bf16.mxu0 0
      %3895 = vmatpush2.bf16.msra.mxu0 0
      %3896 = vmatprep.subr.bf16.mxu0 0
      %3897 = vmatpush2.bf16.msra.mxu0 0
      %3898 = vmatprep.subr.bf16.mxu0 0
      %3899 = vmatpush2.bf16.msra.mxu0 0
      %3900 = vmatprep.subr.bf16.mxu0 0
      %3901 = vmatpush2.bf16.msra.mxu0 0
      %3902 = vmatprep.subr.bf16.mxu0 0
      %3903 = vmatpush2.bf16.msra.mxu0 0
      %3904 = vmatprep.subr.bf16.mxu0 0
      %3905 = vmatpush2.bf16.msra.mxu0 0
      %3906 = vmatprep.subr.bf16.mxu0 0
      %3907 = vmatpush2.bf16.msra.mxu0 0
      %3908 = vmatprep.subr.bf16.mxu0 0
      %3909 = vmatpush2.bf16.msra.mxu0 0
      %3910 = vmatprep.mubr.bf16.mxu0 0
      %3911 = vmatmul.mubr.bf16.gmra.mxu0 %v2922
      %v3912 = vpop.f32.mrf.mxu0
      %v3913 = vadd.f32 %v3816, %v3912
      %v3914 = vpop.f32.mrf.mxu0
      %v3915 = vpop.f32.mrf.mxu0
      %v3916 = vadd.f32 %v3819, %v3915
      %v3917 = vpop.f32.mrf.mxu0
      %3918 = vmatprep.mubr.bf16.mxu0 0
      %3919 = vmatmul.mubr.bf16.gmra.mxu0 %v2931
      %v3920 = vpop.f32.mrf.mxu0
      %v3921 = vadd.f32 %v3824, %v3920
      %v3922 = vpop.f32.mrf.mxu0
      %v3923 = vpop.f32.mrf.mxu0
      %v3924 = vadd.f32 %v3827, %v3923
      %v3925 = vpop.f32.mrf.mxu0
      %3926 = vmatprep.mubr.bf16.mxu0 0
      %3927 = vmatmul.mubr.bf16.gmra.mxu0 %v2940
      %v3928 = vpop.f32.mrf.mxu0
      %v3929 = vadd.f32 %v3832, %v3928
      %v3930 = vpop.f32.mrf.mxu0
      %v3931 = vpop.f32.mrf.mxu0
      %v3932 = vadd.f32 %v3835, %v3931
      %v3933 = vpop.f32.mrf.mxu0
      %3934 = vmatprep.mubr.bf16.mxu0 0
      %3935 = vmatmul.mubr.bf16.gmra.mxu0 %v2949
      %v3936 = vpop.f32.mrf.mxu0
      %v3937 = vadd.f32 %v3840, %v3936
      %v3938 = vpop.f32.mrf.mxu0
      %v3939 = vpop.f32.mrf.mxu0
      %v3940 = vadd.f32 %v3843, %v3939
      %v3941 = vpop.f32.mrf.mxu0
      %3942 = vmatprep.mubr.bf16.mxu0 0
      %3943 = vmatmul.mubr.bf16.gmra.mxu0 %v2958
      %v3944 = vpop.f32.mrf.mxu0
      %v3945 = vadd.f32 %v3848, %v3944
      %v3946 = vpop.f32.mrf.mxu0
      %v3947 = vpop.f32.mrf.mxu0
      %v3948 = vadd.f32 %v3851, %v3947
      %v3949 = vpop.f32.mrf.mxu0
      %3950 = vmatprep.mubr.bf16.mxu0 0
      %3951 = vmatmul.mubr.bf16.gmra.mxu0 %v2967
      %v3952 = vpop.f32.mrf.mxu0
      %v3953 = vadd.f32 %v3856, %v3952
      %v3954 = vpop.f32.mrf.mxu0
      %v3955 = vpop.f32.mrf.mxu0
      %v3956 = vadd.f32 %v3859, %v3955
      %v3957 = vpop.f32.mrf.mxu0
      %3958 = vmatprep.mubr.bf16.mxu0 0
      %3959 = vmatmul.mubr.bf16.gmra.mxu0 %v2976
      %v3960 = vpop.f32.mrf.mxu0
      %v3961 = vadd.f32 %v3864, %v3960
      %v3962 = vpop.f32.mrf.mxu0
      %v3963 = vpop.f32.mrf.mxu0
      %v3964 = vadd.f32 %v3867, %v3963
      %v3965 = vpop.f32.mrf.mxu0
      %3966 = vmatprep.mubr.bf16.mxu0 0
      %3967 = vmatmul.mubr.bf16.gmra.mxu0 %v2985
      %v3968 = vpop.f32.mrf.mxu0
      %v3969 = vadd.f32 %v3872, %v3968
      %v3970 = vpop.f32.mrf.mxu0
      %v3971 = vpop.f32.mrf.mxu0
      %v3972 = vadd.f32 %v3875, %v3971
      %v3973 = vpop.f32.mrf.mxu0
      %3974 = vdwg.mxu0
      %v3975 = vld [vmem:[%s8] sm:$0x1]
      %v3977 = vlaneseq
      %v3978 = vshrl.u32 %v3977, 7
      %v3979 = vsub.s32 0, %v3978
      %v3980 = vrot.slane %v3975, %v3979
      %v3982 = vmul.f32 %v3913, %v3980
      %v3983 = vmul.f32 %v3916, %v3980
      %v3984 = vmul.f32 %v3921, %v3980
      %v3985 = vmul.f32 %v3924, %v3980
      %v3986 = vmul.f32 %v3929, %v3980
      %v3987 = vmul.f32 %v3932, %v3980
      %v3988 = vmul.f32 %v3937, %v3980
      %v3989 = vmul.f32 %v3940, %v3980
      %v3990 = vmul.f32 %v3945, %v3980
      %v3991 = vmul.f32 %v3948, %v3980
      %v3992 = vmul.f32 %v3953, %v3980
      %v3993 = vmul.f32 %v3956, %v3980
      %v3994 = vmul.f32 %v3961, %v3980
      %v3995 = vmul.f32 %v3964, %v3980
      %v3996 = vmul.f32 %v3969, %v3980
      %v3997 = vmul.f32 %v3972, %v3980
      %v3998 = vld [vmem:[%s9] sm:$0x1]
      %v4000 = vlaneseq
      %v4001 = vshrl.u32 %v4000, 7
      %v4002 = vsub.s32 0, %v4001
      %v4003 = vrot.slane %v3998, %v4002
      %v4005 = vadd.f32 %v3982, %v4003
      %v4006 = vadd.f32 %v3983, %v4003
      %v4007 = vadd.f32 %v3984, %v4003
      %v4008 = vadd.f32 %v3985, %v4003
      %v4009 = vadd.f32 %v3986, %v4003
      %v4010 = vadd.f32 %v3987, %v4003
      %v4011 = vadd.f32 %v3988, %v4003
      %v4012 = vadd.f32 %v3989, %v4003
      %v4013 = vadd.f32 %v3990, %v4003
      %v4014 = vadd.f32 %v3991, %v4003
      %v4015 = vadd.f32 %v3992, %v4003
      %v4016 = vadd.f32 %v3993, %v4003
      %v4017 = vadd.f32 %v3994, %v4003
      %v4018 = vadd.f32 %v3995, %v4003
      %v4019 = vadd.f32 %v3996, %v4003
      %v4020 = vadd.f32 %v3997, %v4003
      %v4021 = vmax.f32 %v4005, 0.0
      %v4022 = vmax.f32 %v4006, 0.0
      %v4023 = vmax.f32 %v4007, 0.0
      %v4024 = vmax.f32 %v4008, 0.0
      %v4025 = vmax.f32 %v4009, 0.0
      %v4026 = vmax.f32 %v4010, 0.0
      %v4027 = vmax.f32 %v4011, 0.0
      %v4028 = vmax.f32 %v4012, 0.0
      %v4029 = vmax.f32 %v4013, 0.0
      %v4030 = vmax.f32 %v4014, 0.0
      %v4031 = vmax.f32 %v4015, 0.0
      %v4032 = vmax.f32 %v4016, 0.0
      %v4033 = vmax.f32 %v4017, 0.0
      %v4034 = vmax.f32 %v4018, 0.0
      %v4035 = vmax.f32 %v4019, 0.0
      %v4036 = vmax.f32 %v4020, 0.0
      %v4037 = vpack.c.bf16 %v4022, %v4021
      %v4038 = vpack.c.bf16 %v4024, %v4023
      %v4039 = vpack.c.bf16 %v4026, %v4025
      %v4040 = vpack.c.bf16 %v4028, %v4027
      %v4041 = vpack.c.bf16 %v4030, %v4029
      %v4042 = vpack.c.bf16 %v4032, %v4031
      %v4043 = vpack.c.bf16 %v4034, %v4033
      %v4044 = vpack.c.bf16 %v4036, %v4035
      %v4045 = vld [vmem:[%s5] sm:$0xf]
      %v4046 = vld [vmem:[%s5 + $0x4] sm:$0xf]
      %v4047 = vld [vmem:[%s5 + $0x8] sm:$0xf]
      %v4048 = vld [vmem:[%s5 + $0xc] sm:$0xf]
      %v4049 = vld [vmem:[%s5 + $0x10] sm:$0xf]
      %v4050 = vld [vmem:[%s5 + $0x14] sm:$0xf]
      %v4051 = vld [vmem:[%s5 + $0x18] sm:$0xf]
      %v4052 = vld [vmem:[%s5 + $0x1c] sm:$0xf]
      %v4053 = vld [vmem:[%s5 + $0x20] sm:$0xf]
      %v4054 = vld [vmem:[%s5 + $0x24] sm:$0xf]
      %v4055 = vld [vmem:[%s5 + $0x28] sm:$0xf]
      %v4056 = vld [vmem:[%s5 + $0x2c] sm:$0xf]
      %v4057 = vld [vmem:[%s5 + $0x30] sm:$0xf]
      %v4058 = vld [vmem:[%s5 + $0x34] sm:$0xf]
      %v4059 = vld [vmem:[%s5 + $0x38] sm:$0xf]
      %v4060 = vld [vmem:[%s5 + $0x3c] sm:$0xf]
      %v4077 = vunpack.c.l.b16 %v4045
      %v4078 = vunpack.c.l.b16 %v4046
      %v4079 = vunpack.c.l.b16 %v4047
      %v4080 = vunpack.c.l.b16 %v4048
      %v4081 = vunpack.c.l.b16 %v4049
      %v4082 = vunpack.c.l.b16 %v4050
      %v4083 = vunpack.c.l.b16 %v4051
      %v4084 = vunpack.c.l.b16 %v4052
      %v4085 = vunpack.c.l.b16 %v4053
      %v4086 = vunpack.c.l.b16 %v4054
      %v4087 = vunpack.c.l.b16 %v4055
      %v4088 = vunpack.c.l.b16 %v4056
      %v4089 = vunpack.c.l.b16 %v4057
      %v4090 = vunpack.c.l.b16 %v4058
      %v4091 = vunpack.c.l.b16 %v4059
      %v4092 = vunpack.c.l.b16 %v4060
      %v4093 = vpack.c.b16 %v4078, %v4077
      %v4094 = vpack.c.b16 %v4080, %v4079
      %v4095 = vpack.c.b16 %v4082, %v4081
      %v4096 = vpack.c.b16 %v4084, %v4083
      %v4097 = vpack.c.b16 %v4086, %v4085
      %v4098 = vpack.c.b16 %v4088, %v4087
      %v4099 = vpack.c.b16 %v4090, %v4089
      %v4100 = vpack.c.b16 %v4092, %v4091
      %4109 = vmatprep.subr.bf16.mxu0 0
      %4110 = vmatpush1.bf16.msra.mxu0 %v4100
      %4111 = vmatprep.subr.bf16.mxu0 0
      %4112 = vmatpush1.bf16.msra.mxu0 %v4099
      %4113 = vmatprep.subr.bf16.mxu0 0
      %4114 = vmatpush1.bf16.msra.mxu0 %v4098
      %4115 = vmatprep.subr.bf16.mxu0 0
      %4116 = vmatpush1.bf16.msra.mxu0 %v4097
      %4117 = vmatprep.subr.bf16.mxu0 0
      %4118 = vmatpush1.bf16.msra.mxu0 %v4096
      %4119 = vmatprep.subr.bf16.mxu0 0
      %4120 = vmatpush1.bf16.msra.mxu0 %v4095
      %4121 = vmatprep.subr.bf16.mxu0 0
      %4122 = vmatpush1.bf16.msra.mxu0 %v4094
      %4123 = vmatprep.subr.bf16.mxu0 0
      %4124 = vmatpush1.bf16.msra.mxu0 %v4093
      %4125 = vmatprep.subr.bf16.mxu0 0
      %4126 = vmatpush2.bf16.msra.mxu0 0
      %4127 = vmatprep.subr.bf16.mxu0 0
      %4128 = vmatpush2.bf16.msra.mxu0 0
      %4129 = vmatprep.subr.bf16.mxu0 0
      %4130 = vmatpush2.bf16.msra.mxu0 0
      %4131 = vmatprep.subr.bf16.mxu0 0
      %4132 = vmatpush2.bf16.msra.mxu0 0
      %4133 = vmatprep.subr.bf16.mxu0 0
      %4134 = vmatpush2.bf16.msra.mxu0 0
      %4135 = vmatprep.subr.bf16.mxu0 0
      %4136 = vmatpush2.bf16.msra.mxu0 0
      %4137 = vmatprep.subr.bf16.mxu0 0
      %4138 = vmatpush2.bf16.msra.mxu0 0
      %4139 = vmatprep.subr.bf16.mxu0 0
      %4140 = vmatpush2.bf16.msra.mxu0 0
      %4141 = vmatprep.mubr.bf16.mxu0 0
      %4142 = vmatmul.mubr.bf16.gmra.mxu0 %v4037
      %v4143 = vpop.f32.mrf.mxu0
      %v4144 = vadd.f32 0.0, %v4143
      %v4145 = vpop.f32.mrf.mxu0
      %v4146 = vpop.f32.mrf.mxu0
      %v4147 = vadd.f32 0.0, %v4146
      %v4148 = vpop.f32.mrf.mxu0
      %4149 = vmatprep.mubr.bf16.mxu0 0
      %4150 = vmatmul.mubr.bf16.gmra.mxu0 %v4038
      %v4151 = vpop.f32.mrf.mxu0
      %v4152 = vadd.f32 0.0, %v4151
      %v4153 = vpop.f32.mrf.mxu0
      %v4154 = vpop.f32.mrf.mxu0
      %v4155 = vadd.f32 0.0, %v4154
      %v4156 = vpop.f32.mrf.mxu0
      %4157 = vmatprep.mubr.bf16.mxu0 0
      %4158 = vmatmul.mubr.bf16.gmra.mxu0 %v4039
      %v4159 = vpop.f32.mrf.mxu0
      %v4160 = vadd.f32 0.0, %v4159
      %v4161 = vpop.f32.mrf.mxu0
      %v4162 = vpop.f32.mrf.mxu0
      %v4163 = vadd.f32 0.0, %v4162
      %v4164 = vpop.f32.mrf.mxu0
      %4165 = vmatprep.mubr.bf16.mxu0 0
      %4166 = vmatmul.mubr.bf16.gmra.mxu0 %v4040
      %v4167 = vpop.f32.mrf.mxu0
      %v4168 = vadd.f32 0.0, %v4167
      %v4169 = vpop.f32.mrf.mxu0
      %v4170 = vpop.f32.mrf.mxu0
      %v4171 = vadd.f32 0.0, %v4170
      %v4172 = vpop.f32.mrf.mxu0
      %4173 = vmatprep.mubr.bf16.mxu0 0
      %4174 = vmatmul.mubr.bf16.gmra.mxu0 %v4041
      %v4175 = vpop.f32.mrf.mxu0
      %v4176 = vadd.f32 0.0, %v4175
      %v4177 = vpop.f32.mrf.mxu0
      %v4178 = vpop.f32.mrf.mxu0
      %v4179 = vadd.f32 0.0, %v4178
      %v4180 = vpop.f32.mrf.mxu0
      %4181 = vmatprep.mubr.bf16.mxu0 0
      %4182 = vmatmul.mubr.bf16.gmra.mxu0 %v4042
      %v4183 = vpop.f32.mrf.mxu0
      %v4184 = vadd.f32 0.0, %v4183
      %v4185 = vpop.f32.mrf.mxu0
      %v4186 = vpop.f32.mrf.mxu0
      %v4187 = vadd.f32 0.0, %v4186
      %v4188 = vpop.f32.mrf.mxu0
      %4189 = vmatprep.mubr.bf16.mxu0 0
      %4190 = vmatmul.mubr.bf16.gmra.mxu0 %v4043
      %v4191 = vpop.f32.mrf.mxu0
      %v4192 = vadd.f32 0.0, %v4191
      %v4193 = vpop.f32.mrf.mxu0
      %v4194 = vpop.f32.mrf.mxu0
      %v4195 = vadd.f32 0.0, %v4194
      %v4196 = vpop.f32.mrf.mxu0
      %4197 = vmatprep.mubr.bf16.mxu0 0
      %4198 = vmatmul.mubr.bf16.gmra.mxu0 %v4044
      %v4199 = vpop.f32.mrf.mxu0
      %v4200 = vadd.f32 0.0, %v4199
      %v4201 = vpop.f32.mrf.mxu0
      %v4202 = vpop.f32.mrf.mxu0
      %v4203 = vadd.f32 0.0, %v4202
      %v4204 = vpop.f32.mrf.mxu0
      %4205 = vdwg.mxu0
      %v4206 = vld [vmem:[%s10] sm:$0x1]
      %v4208 = vlaneseq
      %v4209 = vshrl.u32 %v4208, 7
      %v4210 = vsub.s32 0, %v4209
      %v4211 = vrot.slane %v4206, %v4210
      %v4213 = vmul.f32 %v4144, %v4211
      %v4214 = vmul.f32 %v4147, %v4211
      %v4215 = vmul.f32 %v4152, %v4211
      %v4216 = vmul.f32 %v4155, %v4211
      %v4217 = vmul.f32 %v4160, %v4211
      %v4218 = vmul.f32 %v4163, %v4211
      %v4219 = vmul.f32 %v4168, %v4211
      %v4220 = vmul.f32 %v4171, %v4211
      %v4221 = vmul.f32 %v4176, %v4211
      %v4222 = vmul.f32 %v4179, %v4211
      %v4223 = vmul.f32 %v4184, %v4211
      %v4224 = vmul.f32 %v4187, %v4211
      %v4225 = vmul.f32 %v4192, %v4211
      %v4226 = vmul.f32 %v4195, %v4211
      %v4227 = vmul.f32 %v4200, %v4211
      %v4228 = vmul.f32 %v4203, %v4211
      %v4229 = vld [vmem:[%s11] sm:$0x1]
      %v4231 = vlaneseq
      %v4232 = vshrl.u32 %v4231, 7
      %v4233 = vsub.s32 0, %v4232
      %v4234 = vrot.slane %v4229, %v4233
      %v4236 = vadd.f32 %v4213, %v4234
      %v4237 = vadd.f32 %v4214, %v4234
      %v4238 = vadd.f32 %v4215, %v4234
      %v4239 = vadd.f32 %v4216, %v4234
      %v4240 = vadd.f32 %v4217, %v4234
      %v4241 = vadd.f32 %v4218, %v4234
      %v4242 = vadd.f32 %v4219, %v4234
      %v4243 = vadd.f32 %v4220, %v4234
      %v4244 = vadd.f32 %v4221, %v4234
      %v4245 = vadd.f32 %v4222, %v4234
      %v4246 = vadd.f32 %v4223, %v4234
      %v4247 = vadd.f32 %v4224, %v4234
      %v4248 = vadd.f32 %v4225, %v4234
      %v4249 = vadd.f32 %v4226, %v4234
      %v4250 = vadd.f32 %v4227, %v4234
      %v4251 = vadd.f32 %v4228, %v4234
      %v4252 = vadd.f32 %v4236, %v519
      %v4253 = vadd.f32 %v4237, %v520
      %v4254 = vadd.f32 %v4238, %v521
      %v4255 = vadd.f32 %v4239, %v522
      %v4256 = vadd.f32 %v4240, %v523
      %v4257 = vadd.f32 %v4241, %v524
      %v4258 = vadd.f32 %v4242, %v525
      %v4259 = vadd.f32 %v4243, %v526
      %v4260 = vadd.f32 %v4244, %v527
      %v4261 = vadd.f32 %v4245, %v528
      %v4262 = vadd.f32 %v4246, %v529
      %v4263 = vadd.f32 %v4247, %v530
      %v4264 = vadd.f32 %v4248, %v531
      %v4265 = vadd.f32 %v4249, %v532
      %v4266 = vadd.f32 %v4250, %v533
      %v4267 = vadd.f32 %v4251, %v534
      %v4268 = vmax.f32 %v4252, 0.0
      %v4269 = vmax.f32 %v4253, 0.0
      %v4270 = vmax.f32 %v4254, 0.0
      %v4271 = vmax.f32 %v4255, 0.0
      %v4272 = vmax.f32 %v4256, 0.0
      %v4273 = vmax.f32 %v4257, 0.0
      %v4274 = vmax.f32 %v4258, 0.0
      %v4275 = vmax.f32 %v4259, 0.0
      %v4276 = vmax.f32 %v4260, 0.0
      %v4277 = vmax.f32 %v4261, 0.0
      %v4278 = vmax.f32 %v4262, 0.0
      %v4279 = vmax.f32 %v4263, 0.0
      %v4280 = vmax.f32 %v4264, 0.0
      %v4281 = vmax.f32 %v4265, 0.0
      %v4282 = vmax.f32 %v4266, 0.0
      %v4283 = vmax.f32 %v4267, 0.0
      %v4284 = vpack.c.bf16 %v4269, %v4268
      %v4285 = vpack.c.bf16 %v4271, %v4270
      %v4286 = vpack.c.bf16 %v4273, %v4272
      %v4287 = vpack.c.bf16 %v4275, %v4274
      %v4288 = vpack.c.bf16 %v4277, %v4276
      %v4289 = vpack.c.bf16 %v4279, %v4278
      %v4290 = vpack.c.bf16 %v4281, %v4280
      %v4291 = vpack.c.bf16 %v4283, %v4282
      %v4300 = vunpack.c.l.b16 %v4284
      %v4301 = vunpack.c.h.b16 %v4284
      %v4302 = vunpack.c.l.b16 %v4285
      %v4303 = vunpack.c.h.b16 %v4285
      %v4304 = vunpack.c.l.b16 %v4286
      %v4305 = vunpack.c.h.b16 %v4286
      %v4306 = vunpack.c.l.b16 %v4287
      %v4307 = vunpack.c.h.b16 %v4287
      %v4308 = vunpack.c.l.b16 %v4288
      %v4309 = vunpack.c.h.b16 %v4288
      %v4310 = vunpack.c.l.b16 %v4289
      %v4311 = vunpack.c.h.b16 %v4289
      %v4312 = vunpack.c.l.b16 %v4290
      %v4313 = vunpack.c.h.b16 %v4290
      %v4314 = vunpack.c.l.b16 %v4291
      %v4315 = vunpack.c.h.b16 %v4291
      %v4316 = vpack.c.b16 %v4300, %v4300
      %v4317 = vpack.c.b16 %v4301, %v4301
      %v4318 = vpack.c.b16 %v4302, %v4302
      %v4319 = vpack.c.b16 %v4303, %v4303
      %v4320 = vpack.c.b16 %v4304, %v4304
      %v4321 = vpack.c.b16 %v4305, %v4305
      %v4322 = vpack.c.b16 %v4306, %v4306
      %v4323 = vpack.c.b16 %v4307, %v4307
      %v4324 = vpack.c.b16 %v4308, %v4308
      %v4325 = vpack.c.b16 %v4309, %v4309
      %v4326 = vpack.c.b16 %v4310, %v4310
      %v4327 = vpack.c.b16 %v4311, %v4311
      %v4328 = vpack.c.b16 %v4312, %v4312
      %v4329 = vpack.c.b16 %v4313, %v4313
      %v4330 = vpack.c.b16 %v4314, %v4314
      %v4331 = vpack.c.b16 %v4315, %v4315
      %4348 = vst [vmem:[%s517] sm:$0xf] %v4316
      %4349 = vst [vmem:[%s517 + $0x4] sm:$0xf] %v4317
      %4350 = vst [vmem:[%s517 + $0x8] sm:$0xf] %v4318
      %4351 = vst [vmem:[%s517 + $0xc] sm:$0xf] %v4319
      %4352 = vst [vmem:[%s517 + $0x10] sm:$0xf] %v4320
      %4353 = vst [vmem:[%s517 + $0x14] sm:$0xf] %v4321
      %4354 = vst [vmem:[%s517 + $0x18] sm:$0xf] %v4322
      %4355 = vst [vmem:[%s517 + $0x1c] sm:$0xf] %v4323
      %4356 = vst [vmem:[%s517 + $0x20] sm:$0xf] %v4324
      %4357 = vst [vmem:[%s517 + $0x24] sm:$0xf] %v4325
      %4358 = vst [vmem:[%s517 + $0x28] sm:$0xf] %v4326
      %4359 = vst [vmem:[%s517 + $0x2c] sm:$0xf] %v4327
      %4360 = vst [vmem:[%s517 + $0x30] sm:$0xf] %v4328
      %4361 = vst [vmem:[%s517 + $0x34] sm:$0xf] %v4329
      %4362 = vst [vmem:[%s517 + $0x38] sm:$0xf] %v4330
      %4363 = vst [vmem:[%s517 + $0x3c] sm:$0xf] %v4331
      %p4364 = scmp.lt.s32.totalorder %s27, 1
      %s4365 = scalar_select %p4364, %s27, 1
      %p4366 = scmp.lt.s32.totalorder %s28, 1
      %s4367 = scalar_select %p4366, %s28, 1
      %s4368 = smul.addr %s4367, 16
      %s4369 = smul.addr %s4365, 32
      %s4370 = sadd.s32 %s4368, %s4369
      %s4371 = smul.addr %s4370, 4
      %s4372 = scalar_lea.vmem %s12, %s4371
      // Predicated region
      $region69: #{bottleneck_forward.1} parent=67 // pred_check
        %p4373 = pneg %p328
      $region70: #{bottleneck_forward.1} parent=67 // pred_check_branch
        %4375 = sbr.rel (%p4373) target = $region72
      $region71: #{bottleneck_forward.1} parent=67 // pred_region
        _
      $region72: #{bottleneck_forward.1} parent=67 // pred_fallthru
        _
    $region68: #{bottleneck_forward.1} parent=5 // pred_fallthru
      _
    %p4376 = scmp.le.s32.totalorder 2, %s18
    // Predicated region
    $region73: #{bottleneck_forward.1} parent=5 // pred_check
      %p4377 = pneg %p4376
    $region74: #{bottleneck_forward.1} parent=5 // pred_check_branch
      %4379 = sbr.rel (%p4377) target = $region76
    $region75: #{bottleneck_forward.1} parent=5 // pred_region
      %s4380 = ssub.s32 %s18, 2
      // Predicated region
      $region77: #{bottleneck_forward.1} parent=75 // pred_check
        %p4381 = pneg %p334
      $region78: #{bottleneck_forward.1} parent=75 // pred_check_branch
        %4383 = sbr.rel (%p4381) target = $region80
      $region79: #{bottleneck_forward.1} parent=75 // pred_region
        %p4384 = scmp.lt.s32.totalorder %s29, 1
        %s4385 = scalar_select %p4384, %s29, 1
        %p4386 = scmp.lt.s32.totalorder %s30, 1
        %s4387 = scalar_select %p4386, %s30, 1
        %s4388 = smul.addr %s4387, 16
        %s4389 = smul.addr %s4385, 32
        %s4390 = sadd.s32 %s4388, %s4389
        %s4391 = smul.addr %s4390, 4
        %s4392 = scalar_lea.vmem %s12, %s4391
      $region80: #{bottleneck_forward.1} parent=75 // pred_fallthru
        _
    $region76: #{bottleneck_forward.1} parent=5 // pred_fallthru
      _
  $region6: #{bottleneck_forward.1} parent=0 // loop_footer
    %s22 = sadd.s32 1, %s18
  $region7: #{bottleneck_forward.1} parent=0 // loop_footer_branch
    %17 = sbr.rel target = $region3
  $region8: #{bottleneck_forward.1} parent=0 // loop_exit
    _

</llo_original>
